<compile_context>
chip_gen: v7x
topology: tpu7x:2x2x1
jax: 0.10.0
libtpu: 0.0.40
codegen_flags: <defaults>
</compile_context>

<pallas_src>
import functools

import jax
import jax.numpy as jnp
from jax.experimental import pallas as pl
from jax.experimental.pallas import tpu as pltpu


def _round_up(x, m):
    return (x + m - 1) // m * m


# ---------------------------------------------------------------------------
# Pallas kernel: one detection layer (1x1 conv + decode) over a row tile.
# ---------------------------------------------------------------------------
def _detect_layer_kernel(x_ref, w_ref, c_ref, y_ref, raw_ref=None, *, tm, nx, ny):
    # x_ref   : (tm, C)       bf16  input pixels, rows = flattened (b, gy, gx)
    # w_ref   : (C, co_pad)   bf16  1x1 conv weight (transposed, zero-padded cols)
    # c_ref   : (8, co_pad)   f32   per-column constants:
    #            row 0: bias   row 1: A (s^2)   row 2: B (s)   row 3: C (const)
    #            row 4: GX (grid-x scale)       row 5: GY (grid-y scale)
    # y_ref   : (tm, co_pad)  f32   decoded predictions
    # raw_ref : (tm, co_pad)  f32   raw conv output (pre-sigmoid), optional
    v = jnp.dot(x_ref[...], w_ref[...], preferred_element_type=jnp.float32)
    v = v + c_ref[0:1, :]                       # + bias (f32)
    if raw_ref is not None:
        raw_ref[...] = v
    s = jax.nn.sigmoid(v)                       # EUP; keep decode in f32 (v5e)

    # Per-row grid coordinates from the flat row index r = b*ny*nx + gy*nx + gx.
    # floor((r + 0.5) * (1/n)) == r // n exactly for the row counts seen here,
    # so no integer div/mod and no DMA'd grid-coordinate stream is needed.
    r = pl.program_id(0) * tm + jax.lax.broadcasted_iota(jnp.int32, (tm, 1), 0)
    r = r.astype(jnp.float32)
    q = jnp.floor((r + 0.5) * (1.0 / nx))       # r // nx
    gx = r - nx * q
    gy = q - ny * jnp.floor((q + 0.5) * (1.0 / ny))

    y_ref[...] = ((c_ref[1:2, :] * s + c_ref[2:3, :]) * s + c_ref[3:4, :]
                  + gx * c_ref[4:5, :] + gy * c_ref[5:6, :])


# ---------------------------------------------------------------------------
# Per-layer wrapper (layout changes + per-column constant setup).
# ---------------------------------------------------------------------------
def detect_layer(x_nchw, weight, bias, anchors_l, stride, *, no, na,
                 compute_raw=True):
    """One detection layer: 1x1 conv + bias + YOLO decode.

    Returns (y, raw):
      y   : (bs, na*ny*nx, no)    decoded predictions (one z entry)
      raw : (bs, na, ny, nx, no)  raw conv output (PyTorch x[i]); None if
                                  compute_raw=False (export/NMS-only path).
    """
    bs, C, ny, nx = x_nchw.shape
    co = na * no
    co_pad = _round_up(co, 128)          # lane-dense outputs -> unmasked stores
    N = bs * ny * nx

    tm = min(1024, _round_up(N, 16))     # big row tiles amortize step overhead
    grid = pl.cdiv(N, tm)
    n_pad = grid * tm

    # NCHW -> (N, C) rows in (b, gy, gx) order; bf16 operands for the MXU.
    # Cast before the transpose so the layout pass moves half the bytes.
    x_flat = jnp.transpose(x_nchw.astype(jnp.bfloat16), (0, 2, 3, 1)).reshape(N, C)
    if n_pad != N:
        x_flat = jnp.pad(x_flat, ((0, n_pad - N), (0, 0)))

    # 1x1 conv weight -> (C, co_pad) with zero-padded columns.
    w2 = jnp.zeros((C, co_pad), jnp.float32)
    w2 = w2.at[:, :co].set(weight.reshape(co, C).T).astype(jnp.bfloat16)

    # Fold the per-channel decode (o = c % no) into per-column constants:
    #   y = (A*s + B)*s + Cst + GX*gx + GY*gy
    stride = float(stride)
    o_idx = jnp.arange(co) % no
    a_idx = jnp.arange(co) // no
    anch_w = anchors_l[a_idx, 0]
    anch_h = anchors_l[a_idx, 1]
    A = jnp.where(o_idx == 2, 4.0 * anch_w,
                  jnp.where(o_idx == 3, 4.0 * anch_h, 0.0))
    B = jnp.where(o_idx < 2, 2.0 * stride, jnp.where(o_idx < 4, 0.0, 1.0))
    Cst = jnp.where(o_idx < 2, -0.5 * stride, 0.0)
    GX = jnp.where(o_idx == 0, stride, 0.0)
    GY = jnp.where(o_idx == 1, stride, 0.0)
    consts = jnp.zeros((8, co_pad), jnp.float32)
    for row, vals in enumerate((bias.reshape(co), A, B, Cst, GX, GY)):
        consts = consts.at[row, :co].set(vals.astype(jnp.float32))

    out_shape = [jax.ShapeDtypeStruct((n_pad, co_pad), jnp.float32)]
    out_specs = [pl.BlockSpec((tm, co_pad), lambda i: (i, 0))]
    if compute_raw:
        out_shape.append(jax.ShapeDtypeStruct((n_pad, co_pad), jnp.float32))
        out_specs.append(pl.BlockSpec((tm, co_pad), lambda i: (i, 0)))

    kernel = functools.partial(_detect_layer_kernel, tm=tm, nx=nx, ny=ny)
    outs = pl.pallas_call(
        kernel,
        out_shape=tuple(out_shape),
        grid=(grid,),
        in_specs=[
            pl.BlockSpec((tm, C), lambda i: (i, 0)),
            pl.BlockSpec((C, co_pad), lambda i: (0, 0)),   # resident across steps
            pl.BlockSpec((8, co_pad), lambda i: (0, 0)),   # resident across steps
        ],
        out_specs=tuple(out_specs),
        compiler_params=pltpu.CompilerParams(
            dimension_semantics=("parallel",)),   # megacore / v7x 2-TC split
    )(x_flat, w2, consts)

    # TODO(synk): write y/raw directly in (bs, na, ny, nx, no) order from the
    # kernel (anchor-major grid axis) to drop these wrapper-side HBM passes.
    y = (outs[0][:N, :co]
         .reshape(bs, ny, nx, na, no)
         .transpose(0, 3, 1, 2, 4)
         .reshape(bs, na * ny * nx, no))
    if not compute_raw:
        return y, None
    raw = (outs[1][:N, :co]
           .reshape(bs, ny, nx, na, no)
           .transpose(0, 3, 1, 2, 4))
    return y, raw


@functools.partial(jax.jit, static_argnames=("strides", "no", "na", "training"))
def detect_forward(xs, weights, biases, anchors, strides, *, no, na,
                   training=False):
    """Detect.forward: training -> [x_i]; inference -> (cat(z, 1), [x_i])."""
    # TODO(synk): fuse the per-layer pallas_calls into a single launch
    # (PrefetchScalarGridSpec with per-tile layer ids selecting weight/constant
    # blocks) to amortize the remaining per-call overhead; blocked on the
    # per-layer channel counts differing (padding to C_max inflates HBM reads).
    zs, raws = [], []
    for i, x in enumerate(xs):
        y, raw = detect_layer(x, weights[i], biases[i], anchors[i], strides[i],
                              no=no, na=na, compute_raw=True)
        zs.append(y)
        raws.append(raw)
    if training:
        return raws
    return jnp.concatenate(zs, axis=1), raws


# ---------------------------------------------------------------------------
# Pure-JAX reference (for correctness check only).
# ---------------------------------------------------------------------------
def detect_reference(xs, weights, biases, anchors, strides, *, no, na,
                     matmul_dtype=jnp.float32):
    zs, raws = [], []
    for i, x in enumerate(xs):
        bsz, C, ny, nx = x.shape
        co = na * no
        w2 = weights[i].reshape(co, C)
        v = jnp.einsum("bchw,oc->bohw",
                       x.astype(matmul_dtype), w2.astype(matmul_dtype),
                       preferred_element_type=jnp.float32)
        v = v + biases[i].reshape(1, co, 1, 1)
        v = v.reshape(bsz, na, no, ny, nx).transpose(0, 1, 3, 4, 2)
        raws.append(v)
        y = jax.nn.sigmoid(v)
        yv, xv = jnp.meshgrid(jnp.arange(ny), jnp.arange(nx), indexing="ij")
        grid = jnp.stack([xv, yv], axis=-1).astype(jnp.float32).reshape(1, 1, ny, nx, 2)
        ag = anchors[i].reshape(1, na, 1, 1, 2)
        xy = (y[..., 0:2] * 2.0 - 0.5 + grid) * strides[i]
        wh = (y[..., 2:4] * 2.0) ** 2 * ag
        y = jnp.concatenate([xy, wh, y[..., 4:]], axis=-1)
        zs.append(y.reshape(bsz, -1, no))
    return jnp.concatenate(zs, axis=1), raws


if __name__ == "__main__":
    # Small, Detect-consistent configuration.
    nc = 11                      # classes
    no = nc + 5                  # outputs per anchor = 16
    anchors_cfg = [[10., 13., 16., 30.],
                   [30., 61., 62., 45.],
                   [116., 90., 156., 198.]]
    nl = len(anchors_cfg)        # 3 detection layers
    na = len(anchors_cfg[0]) // 2  # 2 anchors per layer
    ch = (8, 16, 32)             # input channels per layer
    spatial = (16, 8, 4)         # feature-map sizes
    strides = (8.0, 16.0, 32.0)
    bs = 2

    anchors = jnp.asarray(anchors_cfg, jnp.float32).reshape(nl, na, 2)

    key = jax.random.PRNGKey(0)
    weights, biases, xs = [], [], []
    for i in range(nl):
        key, kw, kb, kx = jax.random.split(key, 4)
        weights.append(0.05 * jax.random.normal(kw, (na * no, ch[i], 1, 1), jnp.float32))
        biases.append(0.01 * jax.random.normal(kb, (na * no,), jnp.float32))
        xs.append(jax.random.normal(kx, (bs, ch[i], spatial[i], spatial[i]), jnp.float32))

    z, raws = detect_forward(xs, weights, biases, anchors, strides, no=no, na=na)
    z = jax.block_until_ready(z)
    raws = [jax.block_until_ready(r) for r in raws]
    assert z.shape == (bs, sum(na * s * s for s in spatial), no), z.shape

    # Tight check vs a reference using the same bf16 matmul operands
    # (verifies the kernel's decode / grid / layout logic exactly).
    z_bf, raws_bf = detect_reference(xs, weights, biases, anchors, strides,
                                     no=no, na=na, matmul_dtype=jnp.bfloat16)
    assert jnp.allclose(z, z_bf, rtol=5e-3, atol=5e-3), "decoded mismatch (bf16 ref)"
    for r, rr in zip(raws, raws_bf):
        assert r.shape == rr.shape
        assert jnp.allclose(r, rr, rtol=5e-3, atol=5e-3), "raw conv mismatch (bf16 ref)"

    # Loose check vs the full-f32 reference (difference is only bf16 operand
    # quantization of the 1x1 conv inputs).
    z_f32, raws_f32 = detect_reference(xs, weights, biases, anchors, strides,
                                       no=no, na=na, matmul_dtype=jnp.float32)
    assert jnp.allclose(z, z_f32, rtol=5e-2, atol=0.5), "decoded drift vs f32 ref"
    for r, rr in zip(raws, raws_f32):
        assert jnp.allclose(r, rr, rtol=5e-2, atol=5e-2), "raw conv drift vs f32 ref"

    print("KERNEL_OK")
</pallas_src>

<mosaic_0001>
module attributes {stable_mosaic.version = 11 : i64} {
  func.func @_detect_layer_kernel(%arg0: i32, %arg1: memref<512x8xbf16, #tpu.memory_space<vmem>>, %arg2: memref<8x128xbf16, #tpu.memory_space<vmem>>, %arg3: memref<8x128xf32, #tpu.memory_space<vmem>>, %arg4: memref<512x128xf32, #tpu.memory_space<vmem>>, %arg5: memref<512x128xf32, #tpu.memory_space<vmem>>) attributes {dimension_semantics = [#tpu.dimension_semantics<parallel>], iteration_bounds = array<i64: 1>, scalar_prefetch = 0 : i64, scratch_operands = 0 : i64, tpu.core_type = #tpu.core_type<tc>, window_params = [{transform_indices = @transform_0, window_bounds = array<i64: 512, 8>}, {pipeline_mode = #tpu.pipeline_mode<synchronous>, transform_indices = @transform_1, window_bounds = array<i64: 8, 128>}, {pipeline_mode = #tpu.pipeline_mode<synchronous>, transform_indices = @transform_2, window_bounds = array<i64: 8, 128>}, {transform_indices = @transform_3, window_bounds = array<i64: 512, 128>}, {transform_indices = @transform_4, window_bounds = array<i64: 512, 128>}]} {
    %c0 = arith.constant 0 : index
    %c0_0 = arith.constant 0 : index
    %0 = vector.load %arg1[%c0, %c0_0] : memref<512x8xbf16, #tpu.memory_space<vmem>>, vector<512x8xbf16>
    %c0_1 = arith.constant 0 : index
    %c0_2 = arith.constant 0 : index
    %1 = vector.load %arg2[%c0_1, %c0_2] : memref<8x128xbf16, #tpu.memory_space<vmem>>, vector<8x128xbf16>
    %cst = arith.constant dense<0.000000e+00> : vector<512x128xf32>
    %2 = tpu.matmul %0, %1, %cst {dimension_numbers = #tpu.dot_dimension_numbers<[1], [0], [0], [1], [0, 0, 1, 1], [], []>} : vector<512x8xbf16>, vector<8x128xbf16>, vector<512x128xf32> -> vector<512x128xf32>
    %c0_3 = arith.constant 0 : index
    %c0_4 = arith.constant 0 : index
    %3 = vector.load %arg3[%c0_3, %c0_4] : memref<8x128xf32, #tpu.memory_space<vmem>>, vector<1x128xf32>
    %4 = vector.broadcast %3 : vector<1x128xf32> to vector<512x128xf32>
    %5 = arith.addf %2, %4 : vector<512x128xf32>
    %c0_5 = arith.constant 0 : index
    %c0_6 = arith.constant 0 : index
    %6 = vector.load %arg5[%c0_5, %c0_6] : memref<512x128xf32, #tpu.memory_space<vmem>>, vector<512x128xf32>
    tpu.vector_store %arg5[%c0_5, %c0_6], %5 {strides = array<i32>} : memref<512x128xf32, #tpu.memory_space<vmem>>, vector<512x128xf32>,
    %7 = arith.negf %5 : vector<512x128xf32>
    %8 = math.exp %7 : vector<512x128xf32>
    %cst_7 = arith.constant 1.000000e+00 : f32
    %9 = vector.broadcast %cst_7 : f32 to vector<512x128xf32>
    %10 = arith.addf %9, %8 : vector<512x128xf32>
    %11 = arith.divf %9, %10 : vector<512x128xf32>
    %c512_i32 = arith.constant 512 : i32
    %12 = arith.muli %arg0, %c512_i32 : i32
    %13 = tpu.iota {dimensions = array<i32: 0>} : vector<512x1xi32>
    %14 = vector.broadcast %12 : i32 to vector<512x1xi32>
    %15 = arith.addi %14, %13 : vector<512x1xi32>
    %16 = arith.sitofp %15 : vector<512x1xi32> to vector<512x1xf32>
    %cst_8 = arith.constant 5.000000e-01 : f32
    %17 = vector.broadcast %cst_8 : f32 to vector<512x1xf32>
    %18 = arith.addf %16, %17 : vector<512x1xf32>
    %cst_9 = arith.constant 6.250000e-02 : f32
    %19 = vector.broadcast %cst_9 : f32 to vector<512x1xf32>
    %20 = arith.mulf %18, %19 : vector<512x1xf32>
    %21 = math.floor %20 : vector<512x1xf32>
    %cst_10 = arith.constant 1.600000e+01 : f32
    %22 = vector.broadcast %cst_10 : f32 to vector<512x1xf32>
    %23 = arith.mulf %22, %21 : vector<512x1xf32>
    %24 = arith.subf %16, %23 : vector<512x1xf32>
    %cst_11 = arith.constant 5.000000e-01 : f32
    %25 = vector.broadcast %cst_11 : f32 to vector<512x1xf32>
    %26 = arith.addf %21, %25 : vector<512x1xf32>
    %cst_12 = arith.constant 6.250000e-02 : f32
    %27 = vector.broadcast %cst_12 : f32 to vector<512x1xf32>
    %28 = arith.mulf %26, %27 : vector<512x1xf32>
    %29 = math.floor %28 : vector<512x1xf32>
    %cst_13 = arith.constant 1.600000e+01 : f32
    %30 = vector.broadcast %cst_13 : f32 to vector<512x1xf32>
    %31 = arith.mulf %30, %29 : vector<512x1xf32>
    %32 = arith.subf %21, %31 : vector<512x1xf32>
    %c1 = arith.constant 1 : index
    %c0_14 = arith.constant 0 : index
    %33 = vector.load %arg3[%c1, %c0_14] : memref<8x128xf32, #tpu.memory_space<vmem>>, vector<1x128xf32>
    %34 = vector.broadcast %33 : vector<1x128xf32> to vector<512x128xf32>
    %35 = arith.mulf %34, %11 : vector<512x128xf32>
    %c2 = arith.constant 2 : index
    %c0_15 = arith.constant 0 : index
    %36 = vector.load %arg3[%c2, %c0_15] : memref<8x128xf32, #tpu.memory_space<vmem>>, vector<1x128xf32>
    %37 = vector.broadcast %36 : vector<1x128xf32> to vector<512x128xf32>
    %38 = arith.addf %35, %37 : vector<512x128xf32>
    %39 = arith.mulf %38, %11 : vector<512x128xf32>
    %c3 = arith.constant 3 : index
    %c0_16 = arith.constant 0 : index
    %40 = vector.load %arg3[%c3, %c0_16] : memref<8x128xf32, #tpu.memory_space<vmem>>, vector<1x128xf32>
    %41 = vector.broadcast %40 : vector<1x128xf32> to vector<512x128xf32>
    %42 = arith.addf %39, %41 : vector<512x128xf32>
    %c4 = arith.constant 4 : index
    %c0_17 = arith.constant 0 : index
    %43 = vector.load %arg3[%c4, %c0_17] : memref<8x128xf32, #tpu.memory_space<vmem>>, vector<1x128xf32>
    %44 = vector.broadcast %24 : vector<512x1xf32> to vector<512x128xf32>
    %45 = vector.broadcast %43 : vector<1x128xf32> to vector<512x128xf32>
    %46 = arith.mulf %44, %45 : vector<512x128xf32>
    %47 = arith.addf %42, %46 : vector<512x128xf32>
    %c5 = arith.constant 5 : index
    %c0_18 = arith.constant 0 : index
    %48 = vector.load %arg3[%c5, %c0_18] : memref<8x128xf32, #tpu.memory_space<vmem>>, vector<1x128xf32>
    %49 = vector.broadcast %32 : vector<512x1xf32> to vector<512x128xf32>
    %50 = vector.broadcast %48 : vector<1x128xf32> to vector<512x128xf32>
    %51 = arith.mulf %49, %50 : vector<512x128xf32>
    %52 = arith.addf %47, %51 : vector<512x128xf32>
    %c0_19 = arith.constant 0 : index
    %c0_20 = arith.constant 0 : index
    %53 = vector.load %arg4[%c0_19, %c0_20] : memref<512x128xf32, #tpu.memory_space<vmem>>, vector<512x128xf32>
    tpu.vector_store %arg4[%c0_19, %c0_20], %52 {strides = array<i32>} : memref<512x128xf32, #tpu.memory_space<vmem>>, vector<512x128xf32>,
    return
  }
  func.func @transform_0(%arg0: i32) -> (i32, i32) {
    %c0_i32 = arith.constant 0 : i32
    %c0_i32_0 = arith.constant 0 : i32
    return %arg0, %c0_i32 : i32, i32
  }
  func.func @transform_1(%arg0: i32) -> (i32, i32) {
    %c0_i32 = arith.constant 0 : i32
    %c0_i32_0 = arith.constant 0 : i32
    %c0_i32_1 = arith.constant 0 : i32
    return %c0_i32, %c0_i32_0 : i32, i32
  }
  func.func @transform_2(%arg0: i32) -> (i32, i32) {
    %c0_i32 = arith.constant 0 : i32
    %c0_i32_0 = arith.constant 0 : i32
    %c0_i32_1 = arith.constant 0 : i32
    return %c0_i32, %c0_i32_0 : i32, i32
  }
  func.func @transform_3(%arg0: i32) -> (i32, i32) {
    %c0_i32 = arith.constant 0 : i32
    %c0_i32_0 = arith.constant 0 : i32
    return %arg0, %c0_i32 : i32, i32
  }
  func.func @transform_4(%arg0: i32) -> (i32, i32) {
    %c0_i32 = arith.constant 0 : i32
    %c0_i32_0 = arith.constant 0 : i32
    return %arg0, %c0_i32 : i32, i32
  }
}

module attributes {stable_mosaic.version = 11 : i64} {
  func.func @_detect_layer_kernel(%arg0: i32, %arg1: memref<128x16xbf16, #tpu.memory_space<vmem>>, %arg2: memref<16x128xbf16, #tpu.memory_space<vmem>>, %arg3: memref<8x128xf32, #tpu.memory_space<vmem>>, %arg4: memref<128x128xf32, #tpu.memory_space<vmem>>, %arg5: memref<128x128xf32, #tpu.memory_space<vmem>>) attributes {dimension_semantics = [#tpu.dimension_semantics<parallel>], iteration_bounds = array<i64: 1>, scalar_prefetch = 0 : i64, scratch_operands = 0 : i64, tpu.core_type = #tpu.core_type<tc>, window_params = [{transform_indices = @transform_0, window_bounds = array<i64: 128, 16>}, {pipeline_mode = #tpu.pipeline_mode<synchronous>, transform_indices = @transform_1, window_bounds = array<i64: 16, 128>}, {pipeline_mode = #tpu.pipeline_mode<synchronous>, transform_indices = @transform_2, window_bounds = array<i64: 8, 128>}, {transform_indices = @transform_3, window_bounds = array<i64: 128, 128>}, {transform_indices = @transform_4, window_bounds = array<i64: 128, 128>}]} {
    %c0 = arith.constant 0 : index
    %c0_0 = arith.constant 0 : index
    %0 = vector.load %arg1[%c0, %c0_0] : memref<128x16xbf16, #tpu.memory_space<vmem>>, vector<128x16xbf16>
    %c0_1 = arith.constant 0 : index
    %c0_2 = arith.constant 0 : index
    %1 = vector.load %arg2[%c0_1, %c0_2] : memref<16x128xbf16, #tpu.memory_space<vmem>>, vector<16x128xbf16>
    %cst = arith.constant dense<0.000000e+00> : vector<128x128xf32>
    %2 = tpu.matmul %0, %1, %cst {dimension_numbers = #tpu.dot_dimension_numbers<[1], [0], [0], [1], [0, 0, 1, 1], [], []>} : vector<128x16xbf16>, vector<16x128xbf16>, vector<128x128xf32> -> vector<128x128xf32>
    %c0_3 = arith.constant 0 : index
    %c0_4 = arith.constant 0 : index
    %3 = vector.load %arg3[%c0_3, %c0_4] : memref<8x128xf32, #tpu.memory_space<vmem>>, vector<1x128xf32>
    %4 = vector.broadcast %3 : vector<1x128xf32> to vector<128x128xf32>
    %5 = arith.addf %2, %4 : vector<128x128xf32>
    %c0_5 = arith.constant 0 : index
    %c0_6 = arith.constant 0 : index
    %6 = vector.load %arg5[%c0_5, %c0_6] : memref<128x128xf32, #tpu.memory_space<vmem>>, vector<128x128xf32>
    tpu.vector_store %arg5[%c0_5, %c0_6], %5 {strides = array<i32>} : memref<128x128xf32, #tpu.memory_space<vmem>>, vector<128x128xf32>,
    %7 = arith.negf %5 : vector<128x128xf32>
    %8 = math.exp %7 : vector<128x128xf32>
    %cst_7 = arith.constant 1.000000e+00 : f32
    %9 = vector.broadcast %cst_7 : f32 to vector<128x128xf32>
    %10 = arith.addf %9, %8 : vector<128x128xf32>
    %11 = arith.divf %9, %10 : vector<128x128xf32>
    %c128_i32 = arith.constant 128 : i32
    %12 = arith.muli %arg0, %c128_i32 : i32
    %13 = tpu.iota {dimensions = array<i32: 0>} : vector<128x1xi32>
    %14 = vector.broadcast %12 : i32 to vector<128x1xi32>
    %15 = arith.addi %14, %13 : vector<128x1xi32>
    %16 = arith.sitofp %15 : vector<128x1xi32> to vector<128x1xf32>
    %cst_8 = arith.constant 5.000000e-01 : f32
    %17 = vector.broadcast %cst_8 : f32 to vector<128x1xf32>
    %18 = arith.addf %16, %17 : vector<128x1xf32>
    %cst_9 = arith.constant 1.250000e-01 : f32
    %19 = vector.broadcast %cst_9 : f32 to vector<128x1xf32>
    %20 = arith.mulf %18, %19 : vector<128x1xf32>
    %21 = math.floor %20 : vector<128x1xf32>
    %cst_10 = arith.constant 8.000000e+00 : f32
    %22 = vector.broadcast %cst_10 : f32 to vector<128x1xf32>
    %23 = arith.mulf %22, %21 : vector<128x1xf32>
    %24 = arith.subf %16, %23 : vector<128x1xf32>
    %cst_11 = arith.constant 5.000000e-01 : f32
    %25 = vector.broadcast %cst_11 : f32 to vector<128x1xf32>
    %26 = arith.addf %21, %25 : vector<128x1xf32>
    %cst_12 = arith.constant 1.250000e-01 : f32
    %27 = vector.broadcast %cst_12 : f32 to vector<128x1xf32>
    %28 = arith.mulf %26, %27 : vector<128x1xf32>
    %29 = math.floor %28 : vector<128x1xf32>
    %cst_13 = arith.constant 8.000000e+00 : f32
    %30 = vector.broadcast %cst_13 : f32 to vector<128x1xf32>
    %31 = arith.mulf %30, %29 : vector<128x1xf32>
    %32 = arith.subf %21, %31 : vector<128x1xf32>
    %c1 = arith.constant 1 : index
    %c0_14 = arith.constant 0 : index
    %33 = vector.load %arg3[%c1, %c0_14] : memref<8x128xf32, #tpu.memory_space<vmem>>, vector<1x128xf32>
    %34 = vector.broadcast %33 : vector<1x128xf32> to vector<128x128xf32>
    %35 = arith.mulf %34, %11 : vector<128x128xf32>
    %c2 = arith.constant 2 : index
    %c0_15 = arith.constant 0 : index
    %36 = vector.load %arg3[%c2, %c0_15] : memref<8x128xf32, #tpu.memory_space<vmem>>, vector<1x128xf32>
    %37 = vector.broadcast %36 : vector<1x128xf32> to vector<128x128xf32>
    %38 = arith.addf %35, %37 : vector<128x128xf32>
    %39 = arith.mulf %38, %11 : vector<128x128xf32>
    %c3 = arith.constant 3 : index
    %c0_16 = arith.constant 0 : index
    %40 = vector.load %arg3[%c3, %c0_16] : memref<8x128xf32, #tpu.memory_space<vmem>>, vector<1x128xf32>
    %41 = vector.broadcast %40 : vector<1x128xf32> to vector<128x128xf32>
    %42 = arith.addf %39, %41 : vector<128x128xf32>
    %c4 = arith.constant 4 : index
    %c0_17 = arith.constant 0 : index
    %43 = vector.load %arg3[%c4, %c0_17] : memref<8x128xf32, #tpu.memory_space<vmem>>, vector<1x128xf32>
    %44 = vector.broadcast %24 : vector<128x1xf32> to vector<128x128xf32>
    %45 = vector.broadcast %43 : vector<1x128xf32> to vector<128x128xf32>
    %46 = arith.mulf %44, %45 : vector<128x128xf32>
    %47 = arith.addf %42, %46 : vector<128x128xf32>
    %c5 = arith.constant 5 : index
    %c0_18 = arith.constant 0 : index
    %48 = vector.load %arg3[%c5, %c0_18] : memref<8x128xf32, #tpu.memory_space<vmem>>, vector<1x128xf32>
    %49 = vector.broadcast %32 : vector<128x1xf32> to vector<128x128xf32>
    %50 = vector.broadcast %48 : vector<1x128xf32> to vector<128x128xf32>
    %51 = arith.mulf %49, %50 : vector<128x128xf32>
    %52 = arith.addf %47, %51 : vector<128x128xf32>
    %c0_19 = arith.constant 0 : index
    %c0_20 = arith.constant 0 : index
    %53 = vector.load %arg4[%c0_19, %c0_20] : memref<128x128xf32, #tpu.memory_space<vmem>>, vector<128x128xf32>
    tpu.vector_store %arg4[%c0_19, %c0_20], %52 {strides = array<i32>} : memref<128x128xf32, #tpu.memory_space<vmem>>, vector<128x128xf32>,
    return
  }
  func.func @transform_0(%arg0: i32) -> (i32, i32) {
    %c0_i32 = arith.constant 0 : i32
    %c0_i32_0 = arith.constant 0 : i32
    return %arg0, %c0_i32 : i32, i32
  }
  func.func @transform_1(%arg0: i32) -> (i32, i32) {
    %c0_i32 = arith.constant 0 : i32
    %c0_i32_0 = arith.constant 0 : i32
    %c0_i32_1 = arith.constant 0 : i32
    return %c0_i32, %c0_i32_0 : i32, i32
  }
  func.func @transform_2(%arg0: i32) -> (i32, i32) {
    %c0_i32 = arith.constant 0 : i32
    %c0_i32_0 = arith.constant 0 : i32
    %c0_i32_1 = arith.constant 0 : i32
    return %c0_i32, %c0_i32_0 : i32, i32
  }
  func.func @transform_3(%arg0: i32) -> (i32, i32) {
    %c0_i32 = arith.constant 0 : i32
    %c0_i32_0 = arith.constant 0 : i32
    return %arg0, %c0_i32 : i32, i32
  }
  func.func @transform_4(%arg0: i32) -> (i32, i32) {
    %c0_i32 = arith.constant 0 : i32
    %c0_i32_0 = arith.constant 0 : i32
    return %arg0, %c0_i32 : i32, i32
  }
}

module attributes {stable_mosaic.version = 11 : i64} {
  func.func @_detect_layer_kernel(%arg0: i32, %arg1: memref<32x32xbf16, #tpu.memory_space<vmem>>, %arg2: memref<32x128xbf16, #tpu.memory_space<vmem>>, %arg3: memref<8x128xf32, #tpu.memory_space<vmem>>, %arg4: memref<32x128xf32, #tpu.memory_space<vmem>>, %arg5: memref<32x128xf32, #tpu.memory_space<vmem>>) attributes {dimension_semantics = [#tpu.dimension_semantics<parallel>], iteration_bounds = array<i64: 1>, scalar_prefetch = 0 : i64, scratch_operands = 0 : i64, tpu.core_type = #tpu.core_type<tc>, window_params = [{transform_indices = @transform_0, window_bounds = array<i64: 32, 32>}, {pipeline_mode = #tpu.pipeline_mode<synchronous>, transform_indices = @transform_1, window_bounds = array<i64: 32, 128>}, {pipeline_mode = #tpu.pipeline_mode<synchronous>, transform_indices = @transform_2, window_bounds = array<i64: 8, 128>}, {transform_indices = @transform_3, window_bounds = array<i64: 32, 128>}, {transform_indices = @transform_4, window_bounds = array<i64: 32, 128>}]} {
    %c0 = arith.constant 0 : index
    %c0_0 = arith.constant 0 : index
    %0 = vector.load %arg1[%c0, %c0_0] : memref<32x32xbf16, #tpu.memory_space<vmem>>, vector<32x32xbf16>
    %c0_1 = arith.constant 0 : index
    %c0_2 = arith.constant 0 : index
    %1 = vector.load %arg2[%c0_1, %c0_2] : memref<32x128xbf16, #tpu.memory_space<vmem>>, vector<32x128xbf16>
    %cst = arith.constant dense<0.000000e+00> : vector<32x128xf32>
    %2 = tpu.matmul %0, %1, %cst {dimension_numbers = #tpu.dot_dimension_numbers<[1], [0], [0], [1], [0, 0, 1, 1], [], []>} : vector<32x32xbf16>, vector<32x128xbf16>, vector<32x128xf32> -> vector<32x128xf32>
    %c0_3 = arith.constant 0 : index
    %c0_4 = arith.constant 0 : index
    %3 = vector.load %arg3[%c0_3, %c0_4] : memref<8x128xf32, #tpu.memory_space<vmem>>, vector<1x128xf32>
    %4 = vector.broadcast %3 : vector<1x128xf32> to vector<32x128xf32>
    %5 = arith.addf %2, %4 : vector<32x128xf32>
    %c0_5 = arith.constant 0 : index
    %c0_6 = arith.constant 0 : index
    %6 = vector.load %arg5[%c0_5, %c0_6] : memref<32x128xf32, #tpu.memory_space<vmem>>, vector<32x128xf32>
    tpu.vector_store %arg5[%c0_5, %c0_6], %5 {strides = array<i32>} : memref<32x128xf32, #tpu.memory_space<vmem>>, vector<32x128xf32>,
    %7 = arith.negf %5 : vector<32x128xf32>
    %8 = math.exp %7 : vector<32x128xf32>
    %cst_7 = arith.constant 1.000000e+00 : f32
    %9 = vector.broadcast %cst_7 : f32 to vector<32x128xf32>
    %10 = arith.addf %9, %8 : vector<32x128xf32>
    %11 = arith.divf %9, %10 : vector<32x128xf32>
    %c32_i32 = arith.constant 32 : i32
    %12 = arith.muli %arg0, %c32_i32 : i32
    %13 = tpu.iota {dimensions = array<i32: 0>} : vector<32x1xi32>
    %14 = vector.broadcast %12 : i32 to vector<32x1xi32>
    %15 = arith.addi %14, %13 : vector<32x1xi32>
    %16 = arith.sitofp %15 : vector<32x1xi32> to vector<32x1xf32>
    %cst_8 = arith.constant 5.000000e-01 : f32
    %17 = vector.broadcast %cst_8 : f32 to vector<32x1xf32>
    %18 = arith.addf %16, %17 : vector<32x1xf32>
    %cst_9 = arith.constant 2.500000e-01 : f32
    %19 = vector.broadcast %cst_9 : f32 to vector<32x1xf32>
    %20 = arith.mulf %18, %19 : vector<32x1xf32>
    %21 = math.floor %20 : vector<32x1xf32>
    %cst_10 = arith.constant 4.000000e+00 : f32
    %22 = vector.broadcast %cst_10 : f32 to vector<32x1xf32>
    %23 = arith.mulf %22, %21 : vector<32x1xf32>
    %24 = arith.subf %16, %23 : vector<32x1xf32>
    %cst_11 = arith.constant 5.000000e-01 : f32
    %25 = vector.broadcast %cst_11 : f32 to vector<32x1xf32>
    %26 = arith.addf %21, %25 : vector<32x1xf32>
    %cst_12 = arith.constant 2.500000e-01 : f32
    %27 = vector.broadcast %cst_12 : f32 to vector<32x1xf32>
    %28 = arith.mulf %26, %27 : vector<32x1xf32>
    %29 = math.floor %28 : vector<32x1xf32>
    %cst_13 = arith.constant 4.000000e+00 : f32
    %30 = vector.broadcast %cst_13 : f32 to vector<32x1xf32>
    %31 = arith.mulf %30, %29 : vector<32x1xf32>
    %32 = arith.subf %21, %31 : vector<32x1xf32>
    %c1 = arith.constant 1 : index
    %c0_14 = arith.constant 0 : index
    %33 = vector.load %arg3[%c1, %c0_14] : memref<8x128xf32, #tpu.memory_space<vmem>>, vector<1x128xf32>
    %34 = vector.broadcast %33 : vector<1x128xf32> to vector<32x128xf32>
    %35 = arith.mulf %34, %11 : vector<32x128xf32>
    %c2 = arith.constant 2 : index
    %c0_15 = arith.constant 0 : index
    %36 = vector.load %arg3[%c2, %c0_15] : memref<8x128xf32, #tpu.memory_space<vmem>>, vector<1x128xf32>
    %37 = vector.broadcast %36 : vector<1x128xf32> to vector<32x128xf32>
    %38 = arith.addf %35, %37 : vector<32x128xf32>
    %39 = arith.mulf %38, %11 : vector<32x128xf32>
    %c3 = arith.constant 3 : index
    %c0_16 = arith.constant 0 : index
    %40 = vector.load %arg3[%c3, %c0_16] : memref<8x128xf32, #tpu.memory_space<vmem>>, vector<1x128xf32>
    %41 = vector.broadcast %40 : vector<1x128xf32> to vector<32x128xf32>
    %42 = arith.addf %39, %41 : vector<32x128xf32>
    %c4 = arith.constant 4 : index
    %c0_17 = arith.constant 0 : index
    %43 = vector.load %arg3[%c4, %c0_17] : memref<8x128xf32, #tpu.memory_space<vmem>>, vector<1x128xf32>
    %44 = vector.broadcast %24 : vector<32x1xf32> to vector<32x128xf32>
    %45 = vector.broadcast %43 : vector<1x128xf32> to vector<32x128xf32>
    %46 = arith.mulf %44, %45 : vector<32x128xf32>
    %47 = arith.addf %42, %46 : vector<32x128xf32>
    %c5 = arith.constant 5 : index
    %c0_18 = arith.constant 0 : index
    %48 = vector.load %arg3[%c5, %c0_18] : memref<8x128xf32, #tpu.memory_space<vmem>>, vector<1x128xf32>
    %49 = vector.broadcast %32 : vector<32x1xf32> to vector<32x128xf32>
    %50 = vector.broadcast %48 : vector<1x128xf32> to vector<32x128xf32>
    %51 = arith.mulf %49, %50 : vector<32x128xf32>
    %52 = arith.addf %47, %51 : vector<32x128xf32>
    %c0_19 = arith.constant 0 : index
    %c0_20 = arith.constant 0 : index
    %53 = vector.load %arg4[%c0_19, %c0_20] : memref<32x128xf32, #tpu.memory_space<vmem>>, vector<32x128xf32>
    tpu.vector_store %arg4[%c0_19, %c0_20], %52 {strides = array<i32>} : memref<32x128xf32, #tpu.memory_space<vmem>>, vector<32x128xf32>,
    return
  }
  func.func @transform_0(%arg0: i32) -> (i32, i32) {
    %c0_i32 = arith.constant 0 : i32
    %c0_i32_0 = arith.constant 0 : i32
    return %arg0, %c0_i32 : i32, i32
  }
  func.func @transform_1(%arg0: i32) -> (i32, i32) {
    %c0_i32 = arith.constant 0 : i32
    %c0_i32_0 = arith.constant 0 : i32
    %c0_i32_1 = arith.constant 0 : i32
    return %c0_i32, %c0_i32_0 : i32, i32
  }
  func.func @transform_2(%arg0: i32) -> (i32, i32) {
    %c0_i32 = arith.constant 0 : i32
    %c0_i32_0 = arith.constant 0 : i32
    %c0_i32_1 = arith.constant 0 : i32
    return %c0_i32, %c0_i32_0 : i32, i32
  }
  func.func @transform_3(%arg0: i32) -> (i32, i32) {
    %c0_i32 = arith.constant 0 : i32
    %c0_i32_0 = arith.constant 0 : i32
    return %arg0, %c0_i32 : i32, i32
  }
  func.func @transform_4(%arg0: i32) -> (i32, i32) {
    %c0_i32 = arith.constant 0 : i32
    %c0_i32_0 = arith.constant 0 : i32
    return %arg0, %c0_i32 : i32, i32
  }
}

</mosaic_0001>

<llo_original>
// kernel: detect_forward.4
$region0: #{detect_forward.4}
  #allocation0 [shape = 'u32[]', space=smem, size = 0x4, offset = 0x4, fixed_abs, tag = 'smem constant byte address 0x4 - core index']
  #allocation1 [shape = 'u32[144,128]{1,0:T(1,128)}', space=vmem, size = 0x12000, scoped, tag = 'internal scratch']
  %s0 = inlined_call_operand.vmem [shape: bf16[128,16], index: 0, kind: input, shape index: {}]
  %s1 = inlined_call_operand.vmem [shape: bf16[16,128], index: 1, kind: input, shape index: {}]
  %s2 = inlined_call_operand.vmem [shape: f32[8,128], index: 2, kind: input, shape index: {}]
  %s3 = inlined_call_operand.vmem [shape: f32[128,128], index: 3, kind: output, shape index: {0}]
  %s4 = inlined_call_operand.vmem [shape: f32[128,128], index: 4, kind: output, shape index: {1}]
  %5 = xla_tuple %s3, %s4
  %s6 = sld [smem:[#allocation0]]
  $region30: #{detect_forward.4} parent=0
    _
  %s8 = ssub.s32 1, %s6
  %s9 = scalar_select 0, %s8, %s6
  // Predicated region
  $region2: #{detect_forward.4} parent=0 // pred_check
    _
  $region3: #{detect_forward.4} parent=0 // pred_check_branch
    %11 = sbr.rel (0) target = $region5
  $region4: #{detect_forward.4} parent=0 // pred_region
    _
  $region5: #{detect_forward.4} parent=0 // pred_fallthru
    _
  // Predicated region
  $region6: #{detect_forward.4} parent=0 // pred_check
    _
  $region7: #{detect_forward.4} parent=0 // pred_check_branch
    %13 = sbr.rel (0) target = $region9
  $region8: #{detect_forward.4} parent=0 // pred_region
    _
  $region9: #{detect_forward.4} parent=0 // pred_fallthru
    _
  // Predicated region
  $region10: #{detect_forward.4} parent=0 // pred_check
    _
  $region11: #{detect_forward.4} parent=0 // pred_check_branch
    %15 = sbr.rel (0) target = $region13
  $region12: #{detect_forward.4} parent=0 // pred_region
    _
  $region13: #{detect_forward.4} parent=0 // pred_fallthru
    _
  %v17 = vld [vmem:[%s0] sm:$0xf]
  %v18 = vld [vmem:[%s0 + $0x4] sm:$0xf]
  %v19 = vld [vmem:[%s0 + $0x8] sm:$0xf]
  %v20 = vld [vmem:[%s0 + $0xc] sm:$0xf]
  %v21 = vld [vmem:[%s0 + $0x10] sm:$0xf]
  %v22 = vld [vmem:[%s0 + $0x14] sm:$0xf]
  %v23 = vld [vmem:[%s0 + $0x18] sm:$0xf]
  %v24 = vld [vmem:[%s0 + $0x1c] sm:$0xf]
  %v25 = vld [vmem:[%s0 + $0x20] sm:$0xf]
  %v26 = vld [vmem:[%s0 + $0x24] sm:$0xf]
  %v27 = vld [vmem:[%s0 + $0x28] sm:$0xf]
  %v28 = vld [vmem:[%s0 + $0x2c] sm:$0xf]
  %v29 = vld [vmem:[%s0 + $0x30] sm:$0xf]
  %v30 = vld [vmem:[%s0 + $0x34] sm:$0xf]
  %v31 = vld [vmem:[%s0 + $0x38] sm:$0xf]
  %v32 = vld [vmem:[%s0 + $0x3c] sm:$0xf]
  %v33 = vld [vmem:[%s1] sm:$0xf]
  %v34 = vld [vmem:[%s1 + $0x4] sm:$0xf]
  %v35 = vld [vmem:[%s2] sm:$0x1]
  %v36 = vlaneseq
  %v37 = vshrl.u32 %v36, 7
  %v38 = vsub.s32 0, %v37
  %v39 = vrot.slane %v35, %v38
  %v56 = vunpack.c.l.b16 %v17
  %v57 = vunpack.c.l.b16 %v18
  %v58 = vunpack.c.l.b16 %v19
  %v59 = vunpack.c.l.b16 %v20
  %v60 = vunpack.c.l.b16 %v21
  %v61 = vunpack.c.l.b16 %v22
  %v62 = vunpack.c.l.b16 %v23
  %v63 = vunpack.c.l.b16 %v24
  %v64 = vunpack.c.l.b16 %v25
  %v65 = vunpack.c.l.b16 %v26
  %v66 = vunpack.c.l.b16 %v27
  %v67 = vunpack.c.l.b16 %v28
  %v68 = vunpack.c.l.b16 %v29
  %v69 = vunpack.c.l.b16 %v30
  %v70 = vunpack.c.l.b16 %v31
  %v71 = vunpack.c.l.b16 %v32
  %v72 = vpack.c.b16 %v57, %v56
  %v73 = vpack.c.b16 %v59, %v58
  %v74 = vpack.c.b16 %v61, %v60
  %v75 = vpack.c.b16 %v63, %v62
  %v76 = vpack.c.b16 %v65, %v64
  %v77 = vpack.c.b16 %v67, %v66
  %v78 = vpack.c.b16 %v69, %v68
  %v79 = vpack.c.b16 %v71, %v70
  %v82 = vunpack.c.l.b16 %v33
  %v83 = vunpack.c.l.b16 %v34
  %v84 = vpack.c.b16 %v83, %v82
  %vm86 = vcmask 130048
  %v88 = vsel %vm86, %v72, 0
  %v91 = vsel %vm86, %v73, 0
  %v94 = vsel %vm86, %v74, 0
  %v97 = vsel %vm86, %v75, 0
  %v100 = vsel %vm86, %v76, 0
  %v103 = vsel %vm86, %v77, 0
  %v106 = vsel %vm86, %v78, 0
  %v109 = vsel %vm86, %v79, 0
  %111 = vmatprep.subr.bf16.mxu0 0
  %112 = vmatpush1.bf16.msra.mxu0 %v84
  %113 = vmatprep.subr.bf16.mxu0 0
  %114 = vmatpush1.bf16.msra.mxu0 0
  %115 = vmatprep.subr.bf16.mxu0 0
  %116 = vmatpush1.bf16.msra.mxu0 0
  %117 = vmatprep.subr.bf16.mxu0 0
  %118 = vmatpush1.bf16.msra.mxu0 0
  %119 = vmatprep.subr.bf16.mxu0 0
  %120 = vmatpush1.bf16.msra.mxu0 0
  %121 = vmatprep.subr.bf16.mxu0 0
  %122 = vmatpush1.bf16.msra.mxu0 0
  %123 = vmatprep.subr.bf16.mxu0 0
  %124 = vmatpush1.bf16.msra.mxu0 0
  %125 = vmatprep.subr.bf16.mxu0 0
  %126 = vmatpush1.bf16.msra.mxu0 0
  %127 = vmatprep.subr.bf16.mxu0 0
  %128 = vmatpush1.bf16.msra.mxu0 0
  %129 = vmatprep.subr.bf16.mxu0 0
  %130 = vmatpush1.bf16.msra.mxu0 0
  %131 = vmatprep.subr.bf16.mxu0 0
  %132 = vmatpush1.bf16.msra.mxu0 0
  %133 = vmatprep.subr.bf16.mxu0 0
  %134 = vmatpush1.bf16.msra.mxu0 0
  %135 = vmatprep.subr.bf16.mxu0 0
  %136 = vmatpush1.bf16.msra.mxu0 0
  %137 = vmatprep.subr.bf16.mxu0 0
  %138 = vmatpush1.bf16.msra.mxu0 0
  %139 = vmatprep.subr.bf16.mxu0 0
  %140 = vmatpush1.bf16.msra.mxu0 0
  %141 = vmatprep.subr.bf16.mxu0 0
  %142 = vmatpush1.bf16.msra.mxu0 0
  %143 = vmatprep.mubr.bf16.mxu0 0
  %144 = vmatmul.mubr.bf16.gmra.mrb[0].mxu0 %v88
  %v145 = vpop.f32.mrb[0].mxu0
  %v146 = vadd.f32 %v39, %v145
  %v147 = vpop.f32.mrb[0].mxu0
  %v148 = vpop.f32.mrb[0].mxu0
  %v149 = vadd.f32 %v39, %v148
  %v150 = vpop.f32.mrb[0].mxu0
  %151 = vmatprep.mubr.bf16.mxu0 0
  %152 = vmatmul.mubr.bf16.gmra.mrb[0].mxu0 %v91
  %v153 = vpop.f32.mrb[0].mxu0
  %v154 = vadd.f32 %v39, %v153
  %v155 = vpop.f32.mrb[0].mxu0
  %v156 = vpop.f32.mrb[0].mxu0
  %v157 = vadd.f32 %v39, %v156
  %v158 = vpop.f32.mrb[0].mxu0
  %159 = vmatprep.mubr.bf16.mxu0 0
  %160 = vmatmul.mubr.bf16.gmra.mrb[0].mxu0 %v94
  %v161 = vpop.f32.mrb[0].mxu0
  %v162 = vadd.f32 %v39, %v161
  %v163 = vpop.f32.mrb[0].mxu0
  %v164 = vpop.f32.mrb[0].mxu0
  %v165 = vadd.f32 %v39, %v164
  %v166 = vpop.f32.mrb[0].mxu0
  %167 = vmatprep.mubr.bf16.mxu0 0
  %168 = vmatmul.mubr.bf16.gmra.mrb[0].mxu0 %v97
  %v169 = vpop.f32.mrb[0].mxu0
  %v170 = vadd.f32 %v39, %v169
  %v171 = vpop.f32.mrb[0].mxu0
  %v172 = vpop.f32.mrb[0].mxu0
  %v173 = vadd.f32 %v39, %v172
  %v174 = vpop.f32.mrb[0].mxu0
  %175 = vmatprep.mubr.bf16.mxu0 0
  %176 = vmatmul.mubr.bf16.gmra.mrb[0].mxu0 %v100
  %v177 = vpop.f32.mrb[0].mxu0
  %v178 = vadd.f32 %v39, %v177
  %v179 = vpop.f32.mrb[0].mxu0
  %v180 = vpop.f32.mrb[0].mxu0
  %v181 = vadd.f32 %v39, %v180
  %v182 = vpop.f32.mrb[0].mxu0
  %183 = vmatprep.mubr.bf16.mxu0 0
  %184 = vmatmul.mubr.bf16.gmra.mrb[0].mxu0 %v103
  %v185 = vpop.f32.mrb[0].mxu0
  %v186 = vadd.f32 %v39, %v185
  %v187 = vpop.f32.mrb[0].mxu0
  %v188 = vpop.f32.mrb[0].mxu0
  %v189 = vadd.f32 %v39, %v188
  %v190 = vpop.f32.mrb[0].mxu0
  %191 = vmatprep.mubr.bf16.mxu0 0
  %192 = vmatmul.mubr.bf16.gmra.mrb[0].mxu0 %v106
  %v193 = vpop.f32.mrb[0].mxu0
  %v194 = vadd.f32 %v39, %v193
  %v195 = vpop.f32.mrb[0].mxu0
  %v196 = vpop.f32.mrb[0].mxu0
  %v197 = vadd.f32 %v39, %v196
  %v198 = vpop.f32.mrb[0].mxu0
  %199 = vmatprep.mubr.bf16.mxu0 0
  %200 = vmatmul.mubr.bf16.gmra.mrb[0].mxu0 %v109
  %v201 = vpop.f32.mrb[0].mxu0
  %v202 = vadd.f32 %v39, %v201
  %v203 = vpop.f32.mrb[0].mxu0
  %v204 = vpop.f32.mrb[0].mxu0
  %v205 = vadd.f32 %v39, %v204
  %v206 = vpop.f32.mrb[0].mxu0
  %207 = vdwg.mxu0
  %208 = vst [vmem:[%s4] sm:$0xff] %v146
  %209 = vst [vmem:[%s4 + $0x8] sm:$0xff] %v149
  %210 = vst [vmem:[%s4 + $0x10] sm:$0xff] %v154
  %211 = vst [vmem:[%s4 + $0x18] sm:$0xff] %v157
  %212 = vst [vmem:[%s4 + $0x20] sm:$0xff] %v162
  %213 = vst [vmem:[%s4 + $0x28] sm:$0xff] %v165
  %214 = vst [vmem:[%s4 + $0x30] sm:$0xff] %v170
  %215 = vst [vmem:[%s4 + $0x38] sm:$0xff] %v173
  %216 = vst [vmem:[%s4 + $0x40] sm:$0xff] %v178
  %217 = vst [vmem:[%s4 + $0x48] sm:$0xff] %v181
  %218 = vst [vmem:[%s4 + $0x50] sm:$0xff] %v186
  %219 = vst [vmem:[%s4 + $0x58] sm:$0xff] %v189
  %220 = vst [vmem:[%s4 + $0x60] sm:$0xff] %v194
  %221 = vst [vmem:[%s4 + $0x68] sm:$0xff] %v197
  %222 = vst [vmem:[%s4 + $0x70] sm:$0xff] %v202
  %223 = vst [vmem:[%s4 + $0x78] sm:$0xff] %v205
  %v224 = vxor.u32 %v146, 2147483648
  %v225 = vxor.u32 %v149, 2147483648
  %v226 = vxor.u32 %v154, 2147483648
  %v227 = vxor.u32 %v157, 2147483648
  %v228 = vxor.u32 %v162, 2147483648
  %v229 = vxor.u32 %v165, 2147483648
  %v230 = vxor.u32 %v170, 2147483648
  %v231 = vxor.u32 %v173, 2147483648
  %v232 = vxor.u32 %v178, 2147483648
  %v233 = vxor.u32 %v181, 2147483648
  %v234 = vxor.u32 %v186, 2147483648
  %v235 = vxor.u32 %v189, 2147483648
  %v236 = vxor.u32 %v194, 2147483648
  %v237 = vxor.u32 %v197, 2147483648
  %v238 = vxor.u32 %v202, 2147483648
  %v239 = vxor.u32 %v205, 2147483648
  %v240 = vmul.f32 %v224, 1.442695
  %v241 = vpow.pop %v240
  %v242 = vmul.f32 %v225, 1.442695
  %v243 = vpow.pop %v242
  %v244 = vmul.f32 %v226, 1.442695
  %v245 = vpow.pop %v244
  %v246 = vmul.f32 %v227, 1.442695
  %v247 = vpow.pop %v246
  %v248 = vmul.f32 %v228, 1.442695
  %v249 = vpow.pop %v248
  %v250 = vmul.f32 %v229, 1.442695
  %v251 = vpow.pop %v250
  %v252 = vmul.f32 %v230, 1.442695
  %v253 = vpow.pop %v252
  %v254 = vmul.f32 %v231, 1.442695
  %v255 = vpow.pop %v254
  %v256 = vmul.f32 %v232, 1.442695
  %v257 = vpow.pop %v256
  %v258 = vmul.f32 %v233, 1.442695
  %v259 = vpow.pop %v258
  %v260 = vmul.f32 %v234, 1.442695
  %v261 = vpow.pop %v260
  %v262 = vmul.f32 %v235, 1.442695
  %v263 = vpow.pop %v262
  %v264 = vmul.f32 %v236, 1.442695
  %v265 = vpow.pop %v264
  %v266 = vmul.f32 %v237, 1.442695
  %v267 = vpow.pop %v266
  %v268 = vmul.f32 %v238, 1.442695
  %v269 = vpow.pop %v268
  %v270 = vmul.f32 %v239, 1.442695
  %v271 = vpow.pop %v270
  %v272 = vadd.f32 %v241, 1.0
  %v273 = vadd.f32 %v243, 1.0
  %v274 = vadd.f32 %v245, 1.0
  %v275 = vadd.f32 %v247, 1.0
  %v276 = vadd.f32 %v249, 1.0
  %v277 = vadd.f32 %v251, 1.0
  %v278 = vadd.f32 %v253, 1.0
  %v279 = vadd.f32 %v255, 1.0
  %v280 = vadd.f32 %v257, 1.0
  %v281 = vadd.f32 %v259, 1.0
  %v282 = vadd.f32 %v261, 1.0
  %v283 = vadd.f32 %v263, 1.0
  %v284 = vadd.f32 %v265, 1.0
  %v285 = vadd.f32 %v267, 1.0
  %v286 = vadd.f32 %v269, 1.0
  %v287 = vadd.f32 %v271, 1.0
  %v288 = vrcp.pop %v272
  %v289 = vmul.f32 1.0, %v288
  %v290 = vrcp.pop %v273
  %v291 = vmul.f32 1.0, %v290
  %v292 = vrcp.pop %v274
  %v293 = vmul.f32 1.0, %v292
  %v294 = vrcp.pop %v275
  %v295 = vmul.f32 1.0, %v294
  %v296 = vrcp.pop %v276
  %v297 = vmul.f32 1.0, %v296
  %v298 = vrcp.pop %v277
  %v299 = vmul.f32 1.0, %v298
  %v300 = vrcp.pop %v278
  %v301 = vmul.f32 1.0, %v300
  %v302 = vrcp.pop %v279
  %v303 = vmul.f32 1.0, %v302
  %v304 = vrcp.pop %v280
  %v305 = vmul.f32 1.0, %v304
  %v306 = vrcp.pop %v281
  %v307 = vmul.f32 1.0, %v306
  %v308 = vrcp.pop %v282
  %v309 = vmul.f32 1.0, %v308
  %v310 = vrcp.pop %v283
  %v311 = vmul.f32 1.0, %v310
  %v312 = vrcp.pop %v284
  %v313 = vmul.f32 1.0, %v312
  %v314 = vrcp.pop %v285
  %v315 = vmul.f32 1.0, %v314
  %v316 = vrcp.pop %v286
  %v317 = vmul.f32 1.0, %v316
  %v318 = vrcp.pop %v287
  %v319 = vmul.f32 1.0, %v318
  %s320 = smul.u32 0, 128
  %v321 = vlaneseq
  %v322 = vshrl.u32 %v321, 7
  %v323 = vadd.s32 %v322, 8
  %v324 = vadd.s32 %v322, 16
  %v325 = vadd.s32 %v322, 24
  %v326 = vadd.s32 %v322, 32
  %v327 = vadd.s32 %v322, 40
  %v328 = vadd.s32 %v322, 48
  %v329 = vadd.s32 %v322, 56
  %v330 = vadd.s32 %v322, 64
  %v331 = vadd.s32 %v322, 72
  %v332 = vadd.s32 %v322, 80
  %v333 = vadd.s32 %v322, 88
  %v334 = vadd.s32 %v322, 96
  %v335 = vadd.s32 %v322, 104
  %v336 = vadd.s32 %v322, 112
  %v337 = vadd.s32 %v322, 120
  %v338 = vstv %s320
  %v339 = vadd.s32 %v338, %v322
  %v340 = vadd.s32 %v338, %v323
  %v341 = vadd.s32 %v338, %v324
  %v342 = vadd.s32 %v338, %v325
  %v343 = vadd.s32 %v338, %v326
  %v344 = vadd.s32 %v338, %v327
  %v345 = vadd.s32 %v338, %v328
  %v346 = vadd.s32 %v338, %v329
  %v347 = vadd.s32 %v338, %v330
  %v348 = vadd.s32 %v338, %v331
  %v349 = vadd.s32 %v338, %v332
  %v350 = vadd.s32 %v338, %v333
  %v351 = vadd.s32 %v338, %v334
  %v352 = vadd.s32 %v338, %v335
  %v353 = vadd.s32 %v338, %v336
  %v354 = vadd.s32 %v338, %v337
  %v355 = vcvt.s32.f32 %v339
  %v356 = vcvt.s32.f32 %v340
  %v357 = vcvt.s32.f32 %v341
  %v358 = vcvt.s32.f32 %v342
  %v359 = vcvt.s32.f32 %v343
  %v360 = vcvt.s32.f32 %v344
  %v361 = vcvt.s32.f32 %v345
  %v362 = vcvt.s32.f32 %v346
  %v363 = vcvt.s32.f32 %v347
  %v364 = vcvt.s32.f32 %v348
  %v365 = vcvt.s32.f32 %v349
  %v366 = vcvt.s32.f32 %v350
  %v367 = vcvt.s32.f32 %v351
  %v368 = vcvt.s32.f32 %v352
  %v369 = vcvt.s32.f32 %v353
  %v370 = vcvt.s32.f32 %v354
  %v371 = vadd.f32 %v355, 0.5
  %v372 = vadd.f32 %v356, 0.5
  %v373 = vadd.f32 %v357, 0.5
  %v374 = vadd.f32 %v358, 0.5
  %v375 = vadd.f32 %v359, 0.5
  %v376 = vadd.f32 %v360, 0.5
  %v377 = vadd.f32 %v361, 0.5
  %v378 = vadd.f32 %v362, 0.5
  %v379 = vadd.f32 %v363, 0.5
  %v380 = vadd.f32 %v364, 0.5
  %v381 = vadd.f32 %v365, 0.5
  %v382 = vadd.f32 %v366, 0.5
  %v383 = vadd.f32 %v367, 0.5
  %v384 = vadd.f32 %v368, 0.5
  %v385 = vadd.f32 %v369, 0.5
  %v386 = vadd.f32 %v370, 0.5
  %v387 = vmul.f32 %v371, 0.125
  %v388 = vmul.f32 %v372, 0.125
  %v389 = vmul.f32 %v373, 0.125
  %v390 = vmul.f32 %v374, 0.125
  %v391 = vmul.f32 %v375, 0.125
  %v392 = vmul.f32 %v376, 0.125
  %v393 = vmul.f32 %v377, 0.125
  %v394 = vmul.f32 %v378, 0.125
  %v395 = vmul.f32 %v379, 0.125
  %v396 = vmul.f32 %v380, 0.125
  %v397 = vmul.f32 %v381, 0.125
  %v398 = vmul.f32 %v382, 0.125
  %v399 = vmul.f32 %v383, 0.125
  %v400 = vmul.f32 %v384, 0.125
  %v401 = vmul.f32 %v385, 0.125
  %v402 = vmul.f32 %v386, 0.125
  %v403 = vfloor.f32 %v387
  %v404 = vfloor.f32 %v388
  %v405 = vfloor.f32 %v389
  %v406 = vfloor.f32 %v390
  %v407 = vfloor.f32 %v391
  %v408 = vfloor.f32 %v392
  %v409 = vfloor.f32 %v393
  %v410 = vfloor.f32 %v394
  %v411 = vfloor.f32 %v395
  %v412 = vfloor.f32 %v396
  %v413 = vfloor.f32 %v397
  %v414 = vfloor.f32 %v398
  %v415 = vfloor.f32 %v399
  %v416 = vfloor.f32 %v400
  %v417 = vfloor.f32 %v401
  %v418 = vfloor.f32 %v402
  %v419 = vmul.f32 %v403, 8.0
  %v420 = vmul.f32 %v404, 8.0
  %v421 = vmul.f32 %v405, 8.0
  %v422 = vmul.f32 %v406, 8.0
  %v423 = vmul.f32 %v407, 8.0
  %v424 = vmul.f32 %v408, 8.0
  %v425 = vmul.f32 %v409, 8.0
  %v426 = vmul.f32 %v410, 8.0
  %v427 = vmul.f32 %v411, 8.0
  %v428 = vmul.f32 %v412, 8.0
  %v429 = vmul.f32 %v413, 8.0
  %v430 = vmul.f32 %v414, 8.0
  %v431 = vmul.f32 %v415, 8.0
  %v432 = vmul.f32 %v416, 8.0
  %v433 = vmul.f32 %v417, 8.0
  %v434 = vmul.f32 %v418, 8.0
  %v435 = vsub.f32 %v355, %v419
  %v436 = vsub.f32 %v356, %v420
  %v437 = vsub.f32 %v357, %v421
  %v438 = vsub.f32 %v358, %v422
  %v439 = vsub.f32 %v359, %v423
  %v440 = vsub.f32 %v360, %v424
  %v441 = vsub.f32 %v361, %v425
  %v442 = vsub.f32 %v362, %v426
  %v443 = vsub.f32 %v363, %v427
  %v444 = vsub.f32 %v364, %v428
  %v445 = vsub.f32 %v365, %v429
  %v446 = vsub.f32 %v366, %v430
  %v447 = vsub.f32 %v367, %v431
  %v448 = vsub.f32 %v368, %v432
  %v449 = vsub.f32 %v369, %v433
  %v450 = vsub.f32 %v370, %v434
  %v451 = vadd.f32 %v403, 0.5
  %v452 = vadd.f32 %v404, 0.5
  %v453 = vadd.f32 %v405, 0.5
  %v454 = vadd.f32 %v406, 0.5
  %v455 = vadd.f32 %v407, 0.5
  %v456 = vadd.f32 %v408, 0.5
  %v457 = vadd.f32 %v409, 0.5
  %v458 = vadd.f32 %v410, 0.5
  %v459 = vadd.f32 %v411, 0.5
  %v460 = vadd.f32 %v412, 0.5
  %v461 = vadd.f32 %v413, 0.5
  %v462 = vadd.f32 %v414, 0.5
  %v463 = vadd.f32 %v415, 0.5
  %v464 = vadd.f32 %v416, 0.5
  %v465 = vadd.f32 %v417, 0.5
  %v466 = vadd.f32 %v418, 0.5
  %v467 = vmul.f32 %v451, 0.125
  %v468 = vmul.f32 %v452, 0.125
  %v469 = vmul.f32 %v453, 0.125
  %v470 = vmul.f32 %v454, 0.125
  %v471 = vmul.f32 %v455, 0.125
  %v472 = vmul.f32 %v456, 0.125
  %v473 = vmul.f32 %v457, 0.125
  %v474 = vmul.f32 %v458, 0.125
  %v475 = vmul.f32 %v459, 0.125
  %v476 = vmul.f32 %v460, 0.125
  %v477 = vmul.f32 %v461, 0.125
  %v478 = vmul.f32 %v462, 0.125
  %v479 = vmul.f32 %v463, 0.125
  %v480 = vmul.f32 %v464, 0.125
  %v481 = vmul.f32 %v465, 0.125
  %v482 = vmul.f32 %v466, 0.125
  %v483 = vfloor.f32 %v467
  %v484 = vfloor.f32 %v468
  %v485 = vfloor.f32 %v469
  %v486 = vfloor.f32 %v470
  %v487 = vfloor.f32 %v471
  %v488 = vfloor.f32 %v472
  %v489 = vfloor.f32 %v473
  %v490 = vfloor.f32 %v474
  %v491 = vfloor.f32 %v475
  %v492 = vfloor.f32 %v476
  %v493 = vfloor.f32 %v477
  %v494 = vfloor.f32 %v478
  %v495 = vfloor.f32 %v479
  %v496 = vfloor.f32 %v480
  %v497 = vfloor.f32 %v481
  %v498 = vfloor.f32 %v482
  %v499 = vmul.f32 %v483, 8.0
  %v500 = vmul.f32 %v484, 8.0
  %v501 = vmul.f32 %v485, 8.0
  %v502 = vmul.f32 %v486, 8.0
  %v503 = vmul.f32 %v487, 8.0
  %v504 = vmul.f32 %v488, 8.0
  %v505 = vmul.f32 %v489, 8.0
  %v506 = vmul.f32 %v490, 8.0
  %v507 = vmul.f32 %v491, 8.0
  %v508 = vmul.f32 %v492, 8.0
  %v509 = vmul.f32 %v493, 8.0
  %v510 = vmul.f32 %v494, 8.0
  %v511 = vmul.f32 %v495, 8.0
  %v512 = vmul.f32 %v496, 8.0
  %v513 = vmul.f32 %v497, 8.0
  %v514 = vmul.f32 %v498, 8.0
  %v515 = vsub.f32 %v403, %v499
  %v516 = vsub.f32 %v404, %v500
  %v517 = vsub.f32 %v405, %v501
  %v518 = vsub.f32 %v406, %v502
  %v519 = vsub.f32 %v407, %v503
  %v520 = vsub.f32 %v408, %v504
  %v521 = vsub.f32 %v409, %v505
  %v522 = vsub.f32 %v410, %v506
  %v523 = vsub.f32 %v411, %v507
  %v524 = vsub.f32 %v412, %v508
  %v525 = vsub.f32 %v413, %v509
  %v526 = vsub.f32 %v414, %v510
  %v527 = vsub.f32 %v415, %v511
  %v528 = vsub.f32 %v416, %v512
  %v529 = vsub.f32 %v417, %v513
  %v530 = vsub.f32 %v418, %v514
  %v531 = vld [vmem:[%s2 + $0x1] sm:$0x1]
  %v532 = vlaneseq
  %v533 = vshrl.u32 %v532, 7
  %v534 = vsub.s32 0, %v533
  %v535 = vrot.slane %v531, %v534
  %v536 = vmul.f32 %v535, %v289
  %v537 = vmul.f32 %v535, %v291
  %v538 = vmul.f32 %v535, %v293
  %v539 = vmul.f32 %v535, %v295
  %v540 = vmul.f32 %v535, %v297
  %v541 = vmul.f32 %v535, %v299
  %v542 = vmul.f32 %v535, %v301
  %v543 = vmul.f32 %v535, %v303
  %v544 = vmul.f32 %v535, %v305
  %v545 = vmul.f32 %v535, %v307
  %v546 = vmul.f32 %v535, %v309
  %v547 = vmul.f32 %v535, %v311
  %v548 = vmul.f32 %v535, %v313
  %v549 = vmul.f32 %v535, %v315
  %v550 = vmul.f32 %v535, %v317
  %v551 = vmul.f32 %v535, %v319
  %v552 = vld [vmem:[%s2 + $0x2] sm:$0x1]
  %v553 = vlaneseq
  %v554 = vshrl.u32 %v553, 7
  %v555 = vsub.s32 0, %v554
  %v556 = vrot.slane %v552, %v555
  %v557 = vadd.f32 %v536, %v556
  %v558 = vadd.f32 %v537, %v556
  %v559 = vadd.f32 %v538, %v556
  %v560 = vadd.f32 %v539, %v556
  %v561 = vadd.f32 %v540, %v556
  %v562 = vadd.f32 %v541, %v556
  %v563 = vadd.f32 %v542, %v556
  %v564 = vadd.f32 %v543, %v556
  %v565 = vadd.f32 %v544, %v556
  %v566 = vadd.f32 %v545, %v556
  %v567 = vadd.f32 %v546, %v556
  %v568 = vadd.f32 %v547, %v556
  %v569 = vadd.f32 %v548, %v556
  %v570 = vadd.f32 %v549, %v556
  %v571 = vadd.f32 %v550, %v556
  %v572 = vadd.f32 %v551, %v556
  %v573 = vmul.f32 %v557, %v289
  %v574 = vmul.f32 %v558, %v291
  %v575 = vmul.f32 %v559, %v293
  %v576 = vmul.f32 %v560, %v295
  %v577 = vmul.f32 %v561, %v297
  %v578 = vmul.f32 %v562, %v299
  %v579 = vmul.f32 %v563, %v301
  %v580 = vmul.f32 %v564, %v303
  %v581 = vmul.f32 %v565, %v305
  %v582 = vmul.f32 %v566, %v307
  %v583 = vmul.f32 %v567, %v309
  %v584 = vmul.f32 %v568, %v311
  %v585 = vmul.f32 %v569, %v313
  %v586 = vmul.f32 %v570, %v315
  %v587 = vmul.f32 %v571, %v317
  %v588 = vmul.f32 %v572, %v319
  %v589 = vld [vmem:[%s2 + $0x3] sm:$0x1]
  %v590 = vlaneseq
  %v591 = vshrl.u32 %v590, 7
  %v592 = vsub.s32 0, %v591
  %v593 = vrot.slane %v589, %v592
  %v594 = vadd.f32 %v573, %v593
  %v595 = vadd.f32 %v574, %v593
  %v596 = vadd.f32 %v575, %v593
  %v597 = vadd.f32 %v576, %v593
  %v598 = vadd.f32 %v577, %v593
  %v599 = vadd.f32 %v578, %v593
  %v600 = vadd.f32 %v579, %v593
  %v601 = vadd.f32 %v580, %v593
  %v602 = vadd.f32 %v581, %v593
  %v603 = vadd.f32 %v582, %v593
  %v604 = vadd.f32 %v583, %v593
  %v605 = vadd.f32 %v584, %v593
  %v606 = vadd.f32 %v585, %v593
  %v607 = vadd.f32 %v586, %v593
  %v608 = vadd.f32 %v587, %v593
  %v609 = vadd.f32 %v588, %v593
  %v610 = vld [vmem:[%s2 + $0x4] sm:$0x1]
  %v611 = vlaneseq
  %v612 = vshrl.u32 %v611, 7
  %v613 = vsub.s32 0, %v612
  %v614 = vrot.slane %v610, %v613
  %v615 = vmul.f32 %v435, %v614
  %v616 = vmul.f32 %v436, %v614
  %v617 = vmul.f32 %v437, %v614
  %v618 = vmul.f32 %v438, %v614
  %v619 = vmul.f32 %v439, %v614
  %v620 = vmul.f32 %v440, %v614
  %v621 = vmul.f32 %v441, %v614
  %v622 = vmul.f32 %v442, %v614
  %v623 = vmul.f32 %v443, %v614
  %v624 = vmul.f32 %v444, %v614
  %v625 = vmul.f32 %v445, %v614
  %v626 = vmul.f32 %v446, %v614
  %v627 = vmul.f32 %v447, %v614
  %v628 = vmul.f32 %v448, %v614
  %v629 = vmul.f32 %v449, %v614
  %v630 = vmul.f32 %v450, %v614
  %v631 = vadd.f32 %v594, %v615
  %v632 = vadd.f32 %v595, %v616
  %v633 = vadd.f32 %v596, %v617
  %v634 = vadd.f32 %v597, %v618
  %v635 = vadd.f32 %v598, %v619
  %v636 = vadd.f32 %v599, %v620
  %v637 = vadd.f32 %v600, %v621
  %v638 = vadd.f32 %v601, %v622
  %v639 = vadd.f32 %v602, %v623
  %v640 = vadd.f32 %v603, %v624
  %v641 = vadd.f32 %v604, %v625
  %v642 = vadd.f32 %v605, %v626
  %v643 = vadd.f32 %v606, %v627
  %v644 = vadd.f32 %v607, %v628
  %v645 = vadd.f32 %v608, %v629
  %v646 = vadd.f32 %v609, %v630
  %v647 = vld [vmem:[%s2 + $0x5] sm:$0x1]
  %v648 = vlaneseq
  %v649 = vshrl.u32 %v648, 7
  %v650 = vsub.s32 0, %v649
  %v651 = vrot.slane %v647, %v650
  %v652 = vmul.f32 %v515, %v651
  %v653 = vmul.f32 %v516, %v651
  %v654 = vmul.f32 %v517, %v651
  %v655 = vmul.f32 %v518, %v651
  %v656 = vmul.f32 %v519, %v651
  %v657 = vmul.f32 %v520, %v651
  %v658 = vmul.f32 %v521, %v651
  %v659 = vmul.f32 %v522, %v651
  %v660 = vmul.f32 %v523, %v651
  %v661 = vmul.f32 %v524, %v651
  %v662 = vmul.f32 %v525, %v651
  %v663 = vmul.f32 %v526, %v651
  %v664 = vmul.f32 %v527, %v651
  %v665 = vmul.f32 %v528, %v651
  %v666 = vmul.f32 %v529, %v651
  %v667 = vmul.f32 %v530, %v651
  %v668 = vadd.f32 %v631, %v652
  %v669 = vadd.f32 %v632, %v653
  %v670 = vadd.f32 %v633, %v654
  %v671 = vadd.f32 %v634, %v655
  %v672 = vadd.f32 %v635, %v656
  %v673 = vadd.f32 %v636, %v657
  %v674 = vadd.f32 %v637, %v658
  %v675 = vadd.f32 %v638, %v659
  %v676 = vadd.f32 %v639, %v660
  %v677 = vadd.f32 %v640, %v661
  %v678 = vadd.f32 %v641, %v662
  %v679 = vadd.f32 %v642, %v663
  %v680 = vadd.f32 %v643, %v664
  %v681 = vadd.f32 %v644, %v665
  %v682 = vadd.f32 %v645, %v666
  %v683 = vadd.f32 %v646, %v667
  %684 = vst [vmem:[%s3] sm:$0xff] %v668
  %685 = vst [vmem:[%s3 + $0x8] sm:$0xff] %v669
  %686 = vst [vmem:[%s3 + $0x10] sm:$0xff] %v670
  %687 = vst [vmem:[%s3 + $0x18] sm:$0xff] %v671
  %688 = vst [vmem:[%s3 + $0x20] sm:$0xff] %v672
  %689 = vst [vmem:[%s3 + $0x28] sm:$0xff] %v673
  %690 = vst [vmem:[%s3 + $0x30] sm:$0xff] %v674
  %691 = vst [vmem:[%s3 + $0x38] sm:$0xff] %v675
  %692 = vst [vmem:[%s3 + $0x40] sm:$0xff] %v676
  %693 = vst [vmem:[%s3 + $0x48] sm:$0xff] %v677
  %694 = vst [vmem:[%s3 + $0x50] sm:$0xff] %v678
  %695 = vst [vmem:[%s3 + $0x58] sm:$0xff] %v679
  %696 = vst [vmem:[%s3 + $0x60] sm:$0xff] %v680
  %697 = vst [vmem:[%s3 + $0x68] sm:$0xff] %v681
  %698 = vst [vmem:[%s3 + $0x70] sm:$0xff] %v682
  %699 = vst [vmem:[%s3 + $0x78] sm:$0xff] %v683
  // Predicated region
  $region14: #{detect_forward.4} parent=0 // pred_check
    _
  $region15: #{detect_forward.4} parent=0 // pred_check_branch
    %701 = sbr.rel (0) target = $region17
  $region16: #{detect_forward.4} parent=0 // pred_region
    _
  $region17: #{detect_forward.4} parent=0 // pred_fallthru
    _
  // Predicated region
  $region18: #{detect_forward.4} parent=0 // pred_check
    _
  $region19: #{detect_forward.4} parent=0 // pred_check_branch
    %703 = sbr.rel (0) target = $region21
  $region20: #{detect_forward.4} parent=0 // pred_region
    _
  $region21: #{detect_forward.4} parent=0 // pred_fallthru
    _
  // Predicated region
  $region22: #{detect_forward.4} parent=0 // pred_check
    _
  $region23: #{detect_forward.4} parent=0 // pred_check_branch
    %705 = sbr.rel (0) target = $region25
  $region24: #{detect_forward.4} parent=0 // pred_region
    _
  $region25: #{detect_forward.4} parent=0 // pred_fallthru
    _
  // Predicated region
  $region26: #{detect_forward.4} parent=0 // pred_check
    _
  $region27: #{detect_forward.4} parent=0 // pred_check_branch
    %707 = sbr.rel (0) target = $region29
  $region28: #{detect_forward.4} parent=0 // pred_region
    _
  $region29: #{detect_forward.4} parent=0 // pred_fallthru
    _

// kernel: detect_forward.3
$region0: #{detect_forward.3}
  #allocation0 [shape = 'u32[]', space=smem, size = 0x4, offset = 0x4, fixed_abs, tag = 'smem constant byte address 0x4 - core index']
  #allocation1 [shape = 'u32[144,128]{1,0:T(1,128)}', space=vmem, size = 0x12000, scoped, tag = 'internal scratch']
  %s0 = inlined_call_operand.vmem [shape: bf16[512,8], index: 0, kind: input, shape index: {}]
  %s1 = inlined_call_operand.vmem [shape: bf16[8,128], index: 1, kind: input, shape index: {}]
  %s2 = inlined_call_operand.vmem [shape: f32[8,128], index: 2, kind: input, shape index: {}]
  %s3 = inlined_call_operand.vmem [shape: f32[512,128], index: 3, kind: output, shape index: {0}]
  %s4 = inlined_call_operand.vmem [shape: f32[512,128], index: 4, kind: output, shape index: {1}]
  %5 = xla_tuple %s3, %s4
  %s6 = sld [smem:[#allocation0]]
  $region30: #{detect_forward.3} parent=0
    _
  %s8 = ssub.s32 1, %s6
  %s9 = scalar_select 0, %s8, %s6
  // Predicated region
  $region2: #{detect_forward.3} parent=0 // pred_check
    _
  $region3: #{detect_forward.3} parent=0 // pred_check_branch
    %11 = sbr.rel (0) target = $region5
  $region4: #{detect_forward.3} parent=0 // pred_region
    _
  $region5: #{detect_forward.3} parent=0 // pred_fallthru
    _
  // Predicated region
  $region6: #{detect_forward.3} parent=0 // pred_check
    _
  $region7: #{detect_forward.3} parent=0 // pred_check_branch
    %13 = sbr.rel (0) target = $region9
  $region8: #{detect_forward.3} parent=0 // pred_region
    _
  $region9: #{detect_forward.3} parent=0 // pred_fallthru
    _
  // Predicated region
  $region10: #{detect_forward.3} parent=0 // pred_check
    _
  $region11: #{detect_forward.3} parent=0 // pred_check_branch
    %15 = sbr.rel (0) target = $region13
  $region12: #{detect_forward.3} parent=0 // pred_region
    _
  $region13: #{detect_forward.3} parent=0 // pred_fallthru
    _
  %v17 = vld [vmem:[%s0] sm:$0xf]
  %v18 = vld [vmem:[%s0 + $0x4] sm:$0xf]
  %v19 = vld [vmem:[%s0 + $0x8] sm:$0xf]
  %v20 = vld [vmem:[%s0 + $0xc] sm:$0xf]
  %v21 = vld [vmem:[%s0 + $0x10] sm:$0xf]
  %v22 = vld [vmem:[%s0 + $0x14] sm:$0xf]
  %v23 = vld [vmem:[%s0 + $0x18] sm:$0xf]
  %v24 = vld [vmem:[%s0 + $0x1c] sm:$0xf]
  %v25 = vld [vmem:[%s0 + $0x20] sm:$0xf]
  %v26 = vld [vmem:[%s0 + $0x24] sm:$0xf]
  %v27 = vld [vmem:[%s0 + $0x28] sm:$0xf]
  %v28 = vld [vmem:[%s0 + $0x2c] sm:$0xf]
  %v29 = vld [vmem:[%s0 + $0x30] sm:$0xf]
  %v30 = vld [vmem:[%s0 + $0x34] sm:$0xf]
  %v31 = vld [vmem:[%s0 + $0x38] sm:$0xf]
  %v32 = vld [vmem:[%s0 + $0x3c] sm:$0xf]
  %v33 = vld [vmem:[%s0 + $0x40] sm:$0xf]
  %v34 = vld [vmem:[%s0 + $0x44] sm:$0xf]
  %v35 = vld [vmem:[%s0 + $0x48] sm:$0xf]
  %v36 = vld [vmem:[%s0 + $0x4c] sm:$0xf]
  %v37 = vld [vmem:[%s0 + $0x50] sm:$0xf]
  %v38 = vld [vmem:[%s0 + $0x54] sm:$0xf]
  %v39 = vld [vmem:[%s0 + $0x58] sm:$0xf]
  %v40 = vld [vmem:[%s0 + $0x5c] sm:$0xf]
  %v41 = vld [vmem:[%s0 + $0x60] sm:$0xf]
  %v42 = vld [vmem:[%s0 + $0x64] sm:$0xf]
  %v43 = vld [vmem:[%s0 + $0x68] sm:$0xf]
  %v44 = vld [vmem:[%s0 + $0x6c] sm:$0xf]
  %v45 = vld [vmem:[%s0 + $0x70] sm:$0xf]
  %v46 = vld [vmem:[%s0 + $0x74] sm:$0xf]
  %v47 = vld [vmem:[%s0 + $0x78] sm:$0xf]
  %v48 = vld [vmem:[%s0 + $0x7c] sm:$0xf]
  %v49 = vld [vmem:[%s0 + $0x80] sm:$0xf]
  %v50 = vld [vmem:[%s0 + $0x84] sm:$0xf]
  %v51 = vld [vmem:[%s0 + $0x88] sm:$0xf]
  %v52 = vld [vmem:[%s0 + $0x8c] sm:$0xf]
  %v53 = vld [vmem:[%s0 + $0x90] sm:$0xf]
  %v54 = vld [vmem:[%s0 + $0x94] sm:$0xf]
  %v55 = vld [vmem:[%s0 + $0x98] sm:$0xf]
  %v56 = vld [vmem:[%s0 + $0x9c] sm:$0xf]
  %v57 = vld [vmem:[%s0 + $0xa0] sm:$0xf]
  %v58 = vld [vmem:[%s0 + $0xa4] sm:$0xf]
  %v59 = vld [vmem:[%s0 + $0xa8] sm:$0xf]
  %v60 = vld [vmem:[%s0 + $0xac] sm:$0xf]
  %v61 = vld [vmem:[%s0 + $0xb0] sm:$0xf]
  %v62 = vld [vmem:[%s0 + $0xb4] sm:$0xf]
  %v63 = vld [vmem:[%s0 + $0xb8] sm:$0xf]
  %v64 = vld [vmem:[%s0 + $0xbc] sm:$0xf]
  %v65 = vld [vmem:[%s0 + $0xc0] sm:$0xf]
  %v66 = vld [vmem:[%s0 + $0xc4] sm:$0xf]
  %v67 = vld [vmem:[%s0 + $0xc8] sm:$0xf]
  %v68 = vld [vmem:[%s0 + $0xcc] sm:$0xf]
  %v69 = vld [vmem:[%s0 + $0xd0] sm:$0xf]
  %v70 = vld [vmem:[%s0 + $0xd4] sm:$0xf]
  %v71 = vld [vmem:[%s0 + $0xd8] sm:$0xf]
  %v72 = vld [vmem:[%s0 + $0xdc] sm:$0xf]
  %v73 = vld [vmem:[%s0 + $0xe0] sm:$0xf]
  %v74 = vld [vmem:[%s0 + $0xe4] sm:$0xf]
  %v75 = vld [vmem:[%s0 + $0xe8] sm:$0xf]
  %v76 = vld [vmem:[%s0 + $0xec] sm:$0xf]
  %v77 = vld [vmem:[%s0 + $0xf0] sm:$0xf]
  %v78 = vld [vmem:[%s0 + $0xf4] sm:$0xf]
  %v79 = vld [vmem:[%s0 + $0xf8] sm:$0xf]
  %v80 = vld [vmem:[%s0 + $0xfc] sm:$0xf]
  %v81 = vld [vmem:[%s1] sm:$0xf]
  %v82 = vld [vmem:[%s2] sm:$0x1]
  %v83 = vlaneseq
  %v84 = vshrl.u32 %v83, 7
  %v85 = vsub.s32 0, %v84
  %v86 = vrot.slane %v82, %v85
  %v151 = vunpack.c.l.b16 %v17
  %v152 = vunpack.c.l.b16 %v18
  %v153 = vunpack.c.l.b16 %v19
  %v154 = vunpack.c.l.b16 %v20
  %v155 = vunpack.c.l.b16 %v21
  %v156 = vunpack.c.l.b16 %v22
  %v157 = vunpack.c.l.b16 %v23
  %v158 = vunpack.c.l.b16 %v24
  %v159 = vunpack.c.l.b16 %v25
  %v160 = vunpack.c.l.b16 %v26
  %v161 = vunpack.c.l.b16 %v27
  %v162 = vunpack.c.l.b16 %v28
  %v163 = vunpack.c.l.b16 %v29
  %v164 = vunpack.c.l.b16 %v30
  %v165 = vunpack.c.l.b16 %v31
  %v166 = vunpack.c.l.b16 %v32
  %v167 = vunpack.c.l.b16 %v33
  %v168 = vunpack.c.l.b16 %v34
  %v169 = vunpack.c.l.b16 %v35
  %v170 = vunpack.c.l.b16 %v36
  %v171 = vunpack.c.l.b16 %v37
  %v172 = vunpack.c.l.b16 %v38
  %v173 = vunpack.c.l.b16 %v39
  %v174 = vunpack.c.l.b16 %v40
  %v175 = vunpack.c.l.b16 %v41
  %v176 = vunpack.c.l.b16 %v42
  %v177 = vunpack.c.l.b16 %v43
  %v178 = vunpack.c.l.b16 %v44
  %v179 = vunpack.c.l.b16 %v45
  %v180 = vunpack.c.l.b16 %v46
  %v181 = vunpack.c.l.b16 %v47
  %v182 = vunpack.c.l.b16 %v48
  %v183 = vunpack.c.l.b16 %v49
  %v184 = vunpack.c.l.b16 %v50
  %v185 = vunpack.c.l.b16 %v51
  %v186 = vunpack.c.l.b16 %v52
  %v187 = vunpack.c.l.b16 %v53
  %v188 = vunpack.c.l.b16 %v54
  %v189 = vunpack.c.l.b16 %v55
  %v190 = vunpack.c.l.b16 %v56
  %v191 = vunpack.c.l.b16 %v57
  %v192 = vunpack.c.l.b16 %v58
  %v193 = vunpack.c.l.b16 %v59
  %v194 = vunpack.c.l.b16 %v60
  %v195 = vunpack.c.l.b16 %v61
  %v196 = vunpack.c.l.b16 %v62
  %v197 = vunpack.c.l.b16 %v63
  %v198 = vunpack.c.l.b16 %v64
  %v199 = vunpack.c.l.b16 %v65
  %v200 = vunpack.c.l.b16 %v66
  %v201 = vunpack.c.l.b16 %v67
  %v202 = vunpack.c.l.b16 %v68
  %v203 = vunpack.c.l.b16 %v69
  %v204 = vunpack.c.l.b16 %v70
  %v205 = vunpack.c.l.b16 %v71
  %v206 = vunpack.c.l.b16 %v72
  %v207 = vunpack.c.l.b16 %v73
  %v208 = vunpack.c.l.b16 %v74
  %v209 = vunpack.c.l.b16 %v75
  %v210 = vunpack.c.l.b16 %v76
  %v211 = vunpack.c.l.b16 %v77
  %v212 = vunpack.c.l.b16 %v78
  %v213 = vunpack.c.l.b16 %v79
  %v214 = vunpack.c.l.b16 %v80
  %v215 = vpack.c.b16 %v152, %v151
  %v216 = vpack.c.b16 %v154, %v153
  %v217 = vpack.c.b16 %v156, %v155
  %v218 = vpack.c.b16 %v158, %v157
  %v219 = vpack.c.b16 %v160, %v159
  %v220 = vpack.c.b16 %v162, %v161
  %v221 = vpack.c.b16 %v164, %v163
  %v222 = vpack.c.b16 %v166, %v165
  %v223 = vpack.c.b16 %v168, %v167
  %v224 = vpack.c.b16 %v170, %v169
  %v225 = vpack.c.b16 %v172, %v171
  %v226 = vpack.c.b16 %v174, %v173
  %v227 = vpack.c.b16 %v176, %v175
  %v228 = vpack.c.b16 %v178, %v177
  %v229 = vpack.c.b16 %v180, %v179
  %v230 = vpack.c.b16 %v182, %v181
  %v231 = vpack.c.b16 %v184, %v183
  %v232 = vpack.c.b16 %v186, %v185
  %v233 = vpack.c.b16 %v188, %v187
  %v234 = vpack.c.b16 %v190, %v189
  %v235 = vpack.c.b16 %v192, %v191
  %v236 = vpack.c.b16 %v194, %v193
  %v237 = vpack.c.b16 %v196, %v195
  %v238 = vpack.c.b16 %v198, %v197
  %v239 = vpack.c.b16 %v200, %v199
  %v240 = vpack.c.b16 %v202, %v201
  %v241 = vpack.c.b16 %v204, %v203
  %v242 = vpack.c.b16 %v206, %v205
  %v243 = vpack.c.b16 %v208, %v207
  %v244 = vpack.c.b16 %v210, %v209
  %v245 = vpack.c.b16 %v212, %v211
  %v246 = vpack.c.b16 %v214, %v213
  %vm247 = vcmask 64512
  %v249 = vsel %vm247, %v215, 0
  %v252 = vsel %vm247, %v216, 0
  %v255 = vsel %vm247, %v217, 0
  %v258 = vsel %vm247, %v218, 0
  %v261 = vsel %vm247, %v219, 0
  %v264 = vsel %vm247, %v220, 0
  %v267 = vsel %vm247, %v221, 0
  %v270 = vsel %vm247, %v222, 0
  %v273 = vsel %vm247, %v223, 0
  %v276 = vsel %vm247, %v224, 0
  %v279 = vsel %vm247, %v225, 0
  %v282 = vsel %vm247, %v226, 0
  %v285 = vsel %vm247, %v227, 0
  %v288 = vsel %vm247, %v228, 0
  %v291 = vsel %vm247, %v229, 0
  %v294 = vsel %vm247, %v230, 0
  %v297 = vsel %vm247, %v231, 0
  %v300 = vsel %vm247, %v232, 0
  %v303 = vsel %vm247, %v233, 0
  %v306 = vsel %vm247, %v234, 0
  %v309 = vsel %vm247, %v235, 0
  %v312 = vsel %vm247, %v236, 0
  %v315 = vsel %vm247, %v237, 0
  %v318 = vsel %vm247, %v238, 0
  %v321 = vsel %vm247, %v239, 0
  %v324 = vsel %vm247, %v240, 0
  %v327 = vsel %vm247, %v241, 0
  %v330 = vsel %vm247, %v242, 0
  %v333 = vsel %vm247, %v243, 0
  %v336 = vsel %vm247, %v244, 0
  %v339 = vsel %vm247, %v245, 0
  %v342 = vsel %vm247, %v246, 0
  %vm344 = vcmask 1043456
  %v346 = vsel %vm344, %v81, 0
  %348 = vmatprep.subr.bf16.mxu0 0
  %349 = vmatpush1.bf16.msra.mxu0 %v346
  %350 = vmatprep.subr.bf16.mxu0 0
  %351 = vmatpush1.bf16.msra.mxu0 0
  %352 = vmatprep.subr.bf16.mxu0 0
  %353 = vmatpush1.bf16.msra.mxu0 0
  %354 = vmatprep.subr.bf16.mxu0 0
  %355 = vmatpush1.bf16.msra.mxu0 0
  %356 = vmatprep.subr.bf16.mxu0 0
  %357 = vmatpush1.bf16.msra.mxu0 0
  %358 = vmatprep.subr.bf16.mxu0 0
  %359 = vmatpush1.bf16.msra.mxu0 0
  %360 = vmatprep.subr.bf16.mxu0 0
  %361 = vmatpush1.bf16.msra.mxu0 0
  %362 = vmatprep.subr.bf16.mxu0 0
  %363 = vmatpush1.bf16.msra.mxu0 0
  %364 = vmatprep.subr.bf16.mxu0 0
  %365 = vmatpush1.bf16.msra.mxu0 0
  %366 = vmatprep.subr.bf16.mxu0 0
  %367 = vmatpush1.bf16.msra.mxu0 0
  %368 = vmatprep.subr.bf16.mxu0 0
  %369 = vmatpush1.bf16.msra.mxu0 0
  %370 = vmatprep.subr.bf16.mxu0 0
  %371 = vmatpush1.bf16.msra.mxu0 0
  %372 = vmatprep.subr.bf16.mxu0 0
  %373 = vmatpush1.bf16.msra.mxu0 0
  %374 = vmatprep.subr.bf16.mxu0 0
  %375 = vmatpush1.bf16.msra.mxu0 0
  %376 = vmatprep.subr.bf16.mxu0 0
  %377 = vmatpush1.bf16.msra.mxu0 0
  %378 = vmatprep.subr.bf16.mxu0 0
  %379 = vmatpush1.bf16.msra.mxu0 0
  %380 = vmatprep.mubr.bf16.mxu0 0
  %381 = vmatmul.mubr.bf16.gmra.mrb[0].mxu0 %v249
  %v382 = vpop.f32.mrb[0].mxu0
  %v383 = vadd.f32 %v86, %v382
  %v384 = vpop.f32.mrb[0].mxu0
  %v385 = vpop.f32.mrb[0].mxu0
  %v386 = vadd.f32 %v86, %v385
  %v387 = vpop.f32.mrb[0].mxu0
  %388 = vmatprep.mubr.bf16.mxu0 0
  %389 = vmatmul.mubr.bf16.gmra.mrb[0].mxu0 %v252
  %v390 = vpop.f32.mrb[0].mxu0
  %v391 = vadd.f32 %v86, %v390
  %v392 = vpop.f32.mrb[0].mxu0
  %v393 = vpop.f32.mrb[0].mxu0
  %v394 = vadd.f32 %v86, %v393
  %v395 = vpop.f32.mrb[0].mxu0
  %396 = vmatprep.mubr.bf16.mxu0 0
  %397 = vmatmul.mubr.bf16.gmra.mrb[0].mxu0 %v255
  %v398 = vpop.f32.mrb[0].mxu0
  %v399 = vadd.f32 %v86, %v398
  %v400 = vpop.f32.mrb[0].mxu0
  %v401 = vpop.f32.mrb[0].mxu0
  %v402 = vadd.f32 %v86, %v401
  %v403 = vpop.f32.mrb[0].mxu0
  %404 = vmatprep.mubr.bf16.mxu0 0
  %405 = vmatmul.mubr.bf16.gmra.mrb[0].mxu0 %v258
  %v406 = vpop.f32.mrb[0].mxu0
  %v407 = vadd.f32 %v86, %v406
  %v408 = vpop.f32.mrb[0].mxu0
  %v409 = vpop.f32.mrb[0].mxu0
  %v410 = vadd.f32 %v86, %v409
  %v411 = vpop.f32.mrb[0].mxu0
  %412 = vmatprep.mubr.bf16.mxu0 0
  %413 = vmatmul.mubr.bf16.gmra.mrb[0].mxu0 %v261
  %v414 = vpop.f32.mrb[0].mxu0
  %v415 = vadd.f32 %v86, %v414
  %v416 = vpop.f32.mrb[0].mxu0
  %v417 = vpop.f32.mrb[0].mxu0
  %v418 = vadd.f32 %v86, %v417
  %v419 = vpop.f32.mrb[0].mxu0
  %420 = vmatprep.mubr.bf16.mxu0 0
  %421 = vmatmul.mubr.bf16.gmra.mrb[0].mxu0 %v264
  %v422 = vpop.f32.mrb[0].mxu0
  %v423 = vadd.f32 %v86, %v422
  %v424 = vpop.f32.mrb[0].mxu0
  %v425 = vpop.f32.mrb[0].mxu0
  %v426 = vadd.f32 %v86, %v425
  %v427 = vpop.f32.mrb[0].mxu0
  %428 = vmatprep.mubr.bf16.mxu0 0
  %429 = vmatmul.mubr.bf16.gmra.mrb[0].mxu0 %v267
  %v430 = vpop.f32.mrb[0].mxu0
  %v431 = vadd.f32 %v86, %v430
  %v432 = vpop.f32.mrb[0].mxu0
  %v433 = vpop.f32.mrb[0].mxu0
  %v434 = vadd.f32 %v86, %v433
  %v435 = vpop.f32.mrb[0].mxu0
  %436 = vmatprep.mubr.bf16.mxu0 0
  %437 = vmatmul.mubr.bf16.gmra.mrb[0].mxu0 %v270
  %v438 = vpop.f32.mrb[0].mxu0
  %v439 = vadd.f32 %v86, %v438
  %v440 = vpop.f32.mrb[0].mxu0
  %v441 = vpop.f32.mrb[0].mxu0
  %v442 = vadd.f32 %v86, %v441
  %v443 = vpop.f32.mrb[0].mxu0
  %444 = vmatprep.mubr.bf16.mxu0 0
  %445 = vmatmul.mubr.bf16.gmra.mrb[0].mxu0 %v273
  %v446 = vpop.f32.mrb[0].mxu0
  %v447 = vadd.f32 %v86, %v446
  %v448 = vpop.f32.mrb[0].mxu0
  %v449 = vpop.f32.mrb[0].mxu0
  %v450 = vadd.f32 %v86, %v449
  %v451 = vpop.f32.mrb[0].mxu0
  %452 = vmatprep.mubr.bf16.mxu0 0
  %453 = vmatmul.mubr.bf16.gmra.mrb[0].mxu0 %v276
  %v454 = vpop.f32.mrb[0].mxu0
  %v455 = vadd.f32 %v86, %v454
  %v456 = vpop.f32.mrb[0].mxu0
  %v457 = vpop.f32.mrb[0].mxu0
  %v458 = vadd.f32 %v86, %v457
  %v459 = vpop.f32.mrb[0].mxu0
  %460 = vmatprep.mubr.bf16.mxu0 0
  %461 = vmatmul.mubr.bf16.gmra.mrb[0].mxu0 %v279
  %v462 = vpop.f32.mrb[0].mxu0
  %v463 = vadd.f32 %v86, %v462
  %v464 = vpop.f32.mrb[0].mxu0
  %v465 = vpop.f32.mrb[0].mxu0
  %v466 = vadd.f32 %v86, %v465
  %v467 = vpop.f32.mrb[0].mxu0
  %468 = vmatprep.mubr.bf16.mxu0 0
  %469 = vmatmul.mubr.bf16.gmra.mrb[0].mxu0 %v282
  %v470 = vpop.f32.mrb[0].mxu0
  %v471 = vadd.f32 %v86, %v470
  %v472 = vpop.f32.mrb[0].mxu0
  %v473 = vpop.f32.mrb[0].mxu0
  %v474 = vadd.f32 %v86, %v473
  %v475 = vpop.f32.mrb[0].mxu0
  %476 = vmatprep.mubr.bf16.mxu0 0
  %477 = vmatmul.mubr.bf16.gmra.mrb[0].mxu0 %v285
  %v478 = vpop.f32.mrb[0].mxu0
  %v479 = vadd.f32 %v86, %v478
  %v480 = vpop.f32.mrb[0].mxu0
  %v481 = vpop.f32.mrb[0].mxu0
  %v482 = vadd.f32 %v86, %v481
  %v483 = vpop.f32.mrb[0].mxu0
  %484 = vmatprep.mubr.bf16.mxu0 0
  %485 = vmatmul.mubr.bf16.gmra.mrb[0].mxu0 %v288
  %v486 = vpop.f32.mrb[0].mxu0
  %v487 = vadd.f32 %v86, %v486
  %v488 = vpop.f32.mrb[0].mxu0
  %v489 = vpop.f32.mrb[0].mxu0
  %v490 = vadd.f32 %v86, %v489
  %v491 = vpop.f32.mrb[0].mxu0
  %492 = vmatprep.mubr.bf16.mxu0 0
  %493 = vmatmul.mubr.bf16.gmra.mrb[0].mxu0 %v291
  %v494 = vpop.f32.mrb[0].mxu0
  %v495 = vadd.f32 %v86, %v494
  %v496 = vpop.f32.mrb[0].mxu0
  %v497 = vpop.f32.mrb[0].mxu0
  %v498 = vadd.f32 %v86, %v497
  %v499 = vpop.f32.mrb[0].mxu0
  %500 = vmatprep.mubr.bf16.mxu0 0
  %501 = vmatmul.mubr.bf16.gmra.mrb[0].mxu0 %v294
  %v502 = vpop.f32.mrb[0].mxu0
  %v503 = vadd.f32 %v86, %v502
  %v504 = vpop.f32.mrb[0].mxu0
  %v505 = vpop.f32.mrb[0].mxu0
  %v506 = vadd.f32 %v86, %v505
  %v507 = vpop.f32.mrb[0].mxu0
  %508 = vmatprep.mubr.bf16.mxu0 0
  %509 = vmatmul.mubr.bf16.gmra.mrb[0].mxu0 %v297
  %v510 = vpop.f32.mrb[0].mxu0
  %v511 = vadd.f32 %v86, %v510
  %v512 = vpop.f32.mrb[0].mxu0
  %v513 = vpop.f32.mrb[0].mxu0
  %v514 = vadd.f32 %v86, %v513
  %v515 = vpop.f32.mrb[0].mxu0
  %516 = vmatprep.mubr.bf16.mxu0 0
  %517 = vmatmul.mubr.bf16.gmra.mrb[0].mxu0 %v300
  %v518 = vpop.f32.mrb[0].mxu0
  %v519 = vadd.f32 %v86, %v518
  %v520 = vpop.f32.mrb[0].mxu0
  %v521 = vpop.f32.mrb[0].mxu0
  %v522 = vadd.f32 %v86, %v521
  %v523 = vpop.f32.mrb[0].mxu0
  %524 = vmatprep.mubr.bf16.mxu0 0
  %525 = vmatmul.mubr.bf16.gmra.mrb[0].mxu0 %v303
  %v526 = vpop.f32.mrb[0].mxu0
  %v527 = vadd.f32 %v86, %v526
  %v528 = vpop.f32.mrb[0].mxu0
  %v529 = vpop.f32.mrb[0].mxu0
  %v530 = vadd.f32 %v86, %v529
  %v531 = vpop.f32.mrb[0].mxu0
  %532 = vmatprep.mubr.bf16.mxu0 0
  %533 = vmatmul.mubr.bf16.gmra.mrb[0].mxu0 %v306
  %v534 = vpop.f32.mrb[0].mxu0
  %v535 = vadd.f32 %v86, %v534
  %v536 = vpop.f32.mrb[0].mxu0
  %v537 = vpop.f32.mrb[0].mxu0
  %v538 = vadd.f32 %v86, %v537
  %v539 = vpop.f32.mrb[0].mxu0
  %540 = vmatprep.mubr.bf16.mxu0 0
  %541 = vmatmul.mubr.bf16.gmra.mrb[0].mxu0 %v309
  %v542 = vpop.f32.mrb[0].mxu0
  %v543 = vadd.f32 %v86, %v542
  %v544 = vpop.f32.mrb[0].mxu0
  %v545 = vpop.f32.mrb[0].mxu0
  %v546 = vadd.f32 %v86, %v545
  %v547 = vpop.f32.mrb[0].mxu0
  %548 = vmatprep.mubr.bf16.mxu0 0
  %549 = vmatmul.mubr.bf16.gmra.mrb[0].mxu0 %v312
  %v550 = vpop.f32.mrb[0].mxu0
  %v551 = vadd.f32 %v86, %v550
  %v552 = vpop.f32.mrb[0].mxu0
  %v553 = vpop.f32.mrb[0].mxu0
  %v554 = vadd.f32 %v86, %v553
  %v555 = vpop.f32.mrb[0].mxu0
  %556 = vmatprep.mubr.bf16.mxu0 0
  %557 = vmatmul.mubr.bf16.gmra.mrb[0].mxu0 %v315
  %v558 = vpop.f32.mrb[0].mxu0
  %v559 = vadd.f32 %v86, %v558
  %v560 = vpop.f32.mrb[0].mxu0
  %v561 = vpop.f32.mrb[0].mxu0
  %v562 = vadd.f32 %v86, %v561
  %v563 = vpop.f32.mrb[0].mxu0
  %564 = vmatprep.mubr.bf16.mxu0 0
  %565 = vmatmul.mubr.bf16.gmra.mrb[0].mxu0 %v318
  %v566 = vpop.f32.mrb[0].mxu0
  %v567 = vadd.f32 %v86, %v566
  %v568 = vpop.f32.mrb[0].mxu0
  %v569 = vpop.f32.mrb[0].mxu0
  %v570 = vadd.f32 %v86, %v569
  %v571 = vpop.f32.mrb[0].mxu0
  %572 = vmatprep.mubr.bf16.mxu0 0
  %573 = vmatmul.mubr.bf16.gmra.mrb[0].mxu0 %v321
  %v574 = vpop.f32.mrb[0].mxu0
  %v575 = vadd.f32 %v86, %v574
  %v576 = vpop.f32.mrb[0].mxu0
  %v577 = vpop.f32.mrb[0].mxu0
  %v578 = vadd.f32 %v86, %v577
  %v579 = vpop.f32.mrb[0].mxu0
  %580 = vmatprep.mubr.bf16.mxu0 0
  %581 = vmatmul.mubr.bf16.gmra.mrb[0].mxu0 %v324
  %v582 = vpop.f32.mrb[0].mxu0
  %v583 = vadd.f32 %v86, %v582
  %v584 = vpop.f32.mrb[0].mxu0
  %v585 = vpop.f32.mrb[0].mxu0
  %v586 = vadd.f32 %v86, %v585
  %v587 = vpop.f32.mrb[0].mxu0
  %588 = vmatprep.mubr.bf16.mxu0 0
  %589 = vmatmul.mubr.bf16.gmra.mrb[0].mxu0 %v327
  %v590 = vpop.f32.mrb[0].mxu0
  %v591 = vadd.f32 %v86, %v590
  %v592 = vpop.f32.mrb[0].mxu0
  %v593 = vpop.f32.mrb[0].mxu0
  %v594 = vadd.f32 %v86, %v593
  %v595 = vpop.f32.mrb[0].mxu0
  %596 = vmatprep.mubr.bf16.mxu0 0
  %597 = vmatmul.mubr.bf16.gmra.mrb[0].mxu0 %v330
  %v598 = vpop.f32.mrb[0].mxu0
  %v599 = vadd.f32 %v86, %v598
  %v600 = vpop.f32.mrb[0].mxu0
  %v601 = vpop.f32.mrb[0].mxu0
  %v602 = vadd.f32 %v86, %v601
  %v603 = vpop.f32.mrb[0].mxu0
  %604 = vmatprep.mubr.bf16.mxu0 0
  %605 = vmatmul.mubr.bf16.gmra.mrb[0].mxu0 %v333
  %v606 = vpop.f32.mrb[0].mxu0
  %v607 = vadd.f32 %v86, %v606
  %v608 = vpop.f32.mrb[0].mxu0
  %v609 = vpop.f32.mrb[0].mxu0
  %v610 = vadd.f32 %v86, %v609
  %v611 = vpop.f32.mrb[0].mxu0
  %612 = vmatprep.mubr.bf16.mxu0 0
  %613 = vmatmul.mubr.bf16.gmra.mrb[0].mxu0 %v336
  %v614 = vpop.f32.mrb[0].mxu0
  %v615 = vadd.f32 %v86, %v614
  %v616 = vpop.f32.mrb[0].mxu0
  %v617 = vpop.f32.mrb[0].mxu0
  %v618 = vadd.f32 %v86, %v617
  %v619 = vpop.f32.mrb[0].mxu0
  %620 = vmatprep.mubr.bf16.mxu0 0
  %621 = vmatmul.mubr.bf16.gmra.mrb[0].mxu0 %v339
  %v622 = vpop.f32.mrb[0].mxu0
  %v623 = vadd.f32 %v86, %v622
  %v624 = vpop.f32.mrb[0].mxu0
  %v625 = vpop.f32.mrb[0].mxu0
  %v626 = vadd.f32 %v86, %v625
  %v627 = vpop.f32.mrb[0].mxu0
  %628 = vmatprep.mubr.bf16.mxu0 0
  %629 = vmatmul.mubr.bf16.gmra.mrb[0].mxu0 %v342
  %v630 = vpop.f32.mrb[0].mxu0
  %v631 = vadd.f32 %v86, %v630
  %v632 = vpop.f32.mrb[0].mxu0
  %v633 = vpop.f32.mrb[0].mxu0
  %v634 = vadd.f32 %v86, %v633
  %v635 = vpop.f32.mrb[0].mxu0
  %636 = vdwg.mxu0
  %637 = vst [vmem:[%s4] sm:$0xff] %v383
  %638 = vst [vmem:[%s4 + $0x8] sm:$0xff] %v386
  %639 = vst [vmem:[%s4 + $0x10] sm:$0xff] %v391
  %640 = vst [vmem:[%s4 + $0x18] sm:$0xff] %v394
  %641 = vst [vmem:[%s4 + $0x20] sm:$0xff] %v399
  %642 = vst [vmem:[%s4 + $0x28] sm:$0xff] %v402
  %643 = vst [vmem:[%s4 + $0x30] sm:$0xff] %v407
  %644 = vst [vmem:[%s4 + $0x38] sm:$0xff] %v410
  %645 = vst [vmem:[%s4 + $0x40] sm:$0xff] %v415
  %646 = vst [vmem:[%s4 + $0x48] sm:$0xff] %v418
  %647 = vst [vmem:[%s4 + $0x50] sm:$0xff] %v423
  %648 = vst [vmem:[%s4 + $0x58] sm:$0xff] %v426
  %649 = vst [vmem:[%s4 + $0x60] sm:$0xff] %v431
  %650 = vst [vmem:[%s4 + $0x68] sm:$0xff] %v434
  %651 = vst [vmem:[%s4 + $0x70] sm:$0xff] %v439
  %652 = vst [vmem:[%s4 + $0x78] sm:$0xff] %v442
  %653 = vst [vmem:[%s4 + $0x80] sm:$0xff] %v447
  %654 = vst [vmem:[%s4 + $0x88] sm:$0xff] %v450
  %655 = vst [vmem:[%s4 + $0x90] sm:$0xff] %v455
  %656 = vst [vmem:[%s4 + $0x98] sm:$0xff] %v458
  %657 = vst [vmem:[%s4 + $0xa0] sm:$0xff] %v463
  %658 = vst [vmem:[%s4 + $0xa8] sm:$0xff] %v466
  %659 = vst [vmem:[%s4 + $0xb0] sm:$0xff] %v471
  %660 = vst [vmem:[%s4 + $0xb8] sm:$0xff] %v474
  %661 = vst [vmem:[%s4 + $0xc0] sm:$0xff] %v479
  %662 = vst [vmem:[%s4 + $0xc8] sm:$0xff] %v482
  %663 = vst [vmem:[%s4 + $0xd0] sm:$0xff] %v487
  %664 = vst [vmem:[%s4 + $0xd8] sm:$0xff] %v490
  %665 = vst [vmem:[%s4 + $0xe0] sm:$0xff] %v495
  %666 = vst [vmem:[%s4 + $0xe8] sm:$0xff] %v498
  %667 = vst [vmem:[%s4 + $0xf0] sm:$0xff] %v503
  %668 = vst [vmem:[%s4 + $0xf8] sm:$0xff] %v506
  %669 = vst [vmem:[%s4 + $0x100] sm:$0xff] %v511
  %670 = vst [vmem:[%s4 + $0x108] sm:$0xff] %v514
  %671 = vst [vmem:[%s4 + $0x110] sm:$0xff] %v519
  %672 = vst [vmem:[%s4 + $0x118] sm:$0xff] %v522
  %673 = vst [vmem:[%s4 + $0x120] sm:$0xff] %v527
  %674 = vst [vmem:[%s4 + $0x128] sm:$0xff] %v530
  %675 = vst [vmem:[%s4 + $0x130] sm:$0xff] %v535
  %676 = vst [vmem:[%s4 + $0x138] sm:$0xff] %v538
  %677 = vst [vmem:[%s4 + $0x140] sm:$0xff] %v543
  %678 = vst [vmem:[%s4 + $0x148] sm:$0xff] %v546
  %679 = vst [vmem:[%s4 + $0x150] sm:$0xff] %v551
  %680 = vst [vmem:[%s4 + $0x158] sm:$0xff] %v554
  %681 = vst [vmem:[%s4 + $0x160] sm:$0xff] %v559
  %682 = vst [vmem:[%s4 + $0x168] sm:$0xff] %v562
  %683 = vst [vmem:[%s4 + $0x170] sm:$0xff] %v567
  %684 = vst [vmem:[%s4 + $0x178] sm:$0xff] %v570
  %685 = vst [vmem:[%s4 + $0x180] sm:$0xff] %v575
  %686 = vst [vmem:[%s4 + $0x188] sm:$0xff] %v578
  %687 = vst [vmem:[%s4 + $0x190] sm:$0xff] %v583
  %688 = vst [vmem:[%s4 + $0x198] sm:$0xff] %v586
  %689 = vst [vmem:[%s4 + $0x1a0] sm:$0xff] %v591
  %690 = vst [vmem:[%s4 + $0x1a8] sm:$0xff] %v594
  %691 = vst [vmem:[%s4 + $0x1b0] sm:$0xff] %v599
  %692 = vst [vmem:[%s4 + $0x1b8] sm:$0xff] %v602
  %693 = vst [vmem:[%s4 + $0x1c0] sm:$0xff] %v607
  %694 = vst [vmem:[%s4 + $0x1c8] sm:$0xff] %v610
  %695 = vst [vmem:[%s4 + $0x1d0] sm:$0xff] %v615
  %696 = vst [vmem:[%s4 + $0x1d8] sm:$0xff] %v618
  %697 = vst [vmem:[%s4 + $0x1e0] sm:$0xff] %v623
  %698 = vst [vmem:[%s4 + $0x1e8] sm:$0xff] %v626
  %699 = vst [vmem:[%s4 + $0x1f0] sm:$0xff] %v631
  %700 = vst [vmem:[%s4 + $0x1f8] sm:$0xff] %v634
  %v701 = vxor.u32 %v383, 2147483648
  %v702 = vxor.u32 %v386, 2147483648
  %v703 = vxor.u32 %v391, 2147483648
  %v704 = vxor.u32 %v394, 2147483648
  %v705 = vxor.u32 %v399, 2147483648
  %v706 = vxor.u32 %v402, 2147483648
  %v707 = vxor.u32 %v407, 2147483648
  %v708 = vxor.u32 %v410, 2147483648
  %v709 = vxor.u32 %v415, 2147483648
  %v710 = vxor.u32 %v418, 2147483648
  %v711 = vxor.u32 %v423, 2147483648
  %v712 = vxor.u32 %v426, 2147483648
  %v713 = vxor.u32 %v431, 2147483648
  %v714 = vxor.u32 %v434, 2147483648
  %v715 = vxor.u32 %v439, 2147483648
  %v716 = vxor.u32 %v442, 2147483648
  %v717 = vxor.u32 %v447, 2147483648
  %v718 = vxor.u32 %v450, 2147483648
  %v719 = vxor.u32 %v455, 2147483648
  %v720 = vxor.u32 %v458, 2147483648
  %v721 = vxor.u32 %v463, 2147483648
  %v722 = vxor.u32 %v466, 2147483648
  %v723 = vxor.u32 %v471, 2147483648
  %v724 = vxor.u32 %v474, 2147483648
  %v725 = vxor.u32 %v479, 2147483648
  %v726 = vxor.u32 %v482, 2147483648
  %v727 = vxor.u32 %v487, 2147483648
  %v728 = vxor.u32 %v490, 2147483648
  %v729 = vxor.u32 %v495, 2147483648
  %v730 = vxor.u32 %v498, 2147483648
  %v731 = vxor.u32 %v503, 2147483648
  %v732 = vxor.u32 %v506, 2147483648
  %v733 = vxor.u32 %v511, 2147483648
  %v734 = vxor.u32 %v514, 2147483648
  %v735 = vxor.u32 %v519, 2147483648
  %v736 = vxor.u32 %v522, 2147483648
  %v737 = vxor.u32 %v527, 2147483648
  %v738 = vxor.u32 %v530, 2147483648
  %v739 = vxor.u32 %v535, 2147483648
  %v740 = vxor.u32 %v538, 2147483648
  %v741 = vxor.u32 %v543, 2147483648
  %v742 = vxor.u32 %v546, 2147483648
  %v743 = vxor.u32 %v551, 2147483648
  %v744 = vxor.u32 %v554, 2147483648
  %v745 = vxor.u32 %v559, 2147483648
  %v746 = vxor.u32 %v562, 2147483648
  %v747 = vxor.u32 %v567, 2147483648
  %v748 = vxor.u32 %v570, 2147483648
  %v749 = vxor.u32 %v575, 2147483648
  %v750 = vxor.u32 %v578, 2147483648
  %v751 = vxor.u32 %v583, 2147483648
  %v752 = vxor.u32 %v586, 2147483648
  %v753 = vxor.u32 %v591, 2147483648
  %v754 = vxor.u32 %v594, 2147483648
  %v755 = vxor.u32 %v599, 2147483648
  %v756 = vxor.u32 %v602, 2147483648
  %v757 = vxor.u32 %v607, 2147483648
  %v758 = vxor.u32 %v610, 2147483648
  %v759 = vxor.u32 %v615, 2147483648
  %v760 = vxor.u32 %v618, 2147483648
  %v761 = vxor.u32 %v623, 2147483648
  %v762 = vxor.u32 %v626, 2147483648
  %v763 = vxor.u32 %v631, 2147483648
  %v764 = vxor.u32 %v634, 2147483648
  %v765 = vmul.f32 %v701, 1.442695
  %v766 = vpow.pop %v765
  %v767 = vmul.f32 %v702, 1.442695
  %v768 = vpow.pop %v767
  %v769 = vmul.f32 %v703, 1.442695
  %v770 = vpow.pop %v769
  %v771 = vmul.f32 %v704, 1.442695
  %v772 = vpow.pop %v771
  %v773 = vmul.f32 %v705, 1.442695
  %v774 = vpow.pop %v773
  %v775 = vmul.f32 %v706, 1.442695
  %v776 = vpow.pop %v775
  %v777 = vmul.f32 %v707, 1.442695
  %v778 = vpow.pop %v777
  %v779 = vmul.f32 %v708, 1.442695
  %v780 = vpow.pop %v779
  %v781 = vmul.f32 %v709, 1.442695
  %v782 = vpow.pop %v781
  %v783 = vmul.f32 %v710, 1.442695
  %v784 = vpow.pop %v783
  %v785 = vmul.f32 %v711, 1.442695
  %v786 = vpow.pop %v785
  %v787 = vmul.f32 %v712, 1.442695
  %v788 = vpow.pop %v787
  %v789 = vmul.f32 %v713, 1.442695
  %v790 = vpow.pop %v789
  %v791 = vmul.f32 %v714, 1.442695
  %v792 = vpow.pop %v791
  %v793 = vmul.f32 %v715, 1.442695
  %v794 = vpow.pop %v793
  %v795 = vmul.f32 %v716, 1.442695
  %v796 = vpow.pop %v795
  %v797 = vmul.f32 %v717, 1.442695
  %v798 = vpow.pop %v797
  %v799 = vmul.f32 %v718, 1.442695
  %v800 = vpow.pop %v799
  %v801 = vmul.f32 %v719, 1.442695
  %v802 = vpow.pop %v801
  %v803 = vmul.f32 %v720, 1.442695
  %v804 = vpow.pop %v803
  %v805 = vmul.f32 %v721, 1.442695
  %v806 = vpow.pop %v805
  %v807 = vmul.f32 %v722, 1.442695
  %v808 = vpow.pop %v807
  %v809 = vmul.f32 %v723, 1.442695
  %v810 = vpow.pop %v809
  %v811 = vmul.f32 %v724, 1.442695
  %v812 = vpow.pop %v811
  %v813 = vmul.f32 %v725, 1.442695
  %v814 = vpow.pop %v813
  %v815 = vmul.f32 %v726, 1.442695
  %v816 = vpow.pop %v815
  %v817 = vmul.f32 %v727, 1.442695
  %v818 = vpow.pop %v817
  %v819 = vmul.f32 %v728, 1.442695
  %v820 = vpow.pop %v819
  %v821 = vmul.f32 %v729, 1.442695
  %v822 = vpow.pop %v821
  %v823 = vmul.f32 %v730, 1.442695
  %v824 = vpow.pop %v823
  %v825 = vmul.f32 %v731, 1.442695
  %v826 = vpow.pop %v825
  %v827 = vmul.f32 %v732, 1.442695
  %v828 = vpow.pop %v827
  %v829 = vmul.f32 %v733, 1.442695
  %v830 = vpow.pop %v829
  %v831 = vmul.f32 %v734, 1.442695
  %v832 = vpow.pop %v831
  %v833 = vmul.f32 %v735, 1.442695
  %v834 = vpow.pop %v833
  %v835 = vmul.f32 %v736, 1.442695
  %v836 = vpow.pop %v835
  %v837 = vmul.f32 %v737, 1.442695
  %v838 = vpow.pop %v837
  %v839 = vmul.f32 %v738, 1.442695
  %v840 = vpow.pop %v839
  %v841 = vmul.f32 %v739, 1.442695
  %v842 = vpow.pop %v841
  %v843 = vmul.f32 %v740, 1.442695
  %v844 = vpow.pop %v843
  %v845 = vmul.f32 %v741, 1.442695
  %v846 = vpow.pop %v845
  %v847 = vmul.f32 %v742, 1.442695
  %v848 = vpow.pop %v847
  %v849 = vmul.f32 %v743, 1.442695
  %v850 = vpow.pop %v849
  %v851 = vmul.f32 %v744, 1.442695
  %v852 = vpow.pop %v851
  %v853 = vmul.f32 %v745, 1.442695
  %v854 = vpow.pop %v853
  %v855 = vmul.f32 %v746, 1.442695
  %v856 = vpow.pop %v855
  %v857 = vmul.f32 %v747, 1.442695
  %v858 = vpow.pop %v857
  %v859 = vmul.f32 %v748, 1.442695
  %v860 = vpow.pop %v859
  %v861 = vmul.f32 %v749, 1.442695
  %v862 = vpow.pop %v861
  %v863 = vmul.f32 %v750, 1.442695
  %v864 = vpow.pop %v863
  %v865 = vmul.f32 %v751, 1.442695
  %v866 = vpow.pop %v865
  %v867 = vmul.f32 %v752, 1.442695
  %v868 = vpow.pop %v867
  %v869 = vmul.f32 %v753, 1.442695
  %v870 = vpow.pop %v869
  %v871 = vmul.f32 %v754, 1.442695
  %v872 = vpow.pop %v871
  %v873 = vmul.f32 %v755, 1.442695
  %v874 = vpow.pop %v873
  %v875 = vmul.f32 %v756, 1.442695
  %v876 = vpow.pop %v875
  %v877 = vmul.f32 %v757, 1.442695
  %v878 = vpow.pop %v877
  %v879 = vmul.f32 %v758, 1.442695
  %v880 = vpow.pop %v879
  %v881 = vmul.f32 %v759, 1.442695
  %v882 = vpow.pop %v881
  %v883 = vmul.f32 %v760, 1.442695
  %v884 = vpow.pop %v883
  %v885 = vmul.f32 %v761, 1.442695
  %v886 = vpow.pop %v885
  %v887 = vmul.f32 %v762, 1.442695
  %v888 = vpow.pop %v887
  %v889 = vmul.f32 %v763, 1.442695
  %v890 = vpow.pop %v889
  %v891 = vmul.f32 %v764, 1.442695
  %v892 = vpow.pop %v891
  %v893 = vadd.f32 %v766, 1.0
  %v894 = vadd.f32 %v768, 1.0
  %v895 = vadd.f32 %v770, 1.0
  %v896 = vadd.f32 %v772, 1.0
  %v897 = vadd.f32 %v774, 1.0
  %v898 = vadd.f32 %v776, 1.0
  %v899 = vadd.f32 %v778, 1.0
  %v900 = vadd.f32 %v780, 1.0
  %v901 = vadd.f32 %v782, 1.0
  %v902 = vadd.f32 %v784, 1.0
  %v903 = vadd.f32 %v786, 1.0
  %v904 = vadd.f32 %v788, 1.0
  %v905 = vadd.f32 %v790, 1.0
  %v906 = vadd.f32 %v792, 1.0
  %v907 = vadd.f32 %v794, 1.0
  %v908 = vadd.f32 %v796, 1.0
  %v909 = vadd.f32 %v798, 1.0
  %v910 = vadd.f32 %v800, 1.0
  %v911 = vadd.f32 %v802, 1.0
  %v912 = vadd.f32 %v804, 1.0
  %v913 = vadd.f32 %v806, 1.0
  %v914 = vadd.f32 %v808, 1.0
  %v915 = vadd.f32 %v810, 1.0
  %v916 = vadd.f32 %v812, 1.0
  %v917 = vadd.f32 %v814, 1.0
  %v918 = vadd.f32 %v816, 1.0
  %v919 = vadd.f32 %v818, 1.0
  %v920 = vadd.f32 %v820, 1.0
  %v921 = vadd.f32 %v822, 1.0
  %v922 = vadd.f32 %v824, 1.0
  %v923 = vadd.f32 %v826, 1.0
  %v924 = vadd.f32 %v828, 1.0
  %v925 = vadd.f32 %v830, 1.0
  %v926 = vadd.f32 %v832, 1.0
  %v927 = vadd.f32 %v834, 1.0
  %v928 = vadd.f32 %v836, 1.0
  %v929 = vadd.f32 %v838, 1.0
  %v930 = vadd.f32 %v840, 1.0
  %v931 = vadd.f32 %v842, 1.0
  %v932 = vadd.f32 %v844, 1.0
  %v933 = vadd.f32 %v846, 1.0
  %v934 = vadd.f32 %v848, 1.0
  %v935 = vadd.f32 %v850, 1.0
  %v936 = vadd.f32 %v852, 1.0
  %v937 = vadd.f32 %v854, 1.0
  %v938 = vadd.f32 %v856, 1.0
  %v939 = vadd.f32 %v858, 1.0
  %v940 = vadd.f32 %v860, 1.0
  %v941 = vadd.f32 %v862, 1.0
  %v942 = vadd.f32 %v864, 1.0
  %v943 = vadd.f32 %v866, 1.0
  %v944 = vadd.f32 %v868, 1.0
  %v945 = vadd.f32 %v870, 1.0
  %v946 = vadd.f32 %v872, 1.0
  %v947 = vadd.f32 %v874, 1.0
  %v948 = vadd.f32 %v876, 1.0
  %v949 = vadd.f32 %v878, 1.0
  %v950 = vadd.f32 %v880, 1.0
  %v951 = vadd.f32 %v882, 1.0
  %v952 = vadd.f32 %v884, 1.0
  %v953 = vadd.f32 %v886, 1.0
  %v954 = vadd.f32 %v888, 1.0
  %v955 = vadd.f32 %v890, 1.0
  %v956 = vadd.f32 %v892, 1.0
  %v957 = vrcp.pop %v893
  %v958 = vmul.f32 1.0, %v957
  %v959 = vrcp.pop %v894
  %v960 = vmul.f32 1.0, %v959
  %v961 = vrcp.pop %v895
  %v962 = vmul.f32 1.0, %v961
  %v963 = vrcp.pop %v896
  %v964 = vmul.f32 1.0, %v963
  %v965 = vrcp.pop %v897
  %v966 = vmul.f32 1.0, %v965
  %v967 = vrcp.pop %v898
  %v968 = vmul.f32 1.0, %v967
  %v969 = vrcp.pop %v899
  %v970 = vmul.f32 1.0, %v969
  %v971 = vrcp.pop %v900
  %v972 = vmul.f32 1.0, %v971
  %v973 = vrcp.pop %v901
  %v974 = vmul.f32 1.0, %v973
  %v975 = vrcp.pop %v902
  %v976 = vmul.f32 1.0, %v975
  %v977 = vrcp.pop %v903
  %v978 = vmul.f32 1.0, %v977
  %v979 = vrcp.pop %v904
  %v980 = vmul.f32 1.0, %v979
  %v981 = vrcp.pop %v905
  %v982 = vmul.f32 1.0, %v981
  %v983 = vrcp.pop %v906
  %v984 = vmul.f32 1.0, %v983
  %v985 = vrcp.pop %v907
  %v986 = vmul.f32 1.0, %v985
  %v987 = vrcp.pop %v908
  %v988 = vmul.f32 1.0, %v987
  %v989 = vrcp.pop %v909
  %v990 = vmul.f32 1.0, %v989
  %v991 = vrcp.pop %v910
  %v992 = vmul.f32 1.0, %v991
  %v993 = vrcp.pop %v911
  %v994 = vmul.f32 1.0, %v993
  %v995 = vrcp.pop %v912
  %v996 = vmul.f32 1.0, %v995
  %v997 = vrcp.pop %v913
  %v998 = vmul.f32 1.0, %v997
  %v999 = vrcp.pop %v914
  %v1000 = vmul.f32 1.0, %v999
  %v1001 = vrcp.pop %v915
  %v1002 = vmul.f32 1.0, %v1001
  %v1003 = vrcp.pop %v916
  %v1004 = vmul.f32 1.0, %v1003
  %v1005 = vrcp.pop %v917
  %v1006 = vmul.f32 1.0, %v1005
  %v1007 = vrcp.pop %v918
  %v1008 = vmul.f32 1.0, %v1007
  %v1009 = vrcp.pop %v919
  %v1010 = vmul.f32 1.0, %v1009
  %v1011 = vrcp.pop %v920
  %v1012 = vmul.f32 1.0, %v1011
  %v1013 = vrcp.pop %v921
  %v1014 = vmul.f32 1.0, %v1013
  %v1015 = vrcp.pop %v922
  %v1016 = vmul.f32 1.0, %v1015
  %v1017 = vrcp.pop %v923
  %v1018 = vmul.f32 1.0, %v1017
  %v1019 = vrcp.pop %v924
  %v1020 = vmul.f32 1.0, %v1019
  %v1021 = vrcp.pop %v925
  %v1022 = vmul.f32 1.0, %v1021
  %v1023 = vrcp.pop %v926
  %v1024 = vmul.f32 1.0, %v1023
  %v1025 = vrcp.pop %v927
  %v1026 = vmul.f32 1.0, %v1025
  %v1027 = vrcp.pop %v928
  %v1028 = vmul.f32 1.0, %v1027
  %v1029 = vrcp.pop %v929
  %v1030 = vmul.f32 1.0, %v1029
  %v1031 = vrcp.pop %v930
  %v1032 = vmul.f32 1.0, %v1031
  %v1033 = vrcp.pop %v931
  %v1034 = vmul.f32 1.0, %v1033
  %v1035 = vrcp.pop %v932
  %v1036 = vmul.f32 1.0, %v1035
  %v1037 = vrcp.pop %v933
  %v1038 = vmul.f32 1.0, %v1037
  %v1039 = vrcp.pop %v934
  %v1040 = vmul.f32 1.0, %v1039
  %v1041 = vrcp.pop %v935
  %v1042 = vmul.f32 1.0, %v1041
  %v1043 = vrcp.pop %v936
  %v1044 = vmul.f32 1.0, %v1043
  %v1045 = vrcp.pop %v937
  %v1046 = vmul.f32 1.0, %v1045
  %v1047 = vrcp.pop %v938
  %v1048 = vmul.f32 1.0, %v1047
  %v1049 = vrcp.pop %v939
  %v1050 = vmul.f32 1.0, %v1049
  %v1051 = vrcp.pop %v940
  %v1052 = vmul.f32 1.0, %v1051
  %v1053 = vrcp.pop %v941
  %v1054 = vmul.f32 1.0, %v1053
  %v1055 = vrcp.pop %v942
  %v1056 = vmul.f32 1.0, %v1055
  %v1057 = vrcp.pop %v943
  %v1058 = vmul.f32 1.0, %v1057
  %v1059 = vrcp.pop %v944
  %v1060 = vmul.f32 1.0, %v1059
  %v1061 = vrcp.pop %v945
  %v1062 = vmul.f32 1.0, %v1061
  %v1063 = vrcp.pop %v946
  %v1064 = vmul.f32 1.0, %v1063
  %v1065 = vrcp.pop %v947
  %v1066 = vmul.f32 1.0, %v1065
  %v1067 = vrcp.pop %v948
  %v1068 = vmul.f32 1.0, %v1067
  %v1069 = vrcp.pop %v949
  %v1070 = vmul.f32 1.0, %v1069
  %v1071 = vrcp.pop %v950
  %v1072 = vmul.f32 1.0, %v1071
  %v1073 = vrcp.pop %v951
  %v1074 = vmul.f32 1.0, %v1073
  %v1075 = vrcp.pop %v952
  %v1076 = vmul.f32 1.0, %v1075
  %v1077 = vrcp.pop %v953
  %v1078 = vmul.f32 1.0, %v1077
  %v1079 = vrcp.pop %v954
  %v1080 = vmul.f32 1.0, %v1079
  %v1081 = vrcp.pop %v955
  %v1082 = vmul.f32 1.0, %v1081
  %v1083 = vrcp.pop %v956
  %v1084 = vmul.f32 1.0, %v1083
  %s1085 = smul.u32 0, 512
  %v1086 = vlaneseq
  %v1087 = vshrl.u32 %v1086, 7
  %v1088 = vadd.s32 %v1087, 8
  %v1089 = vadd.s32 %v1087, 16
  %v1090 = vadd.s32 %v1087, 24
  %v1091 = vadd.s32 %v1087, 32
  %v1092 = vadd.s32 %v1087, 40
  %v1093 = vadd.s32 %v1087, 48
  %v1094 = vadd.s32 %v1087, 56
  %v1095 = vadd.s32 %v1087, 64
  %v1096 = vadd.s32 %v1087, 72
  %v1097 = vadd.s32 %v1087, 80
  %v1098 = vadd.s32 %v1087, 88
  %v1099 = vadd.s32 %v1087, 96
  %v1100 = vadd.s32 %v1087, 104
  %v1101 = vadd.s32 %v1087, 112
  %v1102 = vadd.s32 %v1087, 120
  %v1103 = vadd.s32 %v1087, 128
  %v1104 = vadd.s32 %v1087, 136
  %v1105 = vadd.s32 %v1087, 144
  %v1106 = vadd.s32 %v1087, 152
  %v1107 = vadd.s32 %v1087, 160
  %v1108 = vadd.s32 %v1087, 168
  %v1109 = vadd.s32 %v1087, 176
  %v1110 = vadd.s32 %v1087, 184
  %v1111 = vadd.s32 %v1087, 192
  %v1112 = vadd.s32 %v1087, 200
  %v1113 = vadd.s32 %v1087, 208
  %v1114 = vadd.s32 %v1087, 216
  %v1115 = vadd.s32 %v1087, 224
  %v1116 = vadd.s32 %v1087, 232
  %v1117 = vadd.s32 %v1087, 240
  %v1118 = vadd.s32 %v1087, 248
  %v1119 = vadd.s32 %v1087, 256
  %v1120 = vadd.s32 %v1087, 264
  %v1121 = vadd.s32 %v1087, 272
  %v1122 = vadd.s32 %v1087, 280
  %v1123 = vadd.s32 %v1087, 288
  %v1124 = vadd.s32 %v1087, 296
  %v1125 = vadd.s32 %v1087, 304
  %v1126 = vadd.s32 %v1087, 312
  %v1127 = vadd.s32 %v1087, 320
  %v1128 = vadd.s32 %v1087, 328
  %v1129 = vadd.s32 %v1087, 336
  %v1130 = vadd.s32 %v1087, 344
  %v1131 = vadd.s32 %v1087, 352
  %v1132 = vadd.s32 %v1087, 360
  %v1133 = vadd.s32 %v1087, 368
  %v1134 = vadd.s32 %v1087, 376
  %v1135 = vadd.s32 %v1087, 384
  %v1136 = vadd.s32 %v1087, 392
  %v1137 = vadd.s32 %v1087, 400
  %v1138 = vadd.s32 %v1087, 408
  %v1139 = vadd.s32 %v1087, 416
  %v1140 = vadd.s32 %v1087, 424
  %v1141 = vadd.s32 %v1087, 432
  %v1142 = vadd.s32 %v1087, 440
  %v1143 = vadd.s32 %v1087, 448
  %v1144 = vadd.s32 %v1087, 456
  %v1145 = vadd.s32 %v1087, 464
  %v1146 = vadd.s32 %v1087, 472
  %v1147 = vadd.s32 %v1087, 480
  %v1148 = vadd.s32 %v1087, 488
  %v1149 = vadd.s32 %v1087, 496
  %v1150 = vadd.s32 %v1087, 504
  %v1151 = vstv %s1085
  %v1152 = vadd.s32 %v1151, %v1087
  %v1153 = vadd.s32 %v1151, %v1088
  %v1154 = vadd.s32 %v1151, %v1089
  %v1155 = vadd.s32 %v1151, %v1090
  %v1156 = vadd.s32 %v1151, %v1091
  %v1157 = vadd.s32 %v1151, %v1092
  %v1158 = vadd.s32 %v1151, %v1093
  %v1159 = vadd.s32 %v1151, %v1094
  %v1160 = vadd.s32 %v1151, %v1095
  %v1161 = vadd.s32 %v1151, %v1096
  %v1162 = vadd.s32 %v1151, %v1097
  %v1163 = vadd.s32 %v1151, %v1098
  %v1164 = vadd.s32 %v1151, %v1099
  %v1165 = vadd.s32 %v1151, %v1100
  %v1166 = vadd.s32 %v1151, %v1101
  %v1167 = vadd.s32 %v1151, %v1102
  %v1168 = vadd.s32 %v1151, %v1103
  %v1169 = vadd.s32 %v1151, %v1104
  %v1170 = vadd.s32 %v1151, %v1105
  %v1171 = vadd.s32 %v1151, %v1106
  %v1172 = vadd.s32 %v1151, %v1107
  %v1173 = vadd.s32 %v1151, %v1108
  %v1174 = vadd.s32 %v1151, %v1109
  %v1175 = vadd.s32 %v1151, %v1110
  %v1176 = vadd.s32 %v1151, %v1111
  %v1177 = vadd.s32 %v1151, %v1112
  %v1178 = vadd.s32 %v1151, %v1113
  %v1179 = vadd.s32 %v1151, %v1114
  %v1180 = vadd.s32 %v1151, %v1115
  %v1181 = vadd.s32 %v1151, %v1116
  %v1182 = vadd.s32 %v1151, %v1117
  %v1183 = vadd.s32 %v1151, %v1118
  %v1184 = vadd.s32 %v1151, %v1119
  %v1185 = vadd.s32 %v1151, %v1120
  %v1186 = vadd.s32 %v1151, %v1121
  %v1187 = vadd.s32 %v1151, %v1122
  %v1188 = vadd.s32 %v1151, %v1123
  %v1189 = vadd.s32 %v1151, %v1124
  %v1190 = vadd.s32 %v1151, %v1125
  %v1191 = vadd.s32 %v1151, %v1126
  %v1192 = vadd.s32 %v1151, %v1127
  %v1193 = vadd.s32 %v1151, %v1128
  %v1194 = vadd.s32 %v1151, %v1129
  %v1195 = vadd.s32 %v1151, %v1130
  %v1196 = vadd.s32 %v1151, %v1131
  %v1197 = vadd.s32 %v1151, %v1132
  %v1198 = vadd.s32 %v1151, %v1133
  %v1199 = vadd.s32 %v1151, %v1134
  %v1200 = vadd.s32 %v1151, %v1135
  %v1201 = vadd.s32 %v1151, %v1136
  %v1202 = vadd.s32 %v1151, %v1137
  %v1203 = vadd.s32 %v1151, %v1138
  %v1204 = vadd.s32 %v1151, %v1139
  %v1205 = vadd.s32 %v1151, %v1140
  %v1206 = vadd.s32 %v1151, %v1141
  %v1207 = vadd.s32 %v1151, %v1142
  %v1208 = vadd.s32 %v1151, %v1143
  %v1209 = vadd.s32 %v1151, %v1144
  %v1210 = vadd.s32 %v1151, %v1145
  %v1211 = vadd.s32 %v1151, %v1146
  %v1212 = vadd.s32 %v1151, %v1147
  %v1213 = vadd.s32 %v1151, %v1148
  %v1214 = vadd.s32 %v1151, %v1149
  %v1215 = vadd.s32 %v1151, %v1150
  %v1216 = vcvt.s32.f32 %v1152
  %v1217 = vcvt.s32.f32 %v1153
  %v1218 = vcvt.s32.f32 %v1154
  %v1219 = vcvt.s32.f32 %v1155
  %v1220 = vcvt.s32.f32 %v1156
  %v1221 = vcvt.s32.f32 %v1157
  %v1222 = vcvt.s32.f32 %v1158
  %v1223 = vcvt.s32.f32 %v1159
  %v1224 = vcvt.s32.f32 %v1160
  %v1225 = vcvt.s32.f32 %v1161
  %v1226 = vcvt.s32.f32 %v1162
  %v1227 = vcvt.s32.f32 %v1163
  %v1228 = vcvt.s32.f32 %v1164
  %v1229 = vcvt.s32.f32 %v1165
  %v1230 = vcvt.s32.f32 %v1166
  %v1231 = vcvt.s32.f32 %v1167
  %v1232 = vcvt.s32.f32 %v1168
  %v1233 = vcvt.s32.f32 %v1169
  %v1234 = vcvt.s32.f32 %v1170
  %v1235 = vcvt.s32.f32 %v1171
  %v1236 = vcvt.s32.f32 %v1172
  %v1237 = vcvt.s32.f32 %v1173
  %v1238 = vcvt.s32.f32 %v1174
  %v1239 = vcvt.s32.f32 %v1175
  %v1240 = vcvt.s32.f32 %v1176
  %v1241 = vcvt.s32.f32 %v1177
  %v1242 = vcvt.s32.f32 %v1178
  %v1243 = vcvt.s32.f32 %v1179
  %v1244 = vcvt.s32.f32 %v1180
  %v1245 = vcvt.s32.f32 %v1181
  %v1246 = vcvt.s32.f32 %v1182
  %v1247 = vcvt.s32.f32 %v1183
  %v1248 = vcvt.s32.f32 %v1184
  %v1249 = vcvt.s32.f32 %v1185
  %v1250 = vcvt.s32.f32 %v1186
  %v1251 = vcvt.s32.f32 %v1187
  %v1252 = vcvt.s32.f32 %v1188
  %v1253 = vcvt.s32.f32 %v1189
  %v1254 = vcvt.s32.f32 %v1190
  %v1255 = vcvt.s32.f32 %v1191
  %v1256 = vcvt.s32.f32 %v1192
  %v1257 = vcvt.s32.f32 %v1193
  %v1258 = vcvt.s32.f32 %v1194
  %v1259 = vcvt.s32.f32 %v1195
  %v1260 = vcvt.s32.f32 %v1196
  %v1261 = vcvt.s32.f32 %v1197
  %v1262 = vcvt.s32.f32 %v1198
  %v1263 = vcvt.s32.f32 %v1199
  %v1264 = vcvt.s32.f32 %v1200
  %v1265 = vcvt.s32.f32 %v1201
  %v1266 = vcvt.s32.f32 %v1202
  %v1267 = vcvt.s32.f32 %v1203
  %v1268 = vcvt.s32.f32 %v1204
  %v1269 = vcvt.s32.f32 %v1205
  %v1270 = vcvt.s32.f32 %v1206
  %v1271 = vcvt.s32.f32 %v1207
  %v1272 = vcvt.s32.f32 %v1208
  %v1273 = vcvt.s32.f32 %v1209
  %v1274 = vcvt.s32.f32 %v1210
  %v1275 = vcvt.s32.f32 %v1211
  %v1276 = vcvt.s32.f32 %v1212
  %v1277 = vcvt.s32.f32 %v1213
  %v1278 = vcvt.s32.f32 %v1214
  %v1279 = vcvt.s32.f32 %v1215
  %v1280 = vadd.f32 %v1216, 0.5
  %v1281 = vadd.f32 %v1217, 0.5
  %v1282 = vadd.f32 %v1218, 0.5
  %v1283 = vadd.f32 %v1219, 0.5
  %v1284 = vadd.f32 %v1220, 0.5
  %v1285 = vadd.f32 %v1221, 0.5
  %v1286 = vadd.f32 %v1222, 0.5
  %v1287 = vadd.f32 %v1223, 0.5
  %v1288 = vadd.f32 %v1224, 0.5
  %v1289 = vadd.f32 %v1225, 0.5
  %v1290 = vadd.f32 %v1226, 0.5
  %v1291 = vadd.f32 %v1227, 0.5
  %v1292 = vadd.f32 %v1228, 0.5
  %v1293 = vadd.f32 %v1229, 0.5
  %v1294 = vadd.f32 %v1230, 0.5
  %v1295 = vadd.f32 %v1231, 0.5
  %v1296 = vadd.f32 %v1232, 0.5
  %v1297 = vadd.f32 %v1233, 0.5
  %v1298 = vadd.f32 %v1234, 0.5
  %v1299 = vadd.f32 %v1235, 0.5
  %v1300 = vadd.f32 %v1236, 0.5
  %v1301 = vadd.f32 %v1237, 0.5
  %v1302 = vadd.f32 %v1238, 0.5
  %v1303 = vadd.f32 %v1239, 0.5
  %v1304 = vadd.f32 %v1240, 0.5
  %v1305 = vadd.f32 %v1241, 0.5
  %v1306 = vadd.f32 %v1242, 0.5
  %v1307 = vadd.f32 %v1243, 0.5
  %v1308 = vadd.f32 %v1244, 0.5
  %v1309 = vadd.f32 %v1245, 0.5
  %v1310 = vadd.f32 %v1246, 0.5
  %v1311 = vadd.f32 %v1247, 0.5
  %v1312 = vadd.f32 %v1248, 0.5
  %v1313 = vadd.f32 %v1249, 0.5
  %v1314 = vadd.f32 %v1250, 0.5
  %v1315 = vadd.f32 %v1251, 0.5
  %v1316 = vadd.f32 %v1252, 0.5
  %v1317 = vadd.f32 %v1253, 0.5
  %v1318 = vadd.f32 %v1254, 0.5
  %v1319 = vadd.f32 %v1255, 0.5
  %v1320 = vadd.f32 %v1256, 0.5
  %v1321 = vadd.f32 %v1257, 0.5
  %v1322 = vadd.f32 %v1258, 0.5
  %v1323 = vadd.f32 %v1259, 0.5
  %v1324 = vadd.f32 %v1260, 0.5
  %v1325 = vadd.f32 %v1261, 0.5
  %v1326 = vadd.f32 %v1262, 0.5
  %v1327 = vadd.f32 %v1263, 0.5
  %v1328 = vadd.f32 %v1264, 0.5
  %v1329 = vadd.f32 %v1265, 0.5
  %v1330 = vadd.f32 %v1266, 0.5
  %v1331 = vadd.f32 %v1267, 0.5
  %v1332 = vadd.f32 %v1268, 0.5
  %v1333 = vadd.f32 %v1269, 0.5
  %v1334 = vadd.f32 %v1270, 0.5
  %v1335 = vadd.f32 %v1271, 0.5
  %v1336 = vadd.f32 %v1272, 0.5
  %v1337 = vadd.f32 %v1273, 0.5
  %v1338 = vadd.f32 %v1274, 0.5
  %v1339 = vadd.f32 %v1275, 0.5
  %v1340 = vadd.f32 %v1276, 0.5
  %v1341 = vadd.f32 %v1277, 0.5
  %v1342 = vadd.f32 %v1278, 0.5
  %v1343 = vadd.f32 %v1279, 0.5
  %v1344 = vmul.f32 %v1280, 0.0625
  %v1345 = vmul.f32 %v1281, 0.0625
  %v1346 = vmul.f32 %v1282, 0.0625
  %v1347 = vmul.f32 %v1283, 0.0625
  %v1348 = vmul.f32 %v1284, 0.0625
  %v1349 = vmul.f32 %v1285, 0.0625
  %v1350 = vmul.f32 %v1286, 0.0625
  %v1351 = vmul.f32 %v1287, 0.0625
  %v1352 = vmul.f32 %v1288, 0.0625
  %v1353 = vmul.f32 %v1289, 0.0625
  %v1354 = vmul.f32 %v1290, 0.0625
  %v1355 = vmul.f32 %v1291, 0.0625
  %v1356 = vmul.f32 %v1292, 0.0625
  %v1357 = vmul.f32 %v1293, 0.0625
  %v1358 = vmul.f32 %v1294, 0.0625
  %v1359 = vmul.f32 %v1295, 0.0625
  %v1360 = vmul.f32 %v1296, 0.0625
  %v1361 = vmul.f32 %v1297, 0.0625
  %v1362 = vmul.f32 %v1298, 0.0625
  %v1363 = vmul.f32 %v1299, 0.0625
  %v1364 = vmul.f32 %v1300, 0.0625
  %v1365 = vmul.f32 %v1301, 0.0625
  %v1366 = vmul.f32 %v1302, 0.0625
  %v1367 = vmul.f32 %v1303, 0.0625
  %v1368 = vmul.f32 %v1304, 0.0625
  %v1369 = vmul.f32 %v1305, 0.0625
  %v1370 = vmul.f32 %v1306, 0.0625
  %v1371 = vmul.f32 %v1307, 0.0625
  %v1372 = vmul.f32 %v1308, 0.0625
  %v1373 = vmul.f32 %v1309, 0.0625
  %v1374 = vmul.f32 %v1310, 0.0625
  %v1375 = vmul.f32 %v1311, 0.0625
  %v1376 = vmul.f32 %v1312, 0.0625
  %v1377 = vmul.f32 %v1313, 0.0625
  %v1378 = vmul.f32 %v1314, 0.0625
  %v1379 = vmul.f32 %v1315, 0.0625
  %v1380 = vmul.f32 %v1316, 0.0625
  %v1381 = vmul.f32 %v1317, 0.0625
  %v1382 = vmul.f32 %v1318, 0.0625
  %v1383 = vmul.f32 %v1319, 0.0625
  %v1384 = vmul.f32 %v1320, 0.0625
  %v1385 = vmul.f32 %v1321, 0.0625
  %v1386 = vmul.f32 %v1322, 0.0625
  %v1387 = vmul.f32 %v1323, 0.0625
  %v1388 = vmul.f32 %v1324, 0.0625
  %v1389 = vmul.f32 %v1325, 0.0625
  %v1390 = vmul.f32 %v1326, 0.0625
  %v1391 = vmul.f32 %v1327, 0.0625
  %v1392 = vmul.f32 %v1328, 0.0625
  %v1393 = vmul.f32 %v1329, 0.0625
  %v1394 = vmul.f32 %v1330, 0.0625
  %v1395 = vmul.f32 %v1331, 0.0625
  %v1396 = vmul.f32 %v1332, 0.0625
  %v1397 = vmul.f32 %v1333, 0.0625
  %v1398 = vmul.f32 %v1334, 0.0625
  %v1399 = vmul.f32 %v1335, 0.0625
  %v1400 = vmul.f32 %v1336, 0.0625
  %v1401 = vmul.f32 %v1337, 0.0625
  %v1402 = vmul.f32 %v1338, 0.0625
  %v1403 = vmul.f32 %v1339, 0.0625
  %v1404 = vmul.f32 %v1340, 0.0625
  %v1405 = vmul.f32 %v1341, 0.0625
  %v1406 = vmul.f32 %v1342, 0.0625
  %v1407 = vmul.f32 %v1343, 0.0625
  %v1408 = vfloor.f32 %v1344
  %v1409 = vfloor.f32 %v1345
  %v1410 = vfloor.f32 %v1346
  %v1411 = vfloor.f32 %v1347
  %v1412 = vfloor.f32 %v1348
  %v1413 = vfloor.f32 %v1349
  %v1414 = vfloor.f32 %v1350
  %v1415 = vfloor.f32 %v1351
  %v1416 = vfloor.f32 %v1352
  %v1417 = vfloor.f32 %v1353
  %v1418 = vfloor.f32 %v1354
  %v1419 = vfloor.f32 %v1355
  %v1420 = vfloor.f32 %v1356
  %v1421 = vfloor.f32 %v1357
  %v1422 = vfloor.f32 %v1358
  %v1423 = vfloor.f32 %v1359
  %v1424 = vfloor.f32 %v1360
  %v1425 = vfloor.f32 %v1361
  %v1426 = vfloor.f32 %v1362
  %v1427 = vfloor.f32 %v1363
  %v1428 = vfloor.f32 %v1364
  %v1429 = vfloor.f32 %v1365
  %v1430 = vfloor.f32 %v1366
  %v1431 = vfloor.f32 %v1367
  %v1432 = vfloor.f32 %v1368
  %v1433 = vfloor.f32 %v1369
  %v1434 = vfloor.f32 %v1370
  %v1435 = vfloor.f32 %v1371
  %v1436 = vfloor.f32 %v1372
  %v1437 = vfloor.f32 %v1373
  %v1438 = vfloor.f32 %v1374
  %v1439 = vfloor.f32 %v1375
  %v1440 = vfloor.f32 %v1376
  %v1441 = vfloor.f32 %v1377
  %v1442 = vfloor.f32 %v1378
  %v1443 = vfloor.f32 %v1379
  %v1444 = vfloor.f32 %v1380
  %v1445 = vfloor.f32 %v1381
  %v1446 = vfloor.f32 %v1382
  %v1447 = vfloor.f32 %v1383
  %v1448 = vfloor.f32 %v1384
  %v1449 = vfloor.f32 %v1385
  %v1450 = vfloor.f32 %v1386
  %v1451 = vfloor.f32 %v1387
  %v1452 = vfloor.f32 %v1388
  %v1453 = vfloor.f32 %v1389
  %v1454 = vfloor.f32 %v1390
  %v1455 = vfloor.f32 %v1391
  %v1456 = vfloor.f32 %v1392
  %v1457 = vfloor.f32 %v1393
  %v1458 = vfloor.f32 %v1394
  %v1459 = vfloor.f32 %v1395
  %v1460 = vfloor.f32 %v1396
  %v1461 = vfloor.f32 %v1397
  %v1462 = vfloor.f32 %v1398
  %v1463 = vfloor.f32 %v1399
  %v1464 = vfloor.f32 %v1400
  %v1465 = vfloor.f32 %v1401
  %v1466 = vfloor.f32 %v1402
  %v1467 = vfloor.f32 %v1403
  %v1468 = vfloor.f32 %v1404
  %v1469 = vfloor.f32 %v1405
  %v1470 = vfloor.f32 %v1406
  %v1471 = vfloor.f32 %v1407
  %v1472 = vmul.f32 %v1408, 16.0
  %v1473 = vmul.f32 %v1409, 16.0
  %v1474 = vmul.f32 %v1410, 16.0
  %v1475 = vmul.f32 %v1411, 16.0
  %v1476 = vmul.f32 %v1412, 16.0
  %v1477 = vmul.f32 %v1413, 16.0
  %v1478 = vmul.f32 %v1414, 16.0
  %v1479 = vmul.f32 %v1415, 16.0
  %v1480 = vmul.f32 %v1416, 16.0
  %v1481 = vmul.f32 %v1417, 16.0
  %v1482 = vmul.f32 %v1418, 16.0
  %v1483 = vmul.f32 %v1419, 16.0
  %v1484 = vmul.f32 %v1420, 16.0
  %v1485 = vmul.f32 %v1421, 16.0
  %v1486 = vmul.f32 %v1422, 16.0
  %v1487 = vmul.f32 %v1423, 16.0
  %v1488 = vmul.f32 %v1424, 16.0
  %v1489 = vmul.f32 %v1425, 16.0
  %v1490 = vmul.f32 %v1426, 16.0
  %v1491 = vmul.f32 %v1427, 16.0
  %v1492 = vmul.f32 %v1428, 16.0
  %v1493 = vmul.f32 %v1429, 16.0
  %v1494 = vmul.f32 %v1430, 16.0
  %v1495 = vmul.f32 %v1431, 16.0
  %v1496 = vmul.f32 %v1432, 16.0
  %v1497 = vmul.f32 %v1433, 16.0
  %v1498 = vmul.f32 %v1434, 16.0
  %v1499 = vmul.f32 %v1435, 16.0
  %v1500 = vmul.f32 %v1436, 16.0
  %v1501 = vmul.f32 %v1437, 16.0
  %v1502 = vmul.f32 %v1438, 16.0
  %v1503 = vmul.f32 %v1439, 16.0
  %v1504 = vmul.f32 %v1440, 16.0
  %v1505 = vmul.f32 %v1441, 16.0
  %v1506 = vmul.f32 %v1442, 16.0
  %v1507 = vmul.f32 %v1443, 16.0
  %v1508 = vmul.f32 %v1444, 16.0
  %v1509 = vmul.f32 %v1445, 16.0
  %v1510 = vmul.f32 %v1446, 16.0
  %v1511 = vmul.f32 %v1447, 16.0
  %v1512 = vmul.f32 %v1448, 16.0
  %v1513 = vmul.f32 %v1449, 16.0
  %v1514 = vmul.f32 %v1450, 16.0
  %v1515 = vmul.f32 %v1451, 16.0
  %v1516 = vmul.f32 %v1452, 16.0
  %v1517 = vmul.f32 %v1453, 16.0
  %v1518 = vmul.f32 %v1454, 16.0
  %v1519 = vmul.f32 %v1455, 16.0
  %v1520 = vmul.f32 %v1456, 16.0
  %v1521 = vmul.f32 %v1457, 16.0
  %v1522 = vmul.f32 %v1458, 16.0
  %v1523 = vmul.f32 %v1459, 16.0
  %v1524 = vmul.f32 %v1460, 16.0
  %v1525 = vmul.f32 %v1461, 16.0
  %v1526 = vmul.f32 %v1462, 16.0
  %v1527 = vmul.f32 %v1463, 16.0
  %v1528 = vmul.f32 %v1464, 16.0
  %v1529 = vmul.f32 %v1465, 16.0
  %v1530 = vmul.f32 %v1466, 16.0
  %v1531 = vmul.f32 %v1467, 16.0
  %v1532 = vmul.f32 %v1468, 16.0
  %v1533 = vmul.f32 %v1469, 16.0
  %v1534 = vmul.f32 %v1470, 16.0
  %v1535 = vmul.f32 %v1471, 16.0
  %v1536 = vsub.f32 %v1216, %v1472
  %v1537 = vsub.f32 %v1217, %v1473
  %v1538 = vsub.f32 %v1218, %v1474
  %v1539 = vsub.f32 %v1219, %v1475
  %v1540 = vsub.f32 %v1220, %v1476
  %v1541 = vsub.f32 %v1221, %v1477
  %v1542 = vsub.f32 %v1222, %v1478
  %v1543 = vsub.f32 %v1223, %v1479
  %v1544 = vsub.f32 %v1224, %v1480
  %v1545 = vsub.f32 %v1225, %v1481
  %v1546 = vsub.f32 %v1226, %v1482
  %v1547 = vsub.f32 %v1227, %v1483
  %v1548 = vsub.f32 %v1228, %v1484
  %v1549 = vsub.f32 %v1229, %v1485
  %v1550 = vsub.f32 %v1230, %v1486
  %v1551 = vsub.f32 %v1231, %v1487
  %v1552 = vsub.f32 %v1232, %v1488
  %v1553 = vsub.f32 %v1233, %v1489
  %v1554 = vsub.f32 %v1234, %v1490
  %v1555 = vsub.f32 %v1235, %v1491
  %v1556 = vsub.f32 %v1236, %v1492
  %v1557 = vsub.f32 %v1237, %v1493
  %v1558 = vsub.f32 %v1238, %v1494
  %v1559 = vsub.f32 %v1239, %v1495
  %v1560 = vsub.f32 %v1240, %v1496
  %v1561 = vsub.f32 %v1241, %v1497
  %v1562 = vsub.f32 %v1242, %v1498
  %v1563 = vsub.f32 %v1243, %v1499
  %v1564 = vsub.f32 %v1244, %v1500
  %v1565 = vsub.f32 %v1245, %v1501
  %v1566 = vsub.f32 %v1246, %v1502
  %v1567 = vsub.f32 %v1247, %v1503
  %v1568 = vsub.f32 %v1248, %v1504
  %v1569 = vsub.f32 %v1249, %v1505
  %v1570 = vsub.f32 %v1250, %v1506
  %v1571 = vsub.f32 %v1251, %v1507
  %v1572 = vsub.f32 %v1252, %v1508
  %v1573 = vsub.f32 %v1253, %v1509
  %v1574 = vsub.f32 %v1254, %v1510
  %v1575 = vsub.f32 %v1255, %v1511
  %v1576 = vsub.f32 %v1256, %v1512
  %v1577 = vsub.f32 %v1257, %v1513
  %v1578 = vsub.f32 %v1258, %v1514
  %v1579 = vsub.f32 %v1259, %v1515
  %v1580 = vsub.f32 %v1260, %v1516
  %v1581 = vsub.f32 %v1261, %v1517
  %v1582 = vsub.f32 %v1262, %v1518
  %v1583 = vsub.f32 %v1263, %v1519
  %v1584 = vsub.f32 %v1264, %v1520
  %v1585 = vsub.f32 %v1265, %v1521
  %v1586 = vsub.f32 %v1266, %v1522
  %v1587 = vsub.f32 %v1267, %v1523
  %v1588 = vsub.f32 %v1268, %v1524
  %v1589 = vsub.f32 %v1269, %v1525
  %v1590 = vsub.f32 %v1270, %v1526
  %v1591 = vsub.f32 %v1271, %v1527
  %v1592 = vsub.f32 %v1272, %v1528
  %v1593 = vsub.f32 %v1273, %v1529
  %v1594 = vsub.f32 %v1274, %v1530
  %v1595 = vsub.f32 %v1275, %v1531
  %v1596 = vsub.f32 %v1276, %v1532
  %v1597 = vsub.f32 %v1277, %v1533
  %v1598 = vsub.f32 %v1278, %v1534
  %v1599 = vsub.f32 %v1279, %v1535
  %v1600 = vadd.f32 %v1408, 0.5
  %v1601 = vadd.f32 %v1409, 0.5
  %v1602 = vadd.f32 %v1410, 0.5
  %v1603 = vadd.f32 %v1411, 0.5
  %v1604 = vadd.f32 %v1412, 0.5
  %v1605 = vadd.f32 %v1413, 0.5
  %v1606 = vadd.f32 %v1414, 0.5
  %v1607 = vadd.f32 %v1415, 0.5
  %v1608 = vadd.f32 %v1416, 0.5
  %v1609 = vadd.f32 %v1417, 0.5
  %v1610 = vadd.f32 %v1418, 0.5
  %v1611 = vadd.f32 %v1419, 0.5
  %v1612 = vadd.f32 %v1420, 0.5
  %v1613 = vadd.f32 %v1421, 0.5
  %v1614 = vadd.f32 %v1422, 0.5
  %v1615 = vadd.f32 %v1423, 0.5
  %v1616 = vadd.f32 %v1424, 0.5
  %v1617 = vadd.f32 %v1425, 0.5
  %v1618 = vadd.f32 %v1426, 0.5
  %v1619 = vadd.f32 %v1427, 0.5
  %v1620 = vadd.f32 %v1428, 0.5
  %v1621 = vadd.f32 %v1429, 0.5
  %v1622 = vadd.f32 %v1430, 0.5
  %v1623 = vadd.f32 %v1431, 0.5
  %v1624 = vadd.f32 %v1432, 0.5
  %v1625 = vadd.f32 %v1433, 0.5
  %v1626 = vadd.f32 %v1434, 0.5
  %v1627 = vadd.f32 %v1435, 0.5
  %v1628 = vadd.f32 %v1436, 0.5
  %v1629 = vadd.f32 %v1437, 0.5
  %v1630 = vadd.f32 %v1438, 0.5
  %v1631 = vadd.f32 %v1439, 0.5
  %v1632 = vadd.f32 %v1440, 0.5
  %v1633 = vadd.f32 %v1441, 0.5
  %v1634 = vadd.f32 %v1442, 0.5
  %v1635 = vadd.f32 %v1443, 0.5
  %v1636 = vadd.f32 %v1444, 0.5
  %v1637 = vadd.f32 %v1445, 0.5
  %v1638 = vadd.f32 %v1446, 0.5
  %v1639 = vadd.f32 %v1447, 0.5
  %v1640 = vadd.f32 %v1448, 0.5
  %v1641 = vadd.f32 %v1449, 0.5
  %v1642 = vadd.f32 %v1450, 0.5
  %v1643 = vadd.f32 %v1451, 0.5
  %v1644 = vadd.f32 %v1452, 0.5
  %v1645 = vadd.f32 %v1453, 0.5
  %v1646 = vadd.f32 %v1454, 0.5
  %v1647 = vadd.f32 %v1455, 0.5
  %v1648 = vadd.f32 %v1456, 0.5
  %v1649 = vadd.f32 %v1457, 0.5
  %v1650 = vadd.f32 %v1458, 0.5
  %v1651 = vadd.f32 %v1459, 0.5
  %v1652 = vadd.f32 %v1460, 0.5
  %v1653 = vadd.f32 %v1461, 0.5
  %v1654 = vadd.f32 %v1462, 0.5
  %v1655 = vadd.f32 %v1463, 0.5
  %v1656 = vadd.f32 %v1464, 0.5
  %v1657 = vadd.f32 %v1465, 0.5
  %v1658 = vadd.f32 %v1466, 0.5
  %v1659 = vadd.f32 %v1467, 0.5
  %v1660 = vadd.f32 %v1468, 0.5
  %v1661 = vadd.f32 %v1469, 0.5
  %v1662 = vadd.f32 %v1470, 0.5
  %v1663 = vadd.f32 %v1471, 0.5
  %v1664 = vmul.f32 %v1600, 0.0625
  %v1665 = vmul.f32 %v1601, 0.0625
  %v1666 = vmul.f32 %v1602, 0.0625
  %v1667 = vmul.f32 %v1603, 0.0625
  %v1668 = vmul.f32 %v1604, 0.0625
  %v1669 = vmul.f32 %v1605, 0.0625
  %v1670 = vmul.f32 %v1606, 0.0625
  %v1671 = vmul.f32 %v1607, 0.0625
  %v1672 = vmul.f32 %v1608, 0.0625
  %v1673 = vmul.f32 %v1609, 0.0625
  %v1674 = vmul.f32 %v1610, 0.0625
  %v1675 = vmul.f32 %v1611, 0.0625
  %v1676 = vmul.f32 %v1612, 0.0625
  %v1677 = vmul.f32 %v1613, 0.0625
  %v1678 = vmul.f32 %v1614, 0.0625
  %v1679 = vmul.f32 %v1615, 0.0625
  %v1680 = vmul.f32 %v1616, 0.0625
  %v1681 = vmul.f32 %v1617, 0.0625
  %v1682 = vmul.f32 %v1618, 0.0625
  %v1683 = vmul.f32 %v1619, 0.0625
  %v1684 = vmul.f32 %v1620, 0.0625
  %v1685 = vmul.f32 %v1621, 0.0625
  %v1686 = vmul.f32 %v1622, 0.0625
  %v1687 = vmul.f32 %v1623, 0.0625
  %v1688 = vmul.f32 %v1624, 0.0625
  %v1689 = vmul.f32 %v1625, 0.0625
  %v1690 = vmul.f32 %v1626, 0.0625
  %v1691 = vmul.f32 %v1627, 0.0625
  %v1692 = vmul.f32 %v1628, 0.0625
  %v1693 = vmul.f32 %v1629, 0.0625
  %v1694 = vmul.f32 %v1630, 0.0625
  %v1695 = vmul.f32 %v1631, 0.0625
  %v1696 = vmul.f32 %v1632, 0.0625
  %v1697 = vmul.f32 %v1633, 0.0625
  %v1698 = vmul.f32 %v1634, 0.0625
  %v1699 = vmul.f32 %v1635, 0.0625
  %v1700 = vmul.f32 %v1636, 0.0625
  %v1701 = vmul.f32 %v1637, 0.0625
  %v1702 = vmul.f32 %v1638, 0.0625
  %v1703 = vmul.f32 %v1639, 0.0625
  %v1704 = vmul.f32 %v1640, 0.0625
  %v1705 = vmul.f32 %v1641, 0.0625
  %v1706 = vmul.f32 %v1642, 0.0625
  %v1707 = vmul.f32 %v1643, 0.0625
  %v1708 = vmul.f32 %v1644, 0.0625
  %v1709 = vmul.f32 %v1645, 0.0625
  %v1710 = vmul.f32 %v1646, 0.0625
  %v1711 = vmul.f32 %v1647, 0.0625
  %v1712 = vmul.f32 %v1648, 0.0625
  %v1713 = vmul.f32 %v1649, 0.0625
  %v1714 = vmul.f32 %v1650, 0.0625
  %v1715 = vmul.f32 %v1651, 0.0625
  %v1716 = vmul.f32 %v1652, 0.0625
  %v1717 = vmul.f32 %v1653, 0.0625
  %v1718 = vmul.f32 %v1654, 0.0625
  %v1719 = vmul.f32 %v1655, 0.0625
  %v1720 = vmul.f32 %v1656, 0.0625
  %v1721 = vmul.f32 %v1657, 0.0625
  %v1722 = vmul.f32 %v1658, 0.0625
  %v1723 = vmul.f32 %v1659, 0.0625
  %v1724 = vmul.f32 %v1660, 0.0625
  %v1725 = vmul.f32 %v1661, 0.0625
  %v1726 = vmul.f32 %v1662, 0.0625
  %v1727 = vmul.f32 %v1663, 0.0625
  %v1728 = vfloor.f32 %v1664
  %v1729 = vfloor.f32 %v1665
  %v1730 = vfloor.f32 %v1666
  %v1731 = vfloor.f32 %v1667
  %v1732 = vfloor.f32 %v1668
  %v1733 = vfloor.f32 %v1669
  %v1734 = vfloor.f32 %v1670
  %v1735 = vfloor.f32 %v1671
  %v1736 = vfloor.f32 %v1672
  %v1737 = vfloor.f32 %v1673
  %v1738 = vfloor.f32 %v1674
  %v1739 = vfloor.f32 %v1675
  %v1740 = vfloor.f32 %v1676
  %v1741 = vfloor.f32 %v1677
  %v1742 = vfloor.f32 %v1678
  %v1743 = vfloor.f32 %v1679
  %v1744 = vfloor.f32 %v1680
  %v1745 = vfloor.f32 %v1681
  %v1746 = vfloor.f32 %v1682
  %v1747 = vfloor.f32 %v1683
  %v1748 = vfloor.f32 %v1684
  %v1749 = vfloor.f32 %v1685
  %v1750 = vfloor.f32 %v1686
  %v1751 = vfloor.f32 %v1687
  %v1752 = vfloor.f32 %v1688
  %v1753 = vfloor.f32 %v1689
  %v1754 = vfloor.f32 %v1690
  %v1755 = vfloor.f32 %v1691
  %v1756 = vfloor.f32 %v1692
  %v1757 = vfloor.f32 %v1693
  %v1758 = vfloor.f32 %v1694
  %v1759 = vfloor.f32 %v1695
  %v1760 = vfloor.f32 %v1696
  %v1761 = vfloor.f32 %v1697
  %v1762 = vfloor.f32 %v1698
  %v1763 = vfloor.f32 %v1699
  %v1764 = vfloor.f32 %v1700
  %v1765 = vfloor.f32 %v1701
  %v1766 = vfloor.f32 %v1702
  %v1767 = vfloor.f32 %v1703
  %v1768 = vfloor.f32 %v1704
  %v1769 = vfloor.f32 %v1705
  %v1770 = vfloor.f32 %v1706
  %v1771 = vfloor.f32 %v1707
  %v1772 = vfloor.f32 %v1708
  %v1773 = vfloor.f32 %v1709
  %v1774 = vfloor.f32 %v1710
  %v1775 = vfloor.f32 %v1711
  %v1776 = vfloor.f32 %v1712
  %v1777 = vfloor.f32 %v1713
  %v1778 = vfloor.f32 %v1714
  %v1779 = vfloor.f32 %v1715
  %v1780 = vfloor.f32 %v1716
  %v1781 = vfloor.f32 %v1717
  %v1782 = vfloor.f32 %v1718
  %v1783 = vfloor.f32 %v1719
  %v1784 = vfloor.f32 %v1720
  %v1785 = vfloor.f32 %v1721
  %v1786 = vfloor.f32 %v1722
  %v1787 = vfloor.f32 %v1723
  %v1788 = vfloor.f32 %v1724
  %v1789 = vfloor.f32 %v1725
  %v1790 = vfloor.f32 %v1726
  %v1791 = vfloor.f32 %v1727
  %v1792 = vmul.f32 %v1728, 16.0
  %v1793 = vmul.f32 %v1729, 16.0
  %v1794 = vmul.f32 %v1730, 16.0
  %v1795 = vmul.f32 %v1731, 16.0
  %v1796 = vmul.f32 %v1732, 16.0
  %v1797 = vmul.f32 %v1733, 16.0
  %v1798 = vmul.f32 %v1734, 16.0
  %v1799 = vmul.f32 %v1735, 16.0
  %v1800 = vmul.f32 %v1736, 16.0
  %v1801 = vmul.f32 %v1737, 16.0
  %v1802 = vmul.f32 %v1738, 16.0
  %v1803 = vmul.f32 %v1739, 16.0
  %v1804 = vmul.f32 %v1740, 16.0
  %v1805 = vmul.f32 %v1741, 16.0
  %v1806 = vmul.f32 %v1742, 16.0
  %v1807 = vmul.f32 %v1743, 16.0
  %v1808 = vmul.f32 %v1744, 16.0
  %v1809 = vmul.f32 %v1745, 16.0
  %v1810 = vmul.f32 %v1746, 16.0
  %v1811 = vmul.f32 %v1747, 16.0
  %v1812 = vmul.f32 %v1748, 16.0
  %v1813 = vmul.f32 %v1749, 16.0
  %v1814 = vmul.f32 %v1750, 16.0
  %v1815 = vmul.f32 %v1751, 16.0
  %v1816 = vmul.f32 %v1752, 16.0
  %v1817 = vmul.f32 %v1753, 16.0
  %v1818 = vmul.f32 %v1754, 16.0
  %v1819 = vmul.f32 %v1755, 16.0
  %v1820 = vmul.f32 %v1756, 16.0
  %v1821 = vmul.f32 %v1757, 16.0
  %v1822 = vmul.f32 %v1758, 16.0
  %v1823 = vmul.f32 %v1759, 16.0
  %v1824 = vmul.f32 %v1760, 16.0
  %v1825 = vmul.f32 %v1761, 16.0
  %v1826 = vmul.f32 %v1762, 16.0
  %v1827 = vmul.f32 %v1763, 16.0
  %v1828 = vmul.f32 %v1764, 16.0
  %v1829 = vmul.f32 %v1765, 16.0
  %v1830 = vmul.f32 %v1766, 16.0
  %v1831 = vmul.f32 %v1767, 16.0
  %v1832 = vmul.f32 %v1768, 16.0
  %v1833 = vmul.f32 %v1769, 16.0
  %v1834 = vmul.f32 %v1770, 16.0
  %v1835 = vmul.f32 %v1771, 16.0
  %v1836 = vmul.f32 %v1772, 16.0
  %v1837 = vmul.f32 %v1773, 16.0
  %v1838 = vmul.f32 %v1774, 16.0
  %v1839 = vmul.f32 %v1775, 16.0
  %v1840 = vmul.f32 %v1776, 16.0
  %v1841 = vmul.f32 %v1777, 16.0
  %v1842 = vmul.f32 %v1778, 16.0
  %v1843 = vmul.f32 %v1779, 16.0
  %v1844 = vmul.f32 %v1780, 16.0
  %v1845 = vmul.f32 %v1781, 16.0
  %v1846 = vmul.f32 %v1782, 16.0
  %v1847 = vmul.f32 %v1783, 16.0
  %v1848 = vmul.f32 %v1784, 16.0
  %v1849 = vmul.f32 %v1785, 16.0
  %v1850 = vmul.f32 %v1786, 16.0
  %v1851 = vmul.f32 %v1787, 16.0
  %v1852 = vmul.f32 %v1788, 16.0
  %v1853 = vmul.f32 %v1789, 16.0
  %v1854 = vmul.f32 %v1790, 16.0
  %v1855 = vmul.f32 %v1791, 16.0
  %v1856 = vsub.f32 %v1408, %v1792
  %v1857 = vsub.f32 %v1409, %v1793
  %v1858 = vsub.f32 %v1410, %v1794
  %v1859 = vsub.f32 %v1411, %v1795
  %v1860 = vsub.f32 %v1412, %v1796
  %v1861 = vsub.f32 %v1413, %v1797
  %v1862 = vsub.f32 %v1414, %v1798
  %v1863 = vsub.f32 %v1415, %v1799
  %v1864 = vsub.f32 %v1416, %v1800
  %v1865 = vsub.f32 %v1417, %v1801
  %v1866 = vsub.f32 %v1418, %v1802
  %v1867 = vsub.f32 %v1419, %v1803
  %v1868 = vsub.f32 %v1420, %v1804
  %v1869 = vsub.f32 %v1421, %v1805
  %v1870 = vsub.f32 %v1422, %v1806
  %v1871 = vsub.f32 %v1423, %v1807
  %v1872 = vsub.f32 %v1424, %v1808
  %v1873 = vsub.f32 %v1425, %v1809
  %v1874 = vsub.f32 %v1426, %v1810
  %v1875 = vsub.f32 %v1427, %v1811
  %v1876 = vsub.f32 %v1428, %v1812
  %v1877 = vsub.f32 %v1429, %v1813
  %v1878 = vsub.f32 %v1430, %v1814
  %v1879 = vsub.f32 %v1431, %v1815
  %v1880 = vsub.f32 %v1432, %v1816
  %v1881 = vsub.f32 %v1433, %v1817
  %v1882 = vsub.f32 %v1434, %v1818
  %v1883 = vsub.f32 %v1435, %v1819
  %v1884 = vsub.f32 %v1436, %v1820
  %v1885 = vsub.f32 %v1437, %v1821
  %v1886 = vsub.f32 %v1438, %v1822
  %v1887 = vsub.f32 %v1439, %v1823
  %v1888 = vsub.f32 %v1440, %v1824
  %v1889 = vsub.f32 %v1441, %v1825
  %v1890 = vsub.f32 %v1442, %v1826
  %v1891 = vsub.f32 %v1443, %v1827
  %v1892 = vsub.f32 %v1444, %v1828
  %v1893 = vsub.f32 %v1445, %v1829
  %v1894 = vsub.f32 %v1446, %v1830
  %v1895 = vsub.f32 %v1447, %v1831
  %v1896 = vsub.f32 %v1448, %v1832
  %v1897 = vsub.f32 %v1449, %v1833
  %v1898 = vsub.f32 %v1450, %v1834
  %v1899 = vsub.f32 %v1451, %v1835
  %v1900 = vsub.f32 %v1452, %v1836
  %v1901 = vsub.f32 %v1453, %v1837
  %v1902 = vsub.f32 %v1454, %v1838
  %v1903 = vsub.f32 %v1455, %v1839
  %v1904 = vsub.f32 %v1456, %v1840
  %v1905 = vsub.f32 %v1457, %v1841
  %v1906 = vsub.f32 %v1458, %v1842
  %v1907 = vsub.f32 %v1459, %v1843
  %v1908 = vsub.f32 %v1460, %v1844
  %v1909 = vsub.f32 %v1461, %v1845
  %v1910 = vsub.f32 %v1462, %v1846
  %v1911 = vsub.f32 %v1463, %v1847
  %v1912 = vsub.f32 %v1464, %v1848
  %v1913 = vsub.f32 %v1465, %v1849
  %v1914 = vsub.f32 %v1466, %v1850
  %v1915 = vsub.f32 %v1467, %v1851
  %v1916 = vsub.f32 %v1468, %v1852
  %v1917 = vsub.f32 %v1469, %v1853
  %v1918 = vsub.f32 %v1470, %v1854
  %v1919 = vsub.f32 %v1471, %v1855
  %v1920 = vld [vmem:[%s2 + $0x1] sm:$0x1]
  %v1921 = vlaneseq
  %v1922 = vshrl.u32 %v1921, 7
  %v1923 = vsub.s32 0, %v1922
  %v1924 = vrot.slane %v1920, %v1923
  %v1925 = vmul.f32 %v1924, %v958
  %v1926 = vmul.f32 %v1924, %v960
  %v1927 = vmul.f32 %v1924, %v962
  %v1928 = vmul.f32 %v1924, %v964
  %v1929 = vmul.f32 %v1924, %v966
  %v1930 = vmul.f32 %v1924, %v968
  %v1931 = vmul.f32 %v1924, %v970
  %v1932 = vmul.f32 %v1924, %v972
  %v1933 = vmul.f32 %v1924, %v974
  %v1934 = vmul.f32 %v1924, %v976
  %v1935 = vmul.f32 %v1924, %v978
  %v1936 = vmul.f32 %v1924, %v980
  %v1937 = vmul.f32 %v1924, %v982
  %v1938 = vmul.f32 %v1924, %v984
  %v1939 = vmul.f32 %v1924, %v986
  %v1940 = vmul.f32 %v1924, %v988
  %v1941 = vmul.f32 %v1924, %v990
  %v1942 = vmul.f32 %v1924, %v992
  %v1943 = vmul.f32 %v1924, %v994
  %v1944 = vmul.f32 %v1924, %v996
  %v1945 = vmul.f32 %v1924, %v998
  %v1946 = vmul.f32 %v1924, %v1000
  %v1947 = vmul.f32 %v1924, %v1002
  %v1948 = vmul.f32 %v1924, %v1004
  %v1949 = vmul.f32 %v1924, %v1006
  %v1950 = vmul.f32 %v1924, %v1008
  %v1951 = vmul.f32 %v1924, %v1010
  %v1952 = vmul.f32 %v1924, %v1012
  %v1953 = vmul.f32 %v1924, %v1014
  %v1954 = vmul.f32 %v1924, %v1016
  %v1955 = vmul.f32 %v1924, %v1018
  %v1956 = vmul.f32 %v1924, %v1020
  %v1957 = vmul.f32 %v1924, %v1022
  %v1958 = vmul.f32 %v1924, %v1024
  %v1959 = vmul.f32 %v1924, %v1026
  %v1960 = vmul.f32 %v1924, %v1028
  %v1961 = vmul.f32 %v1924, %v1030
  %v1962 = vmul.f32 %v1924, %v1032
  %v1963 = vmul.f32 %v1924, %v1034
  %v1964 = vmul.f32 %v1924, %v1036
  %v1965 = vmul.f32 %v1924, %v1038
  %v1966 = vmul.f32 %v1924, %v1040
  %v1967 = vmul.f32 %v1924, %v1042
  %v1968 = vmul.f32 %v1924, %v1044
  %v1969 = vmul.f32 %v1924, %v1046
  %v1970 = vmul.f32 %v1924, %v1048
  %v1971 = vmul.f32 %v1924, %v1050
  %v1972 = vmul.f32 %v1924, %v1052
  %v1973 = vmul.f32 %v1924, %v1054
  %v1974 = vmul.f32 %v1924, %v1056
  %v1975 = vmul.f32 %v1924, %v1058
  %v1976 = vmul.f32 %v1924, %v1060
  %v1977 = vmul.f32 %v1924, %v1062
  %v1978 = vmul.f32 %v1924, %v1064
  %v1979 = vmul.f32 %v1924, %v1066
  %v1980 = vmul.f32 %v1924, %v1068
  %v1981 = vmul.f32 %v1924, %v1070
  %v1982 = vmul.f32 %v1924, %v1072
  %v1983 = vmul.f32 %v1924, %v1074
  %v1984 = vmul.f32 %v1924, %v1076
  %v1985 = vmul.f32 %v1924, %v1078
  %v1986 = vmul.f32 %v1924, %v1080
  %v1987 = vmul.f32 %v1924, %v1082
  %v1988 = vmul.f32 %v1924, %v1084
  %v1989 = vld [vmem:[%s2 + $0x2] sm:$0x1]
  %v1990 = vlaneseq
  %v1991 = vshrl.u32 %v1990, 7
  %v1992 = vsub.s32 0, %v1991
  %v1993 = vrot.slane %v1989, %v1992
  %v1994 = vadd.f32 %v1925, %v1993
  %v1995 = vadd.f32 %v1926, %v1993
  %v1996 = vadd.f32 %v1927, %v1993
  %v1997 = vadd.f32 %v1928, %v1993
  %v1998 = vadd.f32 %v1929, %v1993
  %v1999 = vadd.f32 %v1930, %v1993
  %v2000 = vadd.f32 %v1931, %v1993
  %v2001 = vadd.f32 %v1932, %v1993
  %v2002 = vadd.f32 %v1933, %v1993
  %v2003 = vadd.f32 %v1934, %v1993
  %v2004 = vadd.f32 %v1935, %v1993
  %v2005 = vadd.f32 %v1936, %v1993
  %v2006 = vadd.f32 %v1937, %v1993
  %v2007 = vadd.f32 %v1938, %v1993
  %v2008 = vadd.f32 %v1939, %v1993
  %v2009 = vadd.f32 %v1940, %v1993
  %v2010 = vadd.f32 %v1941, %v1993
  %v2011 = vadd.f32 %v1942, %v1993
  %v2012 = vadd.f32 %v1943, %v1993
  %v2013 = vadd.f32 %v1944, %v1993
  %v2014 = vadd.f32 %v1945, %v1993
  %v2015 = vadd.f32 %v1946, %v1993
  %v2016 = vadd.f32 %v1947, %v1993
  %v2017 = vadd.f32 %v1948, %v1993
  %v2018 = vadd.f32 %v1949, %v1993
  %v2019 = vadd.f32 %v1950, %v1993
  %v2020 = vadd.f32 %v1951, %v1993
  %v2021 = vadd.f32 %v1952, %v1993
  %v2022 = vadd.f32 %v1953, %v1993
  %v2023 = vadd.f32 %v1954, %v1993
  %v2024 = vadd.f32 %v1955, %v1993
  %v2025 = vadd.f32 %v1956, %v1993
  %v2026 = vadd.f32 %v1957, %v1993
  %v2027 = vadd.f32 %v1958, %v1993
  %v2028 = vadd.f32 %v1959, %v1993
  %v2029 = vadd.f32 %v1960, %v1993
  %v2030 = vadd.f32 %v1961, %v1993
  %v2031 = vadd.f32 %v1962, %v1993
  %v2032 = vadd.f32 %v1963, %v1993
  %v2033 = vadd.f32 %v1964, %v1993
  %v2034 = vadd.f32 %v1965, %v1993
  %v2035 = vadd.f32 %v1966, %v1993
  %v2036 = vadd.f32 %v1967, %v1993
  %v2037 = vadd.f32 %v1968, %v1993
  %v2038 = vadd.f32 %v1969, %v1993
  %v2039 = vadd.f32 %v1970, %v1993
  %v2040 = vadd.f32 %v1971, %v1993
  %v2041 = vadd.f32 %v1972, %v1993
  %v2042 = vadd.f32 %v1973, %v1993
  %v2043 = vadd.f32 %v1974, %v1993
  %v2044 = vadd.f32 %v1975, %v1993
  %v2045 = vadd.f32 %v1976, %v1993
  %v2046 = vadd.f32 %v1977, %v1993
  %v2047 = vadd.f32 %v1978, %v1993
  %v2048 = vadd.f32 %v1979, %v1993
  %v2049 = vadd.f32 %v1980, %v1993
  %v2050 = vadd.f32 %v1981, %v1993
  %v2051 = vadd.f32 %v1982, %v1993
  %v2052 = vadd.f32 %v1983, %v1993
  %v2053 = vadd.f32 %v1984, %v1993
  %v2054 = vadd.f32 %v1985, %v1993
  %v2055 = vadd.f32 %v1986, %v1993
  %v2056 = vadd.f32 %v1987, %v1993
  %v2057 = vadd.f32 %v1988, %v1993
  %v2058 = vmul.f32 %v1994, %v958
  %v2059 = vmul.f32 %v1995, %v960
  %v2060 = vmul.f32 %v1996, %v962
  %v2061 = vmul.f32 %v1997, %v964
  %v2062 = vmul.f32 %v1998, %v966
  %v2063 = vmul.f32 %v1999, %v968
  %v2064 = vmul.f32 %v2000, %v970
  %v2065 = vmul.f32 %v2001, %v972
  %v2066 = vmul.f32 %v2002, %v974
  %v2067 = vmul.f32 %v2003, %v976
  %v2068 = vmul.f32 %v2004, %v978
  %v2069 = vmul.f32 %v2005, %v980
  %v2070 = vmul.f32 %v2006, %v982
  %v2071 = vmul.f32 %v2007, %v984
  %v2072 = vmul.f32 %v2008, %v986
  %v2073 = vmul.f32 %v2009, %v988
  %v2074 = vmul.f32 %v2010, %v990
  %v2075 = vmul.f32 %v2011, %v992
  %v2076 = vmul.f32 %v2012, %v994
  %v2077 = vmul.f32 %v2013, %v996
  %v2078 = vmul.f32 %v2014, %v998
  %v2079 = vmul.f32 %v2015, %v1000
  %v2080 = vmul.f32 %v2016, %v1002
  %v2081 = vmul.f32 %v2017, %v1004
  %v2082 = vmul.f32 %v2018, %v1006
  %v2083 = vmul.f32 %v2019, %v1008
  %v2084 = vmul.f32 %v2020, %v1010
  %v2085 = vmul.f32 %v2021, %v1012
  %v2086 = vmul.f32 %v2022, %v1014
  %v2087 = vmul.f32 %v2023, %v1016
  %v2088 = vmul.f32 %v2024, %v1018
  %v2089 = vmul.f32 %v2025, %v1020
  %v2090 = vmul.f32 %v2026, %v1022
  %v2091 = vmul.f32 %v2027, %v1024
  %v2092 = vmul.f32 %v2028, %v1026
  %v2093 = vmul.f32 %v2029, %v1028
  %v2094 = vmul.f32 %v2030, %v1030
  %v2095 = vmul.f32 %v2031, %v1032
  %v2096 = vmul.f32 %v2032, %v1034
  %v2097 = vmul.f32 %v2033, %v1036
  %v2098 = vmul.f32 %v2034, %v1038
  %v2099 = vmul.f32 %v2035, %v1040
  %v2100 = vmul.f32 %v2036, %v1042
  %v2101 = vmul.f32 %v2037, %v1044
  %v2102 = vmul.f32 %v2038, %v1046
  %v2103 = vmul.f32 %v2039, %v1048
  %v2104 = vmul.f32 %v2040, %v1050
  %v2105 = vmul.f32 %v2041, %v1052
  %v2106 = vmul.f32 %v2042, %v1054
  %v2107 = vmul.f32 %v2043, %v1056
  %v2108 = vmul.f32 %v2044, %v1058
  %v2109 = vmul.f32 %v2045, %v1060
  %v2110 = vmul.f32 %v2046, %v1062
  %v2111 = vmul.f32 %v2047, %v1064
  %v2112 = vmul.f32 %v2048, %v1066
  %v2113 = vmul.f32 %v2049, %v1068
  %v2114 = vmul.f32 %v2050, %v1070
  %v2115 = vmul.f32 %v2051, %v1072
  %v2116 = vmul.f32 %v2052, %v1074
  %v2117 = vmul.f32 %v2053, %v1076
  %v2118 = vmul.f32 %v2054, %v1078
  %v2119 = vmul.f32 %v2055, %v1080
  %v2120 = vmul.f32 %v2056, %v1082
  %v2121 = vmul.f32 %v2057, %v1084
  %v2122 = vld [vmem:[%s2 + $0x3] sm:$0x1]
  %v2123 = vlaneseq
  %v2124 = vshrl.u32 %v2123, 7
  %v2125 = vsub.s32 0, %v2124
  %v2126 = vrot.slane %v2122, %v2125
  %v2127 = vadd.f32 %v2058, %v2126
  %v2128 = vadd.f32 %v2059, %v2126
  %v2129 = vadd.f32 %v2060, %v2126
  %v2130 = vadd.f32 %v2061, %v2126
  %v2131 = vadd.f32 %v2062, %v2126
  %v2132 = vadd.f32 %v2063, %v2126
  %v2133 = vadd.f32 %v2064, %v2126
  %v2134 = vadd.f32 %v2065, %v2126
  %v2135 = vadd.f32 %v2066, %v2126
  %v2136 = vadd.f32 %v2067, %v2126
  %v2137 = vadd.f32 %v2068, %v2126
  %v2138 = vadd.f32 %v2069, %v2126
  %v2139 = vadd.f32 %v2070, %v2126
  %v2140 = vadd.f32 %v2071, %v2126
  %v2141 = vadd.f32 %v2072, %v2126
  %v2142 = vadd.f32 %v2073, %v2126
  %v2143 = vadd.f32 %v2074, %v2126
  %v2144 = vadd.f32 %v2075, %v2126
  %v2145 = vadd.f32 %v2076, %v2126
  %v2146 = vadd.f32 %v2077, %v2126
  %v2147 = vadd.f32 %v2078, %v2126
  %v2148 = vadd.f32 %v2079, %v2126
  %v2149 = vadd.f32 %v2080, %v2126
  %v2150 = vadd.f32 %v2081, %v2126
  %v2151 = vadd.f32 %v2082, %v2126
  %v2152 = vadd.f32 %v2083, %v2126
  %v2153 = vadd.f32 %v2084, %v2126
  %v2154 = vadd.f32 %v2085, %v2126
  %v2155 = vadd.f32 %v2086, %v2126
  %v2156 = vadd.f32 %v2087, %v2126
  %v2157 = vadd.f32 %v2088, %v2126
  %v2158 = vadd.f32 %v2089, %v2126
  %v2159 = vadd.f32 %v2090, %v2126
  %v2160 = vadd.f32 %v2091, %v2126
  %v2161 = vadd.f32 %v2092, %v2126
  %v2162 = vadd.f32 %v2093, %v2126
  %v2163 = vadd.f32 %v2094, %v2126
  %v2164 = vadd.f32 %v2095, %v2126
  %v2165 = vadd.f32 %v2096, %v2126
  %v2166 = vadd.f32 %v2097, %v2126
  %v2167 = vadd.f32 %v2098, %v2126
  %v2168 = vadd.f32 %v2099, %v2126
  %v2169 = vadd.f32 %v2100, %v2126
  %v2170 = vadd.f32 %v2101, %v2126
  %v2171 = vadd.f32 %v2102, %v2126
  %v2172 = vadd.f32 %v2103, %v2126
  %v2173 = vadd.f32 %v2104, %v2126
  %v2174 = vadd.f32 %v2105, %v2126
  %v2175 = vadd.f32 %v2106, %v2126
  %v2176 = vadd.f32 %v2107, %v2126
  %v2177 = vadd.f32 %v2108, %v2126
  %v2178 = vadd.f32 %v2109, %v2126
  %v2179 = vadd.f32 %v2110, %v2126
  %v2180 = vadd.f32 %v2111, %v2126
  %v2181 = vadd.f32 %v2112, %v2126
  %v2182 = vadd.f32 %v2113, %v2126
  %v2183 = vadd.f32 %v2114, %v2126
  %v2184 = vadd.f32 %v2115, %v2126
  %v2185 = vadd.f32 %v2116, %v2126
  %v2186 = vadd.f32 %v2117, %v2126
  %v2187 = vadd.f32 %v2118, %v2126
  %v2188 = vadd.f32 %v2119, %v2126
  %v2189 = vadd.f32 %v2120, %v2126
  %v2190 = vadd.f32 %v2121, %v2126
  %v2191 = vld [vmem:[%s2 + $0x4] sm:$0x1]
  %v2192 = vlaneseq
  %v2193 = vshrl.u32 %v2192, 7
  %v2194 = vsub.s32 0, %v2193
  %v2195 = vrot.slane %v2191, %v2194
  %v2196 = vmul.f32 %v1536, %v2195
  %v2197 = vmul.f32 %v1537, %v2195
  %v2198 = vmul.f32 %v1538, %v2195
  %v2199 = vmul.f32 %v1539, %v2195
  %v2200 = vmul.f32 %v1540, %v2195
  %v2201 = vmul.f32 %v1541, %v2195
  %v2202 = vmul.f32 %v1542, %v2195
  %v2203 = vmul.f32 %v1543, %v2195
  %v2204 = vmul.f32 %v1544, %v2195
  %v2205 = vmul.f32 %v1545, %v2195
  %v2206 = vmul.f32 %v1546, %v2195
  %v2207 = vmul.f32 %v1547, %v2195
  %v2208 = vmul.f32 %v1548, %v2195
  %v2209 = vmul.f32 %v1549, %v2195
  %v2210 = vmul.f32 %v1550, %v2195
  %v2211 = vmul.f32 %v1551, %v2195
  %v2212 = vmul.f32 %v1552, %v2195
  %v2213 = vmul.f32 %v1553, %v2195
  %v2214 = vmul.f32 %v1554, %v2195
  %v2215 = vmul.f32 %v1555, %v2195
  %v2216 = vmul.f32 %v1556, %v2195
  %v2217 = vmul.f32 %v1557, %v2195
  %v2218 = vmul.f32 %v1558, %v2195
  %v2219 = vmul.f32 %v1559, %v2195
  %v2220 = vmul.f32 %v1560, %v2195
  %v2221 = vmul.f32 %v1561, %v2195
  %v2222 = vmul.f32 %v1562, %v2195
  %v2223 = vmul.f32 %v1563, %v2195
  %v2224 = vmul.f32 %v1564, %v2195
  %v2225 = vmul.f32 %v1565, %v2195
  %v2226 = vmul.f32 %v1566, %v2195
  %v2227 = vmul.f32 %v1567, %v2195
  %v2228 = vmul.f32 %v1568, %v2195
  %v2229 = vmul.f32 %v1569, %v2195
  %v2230 = vmul.f32 %v1570, %v2195
  %v2231 = vmul.f32 %v1571, %v2195
  %v2232 = vmul.f32 %v1572, %v2195
  %v2233 = vmul.f32 %v1573, %v2195
  %v2234 = vmul.f32 %v1574, %v2195
  %v2235 = vmul.f32 %v1575, %v2195
  %v2236 = vmul.f32 %v1576, %v2195
  %v2237 = vmul.f32 %v1577, %v2195
  %v2238 = vmul.f32 %v1578, %v2195
  %v2239 = vmul.f32 %v1579, %v2195
  %v2240 = vmul.f32 %v1580, %v2195
  %v2241 = vmul.f32 %v1581, %v2195
  %v2242 = vmul.f32 %v1582, %v2195
  %v2243 = vmul.f32 %v1583, %v2195
  %v2244 = vmul.f32 %v1584, %v2195
  %v2245 = vmul.f32 %v1585, %v2195
  %v2246 = vmul.f32 %v1586, %v2195
  %v2247 = vmul.f32 %v1587, %v2195
  %v2248 = vmul.f32 %v1588, %v2195
  %v2249 = vmul.f32 %v1589, %v2195
  %v2250 = vmul.f32 %v1590, %v2195
  %v2251 = vmul.f32 %v1591, %v2195
  %v2252 = vmul.f32 %v1592, %v2195
  %v2253 = vmul.f32 %v1593, %v2195
  %v2254 = vmul.f32 %v1594, %v2195
  %v2255 = vmul.f32 %v1595, %v2195
  %v2256 = vmul.f32 %v1596, %v2195
  %v2257 = vmul.f32 %v1597, %v2195
  %v2258 = vmul.f32 %v1598, %v2195
  %v2259 = vmul.f32 %v1599, %v2195
  %v2260 = vadd.f32 %v2127, %v2196
  %v2261 = vadd.f32 %v2128, %v2197
  %v2262 = vadd.f32 %v2129, %v2198
  %v2263 = vadd.f32 %v2130, %v2199
  %v2264 = vadd.f32 %v2131, %v2200
  %v2265 = vadd.f32 %v2132, %v2201
  %v2266 = vadd.f32 %v2133, %v2202
  %v2267 = vadd.f32 %v2134, %v2203
  %v2268 = vadd.f32 %v2135, %v2204
  %v2269 = vadd.f32 %v2136, %v2205
  %v2270 = vadd.f32 %v2137, %v2206
  %v2271 = vadd.f32 %v2138, %v2207
  %v2272 = vadd.f32 %v2139, %v2208
  %v2273 = vadd.f32 %v2140, %v2209
  %v2274 = vadd.f32 %v2141, %v2210
  %v2275 = vadd.f32 %v2142, %v2211
  %v2276 = vadd.f32 %v2143, %v2212
  %v2277 = vadd.f32 %v2144, %v2213
  %v2278 = vadd.f32 %v2145, %v2214
  %v2279 = vadd.f32 %v2146, %v2215
  %v2280 = vadd.f32 %v2147, %v2216
  %v2281 = vadd.f32 %v2148, %v2217
  %v2282 = vadd.f32 %v2149, %v2218
  %v2283 = vadd.f32 %v2150, %v2219
  %v2284 = vadd.f32 %v2151, %v2220
  %v2285 = vadd.f32 %v2152, %v2221
  %v2286 = vadd.f32 %v2153, %v2222
  %v2287 = vadd.f32 %v2154, %v2223
  %v2288 = vadd.f32 %v2155, %v2224
  %v2289 = vadd.f32 %v2156, %v2225
  %v2290 = vadd.f32 %v2157, %v2226
  %v2291 = vadd.f32 %v2158, %v2227
  %v2292 = vadd.f32 %v2159, %v2228
  %v2293 = vadd.f32 %v2160, %v2229
  %v2294 = vadd.f32 %v2161, %v2230
  %v2295 = vadd.f32 %v2162, %v2231
  %v2296 = vadd.f32 %v2163, %v2232
  %v2297 = vadd.f32 %v2164, %v2233
  %v2298 = vadd.f32 %v2165, %v2234
  %v2299 = vadd.f32 %v2166, %v2235
  %v2300 = vadd.f32 %v2167, %v2236
  %v2301 = vadd.f32 %v2168, %v2237
  %v2302 = vadd.f32 %v2169, %v2238
  %v2303 = vadd.f32 %v2170, %v2239
  %v2304 = vadd.f32 %v2171, %v2240
  %v2305 = vadd.f32 %v2172, %v2241
  %v2306 = vadd.f32 %v2173, %v2242
  %v2307 = vadd.f32 %v2174, %v2243
  %v2308 = vadd.f32 %v2175, %v2244
  %v2309 = vadd.f32 %v2176, %v2245
  %v2310 = vadd.f32 %v2177, %v2246
  %v2311 = vadd.f32 %v2178, %v2247
  %v2312 = vadd.f32 %v2179, %v2248
  %v2313 = vadd.f32 %v2180, %v2249
  %v2314 = vadd.f32 %v2181, %v2250
  %v2315 = vadd.f32 %v2182, %v2251
  %v2316 = vadd.f32 %v2183, %v2252
  %v2317 = vadd.f32 %v2184, %v2253
  %v2318 = vadd.f32 %v2185, %v2254
  %v2319 = vadd.f32 %v2186, %v2255
  %v2320 = vadd.f32 %v2187, %v2256
  %v2321 = vadd.f32 %v2188, %v2257
  %v2322 = vadd.f32 %v2189, %v2258
  %v2323 = vadd.f32 %v2190, %v2259
  %v2324 = vld [vmem:[%s2 + $0x5] sm:$0x1]
  %v2325 = vlaneseq
  %v2326 = vshrl.u32 %v2325, 7
  %v2327 = vsub.s32 0, %v2326
  %v2328 = vrot.slane %v2324, %v2327
  %v2329 = vmul.f32 %v1856, %v2328
  %v2330 = vmul.f32 %v1857, %v2328
  %v2331 = vmul.f32 %v1858, %v2328
  %v2332 = vmul.f32 %v1859, %v2328
  %v2333 = vmul.f32 %v1860, %v2328
  %v2334 = vmul.f32 %v1861, %v2328
  %v2335 = vmul.f32 %v1862, %v2328
  %v2336 = vmul.f32 %v1863, %v2328
  %v2337 = vmul.f32 %v1864, %v2328
  %v2338 = vmul.f32 %v1865, %v2328
  %v2339 = vmul.f32 %v1866, %v2328
  %v2340 = vmul.f32 %v1867, %v2328
  %v2341 = vmul.f32 %v1868, %v2328
  %v2342 = vmul.f32 %v1869, %v2328
  %v2343 = vmul.f32 %v1870, %v2328
  %v2344 = vmul.f32 %v1871, %v2328
  %v2345 = vmul.f32 %v1872, %v2328
  %v2346 = vmul.f32 %v1873, %v2328
  %v2347 = vmul.f32 %v1874, %v2328
  %v2348 = vmul.f32 %v1875, %v2328
  %v2349 = vmul.f32 %v1876, %v2328
  %v2350 = vmul.f32 %v1877, %v2328
  %v2351 = vmul.f32 %v1878, %v2328
  %v2352 = vmul.f32 %v1879, %v2328
  %v2353 = vmul.f32 %v1880, %v2328
  %v2354 = vmul.f32 %v1881, %v2328
  %v2355 = vmul.f32 %v1882, %v2328
  %v2356 = vmul.f32 %v1883, %v2328
  %v2357 = vmul.f32 %v1884, %v2328
  %v2358 = vmul.f32 %v1885, %v2328
  %v2359 = vmul.f32 %v1886, %v2328
  %v2360 = vmul.f32 %v1887, %v2328
  %v2361 = vmul.f32 %v1888, %v2328
  %v2362 = vmul.f32 %v1889, %v2328
  %v2363 = vmul.f32 %v1890, %v2328
  %v2364 = vmul.f32 %v1891, %v2328
  %v2365 = vmul.f32 %v1892, %v2328
  %v2366 = vmul.f32 %v1893, %v2328
  %v2367 = vmul.f32 %v1894, %v2328
  %v2368 = vmul.f32 %v1895, %v2328
  %v2369 = vmul.f32 %v1896, %v2328
  %v2370 = vmul.f32 %v1897, %v2328
  %v2371 = vmul.f32 %v1898, %v2328
  %v2372 = vmul.f32 %v1899, %v2328
  %v2373 = vmul.f32 %v1900, %v2328
  %v2374 = vmul.f32 %v1901, %v2328
  %v2375 = vmul.f32 %v1902, %v2328
  %v2376 = vmul.f32 %v1903, %v2328
  %v2377 = vmul.f32 %v1904, %v2328
  %v2378 = vmul.f32 %v1905, %v2328
  %v2379 = vmul.f32 %v1906, %v2328
  %v2380 = vmul.f32 %v1907, %v2328
  %v2381 = vmul.f32 %v1908, %v2328
  %v2382 = vmul.f32 %v1909, %v2328
  %v2383 = vmul.f32 %v1910, %v2328
  %v2384 = vmul.f32 %v1911, %v2328
  %v2385 = vmul.f32 %v1912, %v2328
  %v2386 = vmul.f32 %v1913, %v2328
  %v2387 = vmul.f32 %v1914, %v2328
  %v2388 = vmul.f32 %v1915, %v2328
  %v2389 = vmul.f32 %v1916, %v2328
  %v2390 = vmul.f32 %v1917, %v2328
  %v2391 = vmul.f32 %v1918, %v2328
  %v2392 = vmul.f32 %v1919, %v2328
  %v2393 = vadd.f32 %v2260, %v2329
  %v2394 = vadd.f32 %v2261, %v2330
  %v2395 = vadd.f32 %v2262, %v2331
  %v2396 = vadd.f32 %v2263, %v2332
  %v2397 = vadd.f32 %v2264, %v2333
  %v2398 = vadd.f32 %v2265, %v2334
  %v2399 = vadd.f32 %v2266, %v2335
  %v2400 = vadd.f32 %v2267, %v2336
  %v2401 = vadd.f32 %v2268, %v2337
  %v2402 = vadd.f32 %v2269, %v2338
  %v2403 = vadd.f32 %v2270, %v2339
  %v2404 = vadd.f32 %v2271, %v2340
  %v2405 = vadd.f32 %v2272, %v2341
  %v2406 = vadd.f32 %v2273, %v2342
  %v2407 = vadd.f32 %v2274, %v2343
  %v2408 = vadd.f32 %v2275, %v2344
  %v2409 = vadd.f32 %v2276, %v2345
  %v2410 = vadd.f32 %v2277, %v2346
  %v2411 = vadd.f32 %v2278, %v2347
  %v2412 = vadd.f32 %v2279, %v2348
  %v2413 = vadd.f32 %v2280, %v2349
  %v2414 = vadd.f32 %v2281, %v2350
  %v2415 = vadd.f32 %v2282, %v2351
  %v2416 = vadd.f32 %v2283, %v2352
  %v2417 = vadd.f32 %v2284, %v2353
  %v2418 = vadd.f32 %v2285, %v2354
  %v2419 = vadd.f32 %v2286, %v2355
  %v2420 = vadd.f32 %v2287, %v2356
  %v2421 = vadd.f32 %v2288, %v2357
  %v2422 = vadd.f32 %v2289, %v2358
  %v2423 = vadd.f32 %v2290, %v2359
  %v2424 = vadd.f32 %v2291, %v2360
  %v2425 = vadd.f32 %v2292, %v2361
  %v2426 = vadd.f32 %v2293, %v2362
  %v2427 = vadd.f32 %v2294, %v2363
  %v2428 = vadd.f32 %v2295, %v2364
  %v2429 = vadd.f32 %v2296, %v2365
  %v2430 = vadd.f32 %v2297, %v2366
  %v2431 = vadd.f32 %v2298, %v2367
  %v2432 = vadd.f32 %v2299, %v2368
  %v2433 = vadd.f32 %v2300, %v2369
  %v2434 = vadd.f32 %v2301, %v2370
  %v2435 = vadd.f32 %v2302, %v2371
  %v2436 = vadd.f32 %v2303, %v2372
  %v2437 = vadd.f32 %v2304, %v2373
  %v2438 = vadd.f32 %v2305, %v2374
  %v2439 = vadd.f32 %v2306, %v2375
  %v2440 = vadd.f32 %v2307, %v2376
  %v2441 = vadd.f32 %v2308, %v2377
  %v2442 = vadd.f32 %v2309, %v2378
  %v2443 = vadd.f32 %v2310, %v2379
  %v2444 = vadd.f32 %v2311, %v2380
  %v2445 = vadd.f32 %v2312, %v2381
  %v2446 = vadd.f32 %v2313, %v2382
  %v2447 = vadd.f32 %v2314, %v2383
  %v2448 = vadd.f32 %v2315, %v2384
  %v2449 = vadd.f32 %v2316, %v2385
  %v2450 = vadd.f32 %v2317, %v2386
  %v2451 = vadd.f32 %v2318, %v2387
  %v2452 = vadd.f32 %v2319, %v2388
  %v2453 = vadd.f32 %v2320, %v2389
  %v2454 = vadd.f32 %v2321, %v2390
  %v2455 = vadd.f32 %v2322, %v2391
  %v2456 = vadd.f32 %v2323, %v2392
  %2457 = vst [vmem:[%s3] sm:$0xff] %v2393
  %2458 = vst [vmem:[%s3 + $0x8] sm:$0xff] %v2394
  %2459 = vst [vmem:[%s3 + $0x10] sm:$0xff] %v2395
  %2460 = vst [vmem:[%s3 + $0x18] sm:$0xff] %v2396
  %2461 = vst [vmem:[%s3 + $0x20] sm:$0xff] %v2397
  %2462 = vst [vmem:[%s3 + $0x28] sm:$0xff] %v2398
  %2463 = vst [vmem:[%s3 + $0x30] sm:$0xff] %v2399
  %2464 = vst [vmem:[%s3 + $0x38] sm:$0xff] %v2400
  %2465 = vst [vmem:[%s3 + $0x40] sm:$0xff] %v2401
  %2466 = vst [vmem:[%s3 + $0x48] sm:$0xff] %v2402
  %2467 = vst [vmem:[%s3 + $0x50] sm:$0xff] %v2403
  %2468 = vst [vmem:[%s3 + $0x58] sm:$0xff] %v2404
  %2469 = vst [vmem:[%s3 + $0x60] sm:$0xff] %v2405
  %2470 = vst [vmem:[%s3 + $0x68] sm:$0xff] %v2406
  %2471 = vst [vmem:[%s3 + $0x70] sm:$0xff] %v2407
  %2472 = vst [vmem:[%s3 + $0x78] sm:$0xff] %v2408
  %2473 = vst [vmem:[%s3 + $0x80] sm:$0xff] %v2409
  %2474 = vst [vmem:[%s3 + $0x88] sm:$0xff] %v2410
  %2475 = vst [vmem:[%s3 + $0x90] sm:$0xff] %v2411
  %2476 = vst [vmem:[%s3 + $0x98] sm:$0xff] %v2412
  %2477 = vst [vmem:[%s3 + $0xa0] sm:$0xff] %v2413
  %2478 = vst [vmem:[%s3 + $0xa8] sm:$0xff] %v2414
  %2479 = vst [vmem:[%s3 + $0xb0] sm:$0xff] %v2415
  %2480 = vst [vmem:[%s3 + $0xb8] sm:$0xff] %v2416
  %2481 = vst [vmem:[%s3 + $0xc0] sm:$0xff] %v2417
  %2482 = vst [vmem:[%s3 + $0xc8] sm:$0xff] %v2418
  %2483 = vst [vmem:[%s3 + $0xd0] sm:$0xff] %v2419
  %2484 = vst [vmem:[%s3 + $0xd8] sm:$0xff] %v2420
  %2485 = vst [vmem:[%s3 + $0xe0] sm:$0xff] %v2421
  %2486 = vst [vmem:[%s3 + $0xe8] sm:$0xff] %v2422
  %2487 = vst [vmem:[%s3 + $0xf0] sm:$0xff] %v2423
  %2488 = vst [vmem:[%s3 + $0xf8] sm:$0xff] %v2424
  %2489 = vst [vmem:[%s3 + $0x100] sm:$0xff] %v2425
  %2490 = vst [vmem:[%s3 + $0x108] sm:$0xff] %v2426
  %2491 = vst [vmem:[%s3 + $0x110] sm:$0xff] %v2427
  %2492 = vst [vmem:[%s3 + $0x118] sm:$0xff] %v2428
  %2493 = vst [vmem:[%s3 + $0x120] sm:$0xff] %v2429
  %2494 = vst [vmem:[%s3 + $0x128] sm:$0xff] %v2430
  %2495 = vst [vmem:[%s3 + $0x130] sm:$0xff] %v2431
  %2496 = vst [vmem:[%s3 + $0x138] sm:$0xff] %v2432
  %2497 = vst [vmem:[%s3 + $0x140] sm:$0xff] %v2433
  %2498 = vst [vmem:[%s3 + $0x148] sm:$0xff] %v2434
  %2499 = vst [vmem:[%s3 + $0x150] sm:$0xff] %v2435
  %2500 = vst [vmem:[%s3 + $0x158] sm:$0xff] %v2436
  %2501 = vst [vmem:[%s3 + $0x160] sm:$0xff] %v2437
  %2502 = vst [vmem:[%s3 + $0x168] sm:$0xff] %v2438
  %2503 = vst [vmem:[%s3 + $0x170] sm:$0xff] %v2439
  %2504 = vst [vmem:[%s3 + $0x178] sm:$0xff] %v2440
  %2505 = vst [vmem:[%s3 + $0x180] sm:$0xff] %v2441
  %2506 = vst [vmem:[%s3 + $0x188] sm:$0xff] %v2442
  %2507 = vst [vmem:[%s3 + $0x190] sm:$0xff] %v2443
  %2508 = vst [vmem:[%s3 + $0x198] sm:$0xff] %v2444
  %2509 = vst [vmem:[%s3 + $0x1a0] sm:$0xff] %v2445
  %2510 = vst [vmem:[%s3 + $0x1a8] sm:$0xff] %v2446
  %2511 = vst [vmem:[%s3 + $0x1b0] sm:$0xff] %v2447
  %2512 = vst [vmem:[%s3 + $0x1b8] sm:$0xff] %v2448
  %2513 = vst [vmem:[%s3 + $0x1c0] sm:$0xff] %v2449
  %2514 = vst [vmem:[%s3 + $0x1c8] sm:$0xff] %v2450
  %2515 = vst [vmem:[%s3 + $0x1d0] sm:$0xff] %v2451
  %2516 = vst [vmem:[%s3 + $0x1d8] sm:$0xff] %v2452
  %2517 = vst [vmem:[%s3 + $0x1e0] sm:$0xff] %v2453
  %2518 = vst [vmem:[%s3 + $0x1e8] sm:$0xff] %v2454
  %2519 = vst [vmem:[%s3 + $0x1f0] sm:$0xff] %v2455
  %2520 = vst [vmem:[%s3 + $0x1f8] sm:$0xff] %v2456
  // Predicated region
  $region14: #{detect_forward.3} parent=0 // pred_check
    _
  $region15: #{detect_forward.3} parent=0 // pred_check_branch
    %2522 = sbr.rel (0) target = $region17
  $region16: #{detect_forward.3} parent=0 // pred_region
    _
  $region17: #{detect_forward.3} parent=0 // pred_fallthru
    _
  // Predicated region
  $region18: #{detect_forward.3} parent=0 // pred_check
    _
  $region19: #{detect_forward.3} parent=0 // pred_check_branch
    %2524 = sbr.rel (0) target = $region21
  $region20: #{detect_forward.3} parent=0 // pred_region
    _
  $region21: #{detect_forward.3} parent=0 // pred_fallthru
    _
  // Predicated region
  $region22: #{detect_forward.3} parent=0 // pred_check
    _
  $region23: #{detect_forward.3} parent=0 // pred_check_branch
    %2526 = sbr.rel (0) target = $region25
  $region24: #{detect_forward.3} parent=0 // pred_region
    _
  $region25: #{detect_forward.3} parent=0 // pred_fallthru
    _
  // Predicated region
  $region26: #{detect_forward.3} parent=0 // pred_check
    _
  $region27: #{detect_forward.3} parent=0 // pred_check_branch
    %2528 = sbr.rel (0) target = $region29
  $region28: #{detect_forward.3} parent=0 // pred_region
    _
  $region29: #{detect_forward.3} parent=0 // pred_fallthru
    _

// kernel: detect_forward.5
$region0: #{detect_forward.5}
  #allocation0 [shape = 'u32[]', space=smem, size = 0x4, offset = 0x4, fixed_abs, tag = 'smem constant byte address 0x4 - core index']
  #allocation1 [shape = 'u32[144,128]{1,0:T(1,128)}', space=vmem, size = 0x12000, scoped, tag = 'internal scratch']
  %s0 = inlined_call_operand.vmem [shape: bf16[32,32], index: 0, kind: input, shape index: {}]
  %s1 = inlined_call_operand.vmem [shape: bf16[32,128], index: 1, kind: input, shape index: {}]
  %s2 = inlined_call_operand.vmem [shape: f32[8,128], index: 2, kind: input, shape index: {}]
  %s3 = inlined_call_operand.vmem [shape: f32[32,128], index: 3, kind: output, shape index: {0}]
  %s4 = inlined_call_operand.vmem [shape: f32[32,128], index: 4, kind: output, shape index: {1}]
  %5 = xla_tuple %s3, %s4
  %s6 = sld [smem:[#allocation0]]
  $region30: #{detect_forward.5} parent=0
    _
  %s8 = ssub.s32 1, %s6
  %s9 = scalar_select 0, %s8, %s6
  // Predicated region
  $region2: #{detect_forward.5} parent=0 // pred_check
    _
  $region3: #{detect_forward.5} parent=0 // pred_check_branch
    %11 = sbr.rel (0) target = $region5
  $region4: #{detect_forward.5} parent=0 // pred_region
    _
  $region5: #{detect_forward.5} parent=0 // pred_fallthru
    _
  // Predicated region
  $region6: #{detect_forward.5} parent=0 // pred_check
    _
  $region7: #{detect_forward.5} parent=0 // pred_check_branch
    %13 = sbr.rel (0) target = $region9
  $region8: #{detect_forward.5} parent=0 // pred_region
    _
  $region9: #{detect_forward.5} parent=0 // pred_fallthru
    _
  // Predicated region
  $region10: #{detect_forward.5} parent=0 // pred_check
    _
  $region11: #{detect_forward.5} parent=0 // pred_check_branch
    %15 = sbr.rel (0) target = $region13
  $region12: #{detect_forward.5} parent=0 // pred_region
    _
  $region13: #{detect_forward.5} parent=0 // pred_fallthru
    _
  %v17 = vld [vmem:[%s0] sm:$0xf]
  %v18 = vld [vmem:[%s0 + $0x4] sm:$0xf]
  %v19 = vld [vmem:[%s0 + $0x8] sm:$0xf]
  %v20 = vld [vmem:[%s0 + $0xc] sm:$0xf]
  %v21 = vld [vmem:[%s1] sm:$0xf]
  %v22 = vld [vmem:[%s1 + $0x4] sm:$0xf]
  %v23 = vld [vmem:[%s1 + $0x8] sm:$0xf]
  %v24 = vld [vmem:[%s1 + $0xc] sm:$0xf]
  %v25 = vld [vmem:[%s2] sm:$0x1]
  %v26 = vlaneseq
  %v27 = vshrl.u32 %v26, 7
  %v28 = vsub.s32 0, %v27
  %v29 = vrot.slane %v25, %v28
  %v34 = vunpack.c.l.b16 %v17
  %v35 = vunpack.c.l.b16 %v18
  %v36 = vunpack.c.l.b16 %v19
  %v37 = vunpack.c.l.b16 %v20
  %v38 = vpack.c.b16 %v35, %v34
  %v39 = vpack.c.b16 %v37, %v36
  %v44 = vunpack.c.l.b16 %v21
  %v45 = vunpack.c.l.b16 %v22
  %v46 = vunpack.c.l.b16 %v23
  %v47 = vunpack.c.l.b16 %v24
  %v48 = vpack.c.b16 %v45, %v44
  %v49 = vpack.c.b16 %v47, %v46
  %vm52 = vcmask 261120
  %v54 = vsel %vm52, %v38, 0
  %v57 = vsel %vm52, %v39, 0
  %59 = vmatprep.subr.bf16.mxu0 0
  %60 = vmatpush1.bf16.msra.mxu0 %v48
  %61 = vmatprep.subr.bf16.mxu0 0
  %62 = vmatpush1.bf16.msra.mxu0 %v49
  %63 = vmatprep.subr.bf16.mxu0 0
  %64 = vmatpush1.bf16.msra.mxu0 0
  %65 = vmatprep.subr.bf16.mxu0 0
  %66 = vmatpush1.bf16.msra.mxu0 0
  %67 = vmatprep.subr.bf16.mxu0 0
  %68 = vmatpush1.bf16.msra.mxu0 0
  %69 = vmatprep.subr.bf16.mxu0 0
  %70 = vmatpush1.bf16.msra.mxu0 0
  %71 = vmatprep.subr.bf16.mxu0 0
  %72 = vmatpush1.bf16.msra.mxu0 0
  %73 = vmatprep.subr.bf16.mxu0 0
  %74 = vmatpush1.bf16.msra.mxu0 0
  %75 = vmatprep.subr.bf16.mxu0 0
  %76 = vmatpush1.bf16.msra.mxu0 0
  %77 = vmatprep.subr.bf16.mxu0 0
  %78 = vmatpush1.bf16.msra.mxu0 0
  %79 = vmatprep.subr.bf16.mxu0 0
  %80 = vmatpush1.bf16.msra.mxu0 0
  %81 = vmatprep.subr.bf16.mxu0 0
  %82 = vmatpush1.bf16.msra.mxu0 0
  %83 = vmatprep.subr.bf16.mxu0 0
  %84 = vmatpush1.bf16.msra.mxu0 0
  %85 = vmatprep.subr.bf16.mxu0 0
  %86 = vmatpush1.bf16.msra.mxu0 0
  %87 = vmatprep.subr.bf16.mxu0 0
  %88 = vmatpush1.bf16.msra.mxu0 0
  %89 = vmatprep.subr.bf16.mxu0 0
  %90 = vmatpush1.bf16.msra.mxu0 0
  %91 = vmatprep.mubr.bf16.mxu0 0
  %92 = vmatmul.mubr.bf16.gmra.mrb[0].mxu0 %v54
  %v93 = vpop.f32.mrb[0].mxu0
  %v94 = vadd.f32 %v29, %v93
  %v95 = vpop.f32.mrb[0].mxu0
  %v96 = vpop.f32.mrb[0].mxu0
  %v97 = vadd.f32 %v29, %v96
  %v98 = vpop.f32.mrb[0].mxu0
  %99 = vmatprep.mubr.bf16.mxu0 0
  %100 = vmatmul.mubr.bf16.gmra.mrb[0].mxu0 %v57
  %v101 = vpop.f32.mrb[0].mxu0
  %v102 = vadd.f32 %v29, %v101
  %v103 = vpop.f32.mrb[0].mxu0
  %v104 = vpop.f32.mrb[0].mxu0
  %v105 = vadd.f32 %v29, %v104
  %v106 = vpop.f32.mrb[0].mxu0
  %107 = vdwg.mxu0
  %108 = vst [vmem:[%s4] sm:$0xff] %v94
  %109 = vst [vmem:[%s4 + $0x8] sm:$0xff] %v97
  %110 = vst [vmem:[%s4 + $0x10] sm:$0xff] %v102
  %111 = vst [vmem:[%s4 + $0x18] sm:$0xff] %v105
  %v112 = vxor.u32 %v94, 2147483648
  %v113 = vxor.u32 %v97, 2147483648
  %v114 = vxor.u32 %v102, 2147483648
  %v115 = vxor.u32 %v105, 2147483648
  %v116 = vmul.f32 %v112, 1.442695
  %v117 = vpow.pop %v116
  %v118 = vmul.f32 %v113, 1.442695
  %v119 = vpow.pop %v118
  %v120 = vmul.f32 %v114, 1.442695
  %v121 = vpow.pop %v120
  %v122 = vmul.f32 %v115, 1.442695
  %v123 = vpow.pop %v122
  %v124 = vadd.f32 %v117, 1.0
  %v125 = vadd.f32 %v119, 1.0
  %v126 = vadd.f32 %v121, 1.0
  %v127 = vadd.f32 %v123, 1.0
  %v128 = vrcp.pop %v124
  %v129 = vmul.f32 1.0, %v128
  %v130 = vrcp.pop %v125
  %v131 = vmul.f32 1.0, %v130
  %v132 = vrcp.pop %v126
  %v133 = vmul.f32 1.0, %v132
  %v134 = vrcp.pop %v127
  %v135 = vmul.f32 1.0, %v134
  %s136 = smul.u32 0, 32
  %v137 = vlaneseq
  %v138 = vshrl.u32 %v137, 7
  %v139 = vadd.s32 %v138, 8
  %v140 = vadd.s32 %v138, 16
  %v141 = vadd.s32 %v138, 24
  %v142 = vstv %s136
  %v143 = vadd.s32 %v142, %v138
  %v144 = vadd.s32 %v142, %v139
  %v145 = vadd.s32 %v142, %v140
  %v146 = vadd.s32 %v142, %v141
  %v147 = vcvt.s32.f32 %v143
  %v148 = vcvt.s32.f32 %v144
  %v149 = vcvt.s32.f32 %v145
  %v150 = vcvt.s32.f32 %v146
  %v151 = vadd.f32 %v147, 0.5
  %v152 = vadd.f32 %v148, 0.5
  %v153 = vadd.f32 %v149, 0.5
  %v154 = vadd.f32 %v150, 0.5
  %v155 = vmul.f32 %v151, 0.25
  %v156 = vmul.f32 %v152, 0.25
  %v157 = vmul.f32 %v153, 0.25
  %v158 = vmul.f32 %v154, 0.25
  %v159 = vfloor.f32 %v155
  %v160 = vfloor.f32 %v156
  %v161 = vfloor.f32 %v157
  %v162 = vfloor.f32 %v158
  %v163 = vmul.f32 %v159, 4.0
  %v164 = vmul.f32 %v160, 4.0
  %v165 = vmul.f32 %v161, 4.0
  %v166 = vmul.f32 %v162, 4.0
  %v167 = vsub.f32 %v147, %v163
  %v168 = vsub.f32 %v148, %v164
  %v169 = vsub.f32 %v149, %v165
  %v170 = vsub.f32 %v150, %v166
  %v171 = vadd.f32 %v159, 0.5
  %v172 = vadd.f32 %v160, 0.5
  %v173 = vadd.f32 %v161, 0.5
  %v174 = vadd.f32 %v162, 0.5
  %v175 = vmul.f32 %v171, 0.25
  %v176 = vmul.f32 %v172, 0.25
  %v177 = vmul.f32 %v173, 0.25
  %v178 = vmul.f32 %v174, 0.25
  %v179 = vfloor.f32 %v175
  %v180 = vfloor.f32 %v176
  %v181 = vfloor.f32 %v177
  %v182 = vfloor.f32 %v178
  %v183 = vmul.f32 %v179, 4.0
  %v184 = vmul.f32 %v180, 4.0
  %v185 = vmul.f32 %v181, 4.0
  %v186 = vmul.f32 %v182, 4.0
  %v187 = vsub.f32 %v159, %v183
  %v188 = vsub.f32 %v160, %v184
  %v189 = vsub.f32 %v161, %v185
  %v190 = vsub.f32 %v162, %v186
  %v191 = vld [vmem:[%s2 + $0x1] sm:$0x1]
  %v192 = vlaneseq
  %v193 = vshrl.u32 %v192, 7
  %v194 = vsub.s32 0, %v193
  %v195 = vrot.slane %v191, %v194
  %v196 = vmul.f32 %v195, %v129
  %v197 = vmul.f32 %v195, %v131
  %v198 = vmul.f32 %v195, %v133
  %v199 = vmul.f32 %v195, %v135
  %v200 = vld [vmem:[%s2 + $0x2] sm:$0x1]
  %v201 = vlaneseq
  %v202 = vshrl.u32 %v201, 7
  %v203 = vsub.s32 0, %v202
  %v204 = vrot.slane %v200, %v203
  %v205 = vadd.f32 %v196, %v204
  %v206 = vadd.f32 %v197, %v204
  %v207 = vadd.f32 %v198, %v204
  %v208 = vadd.f32 %v199, %v204
  %v209 = vmul.f32 %v205, %v129
  %v210 = vmul.f32 %v206, %v131
  %v211 = vmul.f32 %v207, %v133
  %v212 = vmul.f32 %v208, %v135
  %v213 = vld [vmem:[%s2 + $0x3] sm:$0x1]
  %v214 = vlaneseq
  %v215 = vshrl.u32 %v214, 7
  %v216 = vsub.s32 0, %v215
  %v217 = vrot.slane %v213, %v216
  %v218 = vadd.f32 %v209, %v217
  %v219 = vadd.f32 %v210, %v217
  %v220 = vadd.f32 %v211, %v217
  %v221 = vadd.f32 %v212, %v217
  %v222 = vld [vmem:[%s2 + $0x4] sm:$0x1]
  %v223 = vlaneseq
  %v224 = vshrl.u32 %v223, 7
  %v225 = vsub.s32 0, %v224
  %v226 = vrot.slane %v222, %v225
  %v227 = vmul.f32 %v167, %v226
  %v228 = vmul.f32 %v168, %v226
  %v229 = vmul.f32 %v169, %v226
  %v230 = vmul.f32 %v170, %v226
  %v231 = vadd.f32 %v218, %v227
  %v232 = vadd.f32 %v219, %v228
  %v233 = vadd.f32 %v220, %v229
  %v234 = vadd.f32 %v221, %v230
  %v235 = vld [vmem:[%s2 + $0x5] sm:$0x1]
  %v236 = vlaneseq
  %v237 = vshrl.u32 %v236, 7
  %v238 = vsub.s32 0, %v237
  %v239 = vrot.slane %v235, %v238
  %v240 = vmul.f32 %v187, %v239
  %v241 = vmul.f32 %v188, %v239
  %v242 = vmul.f32 %v189, %v239
  %v243 = vmul.f32 %v190, %v239
  %v244 = vadd.f32 %v231, %v240
  %v245 = vadd.f32 %v232, %v241
  %v246 = vadd.f32 %v233, %v242
  %v247 = vadd.f32 %v234, %v243
  %248 = vst [vmem:[%s3] sm:$0xff] %v244
  %249 = vst [vmem:[%s3 + $0x8] sm:$0xff] %v245
  %250 = vst [vmem:[%s3 + $0x10] sm:$0xff] %v246
  %251 = vst [vmem:[%s3 + $0x18] sm:$0xff] %v247
  // Predicated region
  $region14: #{detect_forward.5} parent=0 // pred_check
    _
  $region15: #{detect_forward.5} parent=0 // pred_check_branch
    %253 = sbr.rel (0) target = $region17
  $region16: #{detect_forward.5} parent=0 // pred_region
    _
  $region17: #{detect_forward.5} parent=0 // pred_fallthru
    _
  // Predicated region
  $region18: #{detect_forward.5} parent=0 // pred_check
    _
  $region19: #{detect_forward.5} parent=0 // pred_check_branch
    %255 = sbr.rel (0) target = $region21
  $region20: #{detect_forward.5} parent=0 // pred_region
    _
  $region21: #{detect_forward.5} parent=0 // pred_fallthru
    _
  // Predicated region
  $region22: #{detect_forward.5} parent=0 // pred_check
    _
  $region23: #{detect_forward.5} parent=0 // pred_check_branch
    %257 = sbr.rel (0) target = $region25
  $region24: #{detect_forward.5} parent=0 // pred_region
    _
  $region25: #{detect_forward.5} parent=0 // pred_fallthru
    _
  // Predicated region
  $region26: #{detect_forward.5} parent=0 // pred_check
    _
  $region27: #{detect_forward.5} parent=0 // pred_check_branch
    %259 = sbr.rel (0) target = $region29
  $region28: #{detect_forward.5} parent=0 // pred_region
    _
  $region29: #{detect_forward.5} parent=0 // pred_fallthru
    _

</llo_original>
